<compile_context>
chip_gen: v6e
topology: v6e:2x2x1
jax: 0.10.0
libtpu: 0.0.40
codegen_flags: <defaults>
</compile_context>

<pallas_src>
import functools

import jax
import jax.numpy as jnp
from jax.experimental import pallas as pl
from jax.experimental.pallas import tpu as pltpu


_VMEM_LIMIT = 32 * 1024 * 1024   # safe on v5e/v6e (128 MiB) and v7x (64 MiB physical)
_TILE_M = 256                    # matmul row tile; raise to 512+ on v6e (128 MiB VMEM)


def _round_up(x, m):
    return (x + m - 1) // m * m


# ----------------------------- activations ---------------------------------
def _hardswish(x):
    return x * jnp.clip(x + 3.0, 0.0, 6.0) * (1.0 / 6.0)


def _relu(x):
    return jnp.maximum(x, 0.0)


def _identity(x):
    return x


_ACTS = {"hardswish": _hardswish, "relu": _relu, "none": _identity}


# ----------------------- tiled matmul + folded BN + act ---------------------
def _matmul_bn_act_kernel(x_ref, w_ref, s_ref, b_ref, o_ref, *, act):
    y = jnp.dot(x_ref[...], w_ref[...], preferred_element_type=jnp.float32)
    y = y * s_ref[...] + b_ref[...]
    o_ref[...] = _ACTS[act](y).astype(o_ref.dtype)


def matmul_bn_act(x, w, scale, bias, act="none", out_dtype=jnp.bfloat16,
                  tile_m=_TILE_M):
    """Y = act((X @ W) * scale + bias); X:(M,K) W:(K,N). bf16 MXU, f32 accum."""
    M, K = x.shape
    N = w.shape[1]
    Mp = _round_up(M, 16)
    TM = Mp if Mp <= tile_m else tile_m
    Mp = _round_up(M, TM)
    xb = x.astype(jnp.bfloat16)
    if Mp != M:
        xb = jnp.pad(xb, ((0, Mp - M), (0, 0)))
    out = pl.pallas_call(
        functools.partial(_matmul_bn_act_kernel, act=act),
        out_shape=jax.ShapeDtypeStruct((Mp, N), out_dtype),
        grid=(Mp // TM,),
        in_specs=[
            pl.BlockSpec((TM, K), lambda i: (i, 0)),
            pl.BlockSpec((K, N), lambda i: (0, 0)),
            pl.BlockSpec((1, N), lambda i: (0, 0)),
            pl.BlockSpec((1, N), lambda i: (0, 0)),
        ],
        out_specs=pl.BlockSpec((TM, N), lambda i: (i, 0)),
        compiler_params=pltpu.CompilerParams(
            dimension_semantics=("parallel",),
            vmem_limit_bytes=_VMEM_LIMIT),
    )(xb, w.astype(jnp.bfloat16),
      scale.reshape(1, N).astype(jnp.float32),
      bias.reshape(1, N).astype(jnp.float32))
    return out if Mp == M else out[:M]


# -------- fused block 1: dw3x3(s1)+BN+ReLU -> pw1x1+BN -> +residual ---------
def _block1_kernel(xp_ref, wdw_ref, dws_ref, dwb_ref,
                   wpw_ref, pws_ref, pwb_ref, o_ref):
    Hp, Wp, C = xp_ref.shape[1], xp_ref.shape[2], xp_ref.shape[3]
    H, W = Hp - 2, Wp - 2
    x = xp_ref[0].astype(jnp.float32)              # (Hp, Wp, C), halo included
    wdw = wdw_ref[...]                             # (9, C) f32
    # unrolled 9-tap shifted accumulation; channels stay on the lane axis
    acc = x[0:H, 0:W, :] * wdw[0]
    for t in range(1, 9):
        i, j = t // 3, t % 3
        acc = acc + x[i:i + H, j:j + W, :] * wdw[t]
    h = jnp.maximum(acc * dws_ref[...] + dwb_ref[...], 0.0)      # dw BN + ReLU
    y = jnp.dot(h.reshape(H * W, C).astype(jnp.bfloat16), wpw_ref[...],
                preferred_element_type=jnp.float32)
    y = y * pws_ref[...] + pwb_ref[...]                          # pw BN (no act)
    res = x[1:1 + H, 1:1 + W, :].reshape(H * W, C)               # block input
    o_ref[0] = (y + res).astype(o_ref.dtype)


def block1_fused(xp, b1):
    N, Hp, Wp, C = xp.shape
    H, W = Hp - 2, Wp - 2
    C1 = b1["pw_w"].shape[1]
    assert C1 == C  # residual requires in_chs == out_chs at stride 1
    vec = lambda a, n: a.reshape(1, n).astype(jnp.float32)
    return pl.pallas_call(
        _block1_kernel,
        out_shape=jax.ShapeDtypeStruct((N, H * W, C1), jnp.bfloat16),
        grid=(N,),
        in_specs=[
            pl.BlockSpec((1, Hp, Wp, C), lambda n: (n, 0, 0, 0)),
            pl.BlockSpec((9, C), lambda n: (0, 0)),
            pl.BlockSpec((1, C), lambda n: (0, 0)),
            pl.BlockSpec((1, C), lambda n: (0, 0)),
            pl.BlockSpec((C, C1), lambda n: (0, 0)),
            pl.BlockSpec((1, C1), lambda n: (0, 0)),
            pl.BlockSpec((1, C1), lambda n: (0, 0)),
        ],
        out_specs=pl.BlockSpec((1, H * W, C1), lambda n: (n, 0, 0)),
        compiler_params=pltpu.CompilerParams(
            dimension_semantics=("parallel",),
            vmem_limit_bytes=_VMEM_LIMIT),
    )(xp,
      b1["dw_w"].reshape(9, C).astype(jnp.float32),
      vec(b1["dw_s"], C), vec(b1["dw_b"], C),
      b1["pw_w"].astype(jnp.bfloat16),
      vec(b1["pw_s"], C1), vec(b1["pw_b"], C1))


# ------ fused block 2 tail: dw3x3(s2)+BN+HSwish -> SE -> proj1x1+BN ----------
def _block2_kernel(p00_ref, p01_ref, p10_ref, p11_ref,
                   wdw_ref, dws_ref, dwb_ref,
                   sw1_ref, sb1_ref, sw2_ref, sb2_ref,
                   wpj_ref, pjs_ref, pjb_ref, o_ref):
    OH = p00_ref.shape[1] - 1
    OW = p00_ref.shape[2] - 1
    E = p00_ref.shape[3]
    ph = ((p00_ref[0].astype(jnp.float32), p01_ref[0].astype(jnp.float32)),
          (p10_ref[0].astype(jnp.float32), p11_ref[0].astype(jnp.float32)))
    wdw = wdw_ref[...]                             # (9, E) f32
    # stride-2 depthwise conv via polyphase taps (all unit-stride static slices)
    acc = None
    for i in range(3):
        for j in range(3):
            src = ph[i % 2][j % 2]
            tap = src[i // 2:i // 2 + OH, j // 2:j // 2 + OW, :]
            term = tap * wdw[i * 3 + j]
            acc = term if acc is None else acc + term
    h = _hardswish(acc * dws_ref[...] + dwb_ref[...])            # (OH, OW, E)
    hm = h.reshape(OH * OW, E)
    # squeeze-excite: global pool -> fc1/ReLU -> fc2/hard-sigmoid -> gate
    pooled = jnp.mean(hm, axis=0, keepdims=True)                 # (1, E)
    s = jnp.dot(pooled, sw1_ref[...], preferred_element_type=jnp.float32)
    s = jnp.maximum(s + sb1_ref[...], 0.0)
    g = jnp.dot(s, sw2_ref[...], preferred_element_type=jnp.float32) + sb2_ref[...]
    g = jnp.clip(g + 3.0, 0.0, 6.0) * (1.0 / 6.0)
    hg = (hm * g).astype(jnp.bfloat16)
    # projection 1x1 + BN (no act, no residual: stride 2)
    y = jnp.dot(hg, wpj_ref[...], preferred_element_type=jnp.float32)
    y = y * pjs_ref[...] + pjb_ref[...]
    o_ref[0] = y.astype(o_ref.dtype)


def block2_fused(phases, b2):
    p00, p01, p10, p11 = phases
    N, OHp1, OWp1, E = p00.shape
    OH, OW = OHp1 - 1, OWp1 - 1
    R = b2["se_w1"].shape[1]
    C2 = b2["proj_w"].shape[1]
    vec = lambda a, n: a.reshape(1, n).astype(jnp.float32)
    phase_spec = pl.BlockSpec((1, OHp1, OWp1, E), lambda n: (n, 0, 0, 0))
    return pl.pallas_call(
        _block2_kernel,
        out_shape=jax.ShapeDtypeStruct((N, OH * OW, C2), jnp.bfloat16),
        grid=(N,),
        in_specs=[phase_spec] * 4 + [
            pl.BlockSpec((9, E), lambda n: (0, 0)),
            pl.BlockSpec((1, E), lambda n: (0, 0)),
            pl.BlockSpec((1, E), lambda n: (0, 0)),
            pl.BlockSpec((E, R), lambda n: (0, 0)),
            pl.BlockSpec((1, R), lambda n: (0, 0)),
            pl.BlockSpec((R, E), lambda n: (0, 0)),
            pl.BlockSpec((1, E), lambda n: (0, 0)),
            pl.BlockSpec((E, C2), lambda n: (0, 0)),
            pl.BlockSpec((1, C2), lambda n: (0, 0)),
            pl.BlockSpec((1, C2), lambda n: (0, 0)),
        ],
        out_specs=pl.BlockSpec((1, OH * OW, C2), lambda n: (n, 0, 0)),
        compiler_params=pltpu.CompilerParams(
            dimension_semantics=("parallel",),
            vmem_limit_bytes=_VMEM_LIMIT),
    )(p00, p01, p10, p11,
      b2["dw_w"].reshape(9, E).astype(jnp.float32),
      vec(b2["dw_s"], E), vec(b2["dw_b"], E),
      b2["se_w1"].astype(jnp.float32), vec(b2["se_b1"], R),
      b2["se_w2"].astype(jnp.float32), vec(b2["se_b2"], E),
      b2["proj_w"].astype(jnp.bfloat16),
      vec(b2["proj_s"], C2), vec(b2["proj_b"], C2))


# ------------ fused efficient head: GAP -> conv_head+HSwish -> classifier ----
def _head_kernel(x_ref, hw_ref, hb_ref, cw_ref, cb_ref, o_ref):
    x = x_ref[...].astype(jnp.float32)             # (N, HW, C)
    pooled = jnp.mean(x, axis=1)                   # global average pool -> (N, C)
    f = jnp.dot(pooled.astype(jnp.bfloat16), hw_ref[...],
                preferred_element_type=jnp.float32) + hb_ref[...]
    f = _hardswish(f)                              # act2
    # flatten(1) is a no-op; drop_rate = 0.0 -> no dropout
    logits = jnp.dot(f.astype(jnp.bfloat16), cw_ref[...],
                     preferred_element_type=jnp.float32) + cb_ref[...]
    o_ref[...] = logits


def head_fused(x, head_w, head_b, cls_w, cls_b):
    N = x.shape[0]
    NC = cls_w.shape[1]
    vspec = pl.BlockSpec(memory_space=pltpu.MemorySpace.VMEM)
    return pl.pallas_call(
        _head_kernel,
        out_shape=jax.ShapeDtypeStruct((N, NC), jnp.float32),
        in_specs=[vspec] * 5,
        out_specs=vspec,
        compiler_params=pltpu.CompilerParams(vmem_limit_bytes=_VMEM_LIMIT),
    )(x, head_w.astype(jnp.bfloat16),
      head_b.reshape(1, -1).astype(jnp.float32),
      cls_w.astype(jnp.bfloat16),
      cls_b.reshape(1, -1).astype(jnp.float32))


# ----------------------------- conv glue (stem only) ------------------------
def _im2col(x, k, stride, pad):
    """x: (N,H,W,C) -> patches (N,OH,OW,k*k,C), taps ordered (i,j) row-major."""
    N, H, W, C = x.shape
    xp = jnp.pad(x, ((0, 0), (pad, pad), (pad, pad), (0, 0)))
    OH = (H + 2 * pad - k) // stride + 1
    OW = (W + 2 * pad - k) // stride + 1
    taps = [xp[:, i:i + stride * OH:stride, j:j + stride * OW:stride, :]
            for i in range(k) for j in range(k)]
    return jnp.stack(taps, axis=3), OH, OW


# ----------------------------- parameters -----------------------------------
def _fold_bn(key, c, eps=1e-5):
    """Eval-mode BatchNorm folded to (scale, bias)."""
    k1, k2, k3, k4 = jax.random.split(key, 4)
    gamma = 1.0 + 0.1 * jax.random.normal(k1, (c,), jnp.float32)
    beta = 0.1 * jax.random.normal(k2, (c,), jnp.float32)
    mean = 0.1 * jax.random.normal(k3, (c,), jnp.float32)
    var = jnp.abs(1.0 + 0.1 * jax.random.normal(k4, (c,), jnp.float32))
    scale = gamma / jnp.sqrt(var + eps)
    bias = beta - mean * scale
    return scale, bias


def init_params(key, in_chans=3, stem=16, c1=16, exp=48, se_red=12, c2=24,
                num_features=64, num_classes=10):
    keys = iter(jax.random.split(key, 48))

    def nrm(shape, s=0.1):
        return s * jax.random.normal(next(keys), shape, jnp.float32)

    p = {}
    # stem 3x3 s2
    p["stem_w"] = nrm((3, 3, in_chans, stem))
    p["stem_s"], p["stem_b"] = _fold_bn(next(keys), stem)
    # block 1: depthwise-separable, stride 1, residual
    b1 = {}
    b1["dw_w"] = nrm((3, 3, stem))
    b1["dw_s"], b1["dw_b"] = _fold_bn(next(keys), stem)
    b1["pw_w"] = nrm((stem, c1))
    b1["pw_s"], b1["pw_b"] = _fold_bn(next(keys), c1)
    p["b1"] = b1
    # block 2: inverted residual with SE, stride 2
    b2 = {}
    b2["exp_w"] = nrm((c1, exp))
    b2["exp_s"], b2["exp_b"] = _fold_bn(next(keys), exp)
    b2["dw_w"] = nrm((3, 3, exp))
    b2["dw_s"], b2["dw_b"] = _fold_bn(next(keys), exp)
    b2["se_w1"] = nrm((exp, se_red))
    b2["se_b1"] = jnp.zeros((se_red,), jnp.float32)
    b2["se_w2"] = nrm((se_red, exp))
    b2["se_b2"] = jnp.zeros((exp,), jnp.float32)
    b2["proj_w"] = nrm((exp, c2))
    b2["proj_s"], b2["proj_b"] = _fold_bn(next(keys), c2)
    p["b2"] = b2
    # efficient head: conv_head (1x1, bias, no BN) + classifier
    p["head_w"] = nrm((c2, num_features))
    p["head_b"] = nrm((num_features,), 0.01)
    p["cls_w"] = nrm((num_features, num_classes), 0.01)
    p["cls_b"] = jnp.zeros((num_classes,), jnp.float32)
    return p


# ----------------------------- forward ---------------------------------------
def mobilenetv3_forward(params, x_nchw):
    # PyTorch input is NCHW; convert once to NHWC and carry bf16 activations.
    x = jnp.transpose(x_nchw, (0, 2, 3, 1)).astype(jnp.bfloat16)
    N, H, W, Cin = x.shape

    # ---- conv_stem -> bn1 -> act1 (HardSwish): im2col + tiled MXU matmul ----
    p, OH, OW = _im2col(x, k=3, stride=2, pad=1)          # (N,OH,OW,9,Cin)
    k2cin = 9 * Cin
    patches = p.reshape(N * OH * OW, k2cin)
    kpad = _round_up(k2cin, 32) - k2cin                   # pad K: 27 -> 32
    patches = jnp.pad(patches, ((0, 0), (0, kpad)))
    w_stem = jnp.pad(params["stem_w"].reshape(k2cin, -1), ((0, kpad), (0, 0)))
    xs = matmul_bn_act(patches, w_stem, params["stem_s"], params["stem_b"],
                       act="hardswish")                   # (N*OH*OW, stem) bf16
    C0 = xs.shape[-1]
    xs = xs.reshape(N, OH, OW, C0)
    H1, W1 = OH, OW

    # ---- block 1 (single fused kernel): dw+BN+ReLU -> pw+BN -> +residual ----
    b1 = params["b1"]
    xp = jnp.pad(xs, ((0, 0), (1, 1), (1, 1), (0, 0)))    # halo for the 3x3 dw
    x1 = block1_fused(xp, b1)                             # (N, H1*W1, C1) bf16
    C1 = x1.shape[-1]

    # ---- block 2: expand 1x1 (tiled matmul), then fused dw(s2)+SE+proj ------
    b2 = params["b2"]
    e = matmul_bn_act(x1.reshape(N * H1 * W1, C1), b2["exp_w"],
                      b2["exp_s"], b2["exp_b"], act="hardswish")
    E = e.shape[-1]
    ep = jnp.pad(e.reshape(N, H1, W1, E), ((0, 0), (1, 1), (1, 1), (0, 0)))
    # polyphase split so the stride-2 taps are unit-stride static slices in-kernel
    phases = [ep[:, r::2, s::2, :] for r in (0, 1) for s in (0, 1)]
    x2 = block2_fused(phases, b2)                         # (N, OH2*OW2, C2) bf16

    # ---- efficient head (single fused kernel): GAP -> conv_head -> classifier
    logits = head_fused(x2, params["head_w"], params["head_b"],
                        params["cls_w"], params["cls_b"])  # (N, num_classes) f32
    return logits


if __name__ == "__main__":
    key = jax.random.PRNGKey(0)
    pkey, xkey = jax.random.split(key)
    params = init_params(pkey)
    x = jax.random.normal(xkey, (2, 3, 32, 32), jnp.float32)  # NCHW like PyTorch
    out = jax.jit(mobilenetv3_forward)(params, x)
    out = jax.block_until_ready(out)
    assert out.shape == (2, 10) and out.dtype == jnp.float32
    print("KERNEL_OK")
</pallas_src>

<mosaic_0001>
module attributes {stable_mosaic.version = 11 : i64} {
  func.func @_matmul_bn_act_kernel(%arg0: i32, %arg1: memref<256x32xbf16, #tpu.memory_space<vmem>>, %arg2: memref<32x16xbf16, #tpu.memory_space<vmem>>, %arg3: memref<1x16xf32, #tpu.memory_space<vmem>>, %arg4: memref<1x16xf32, #tpu.memory_space<vmem>>, %arg5: memref<256x16xbf16, #tpu.memory_space<vmem>>) attributes {dimension_semantics = [#tpu.dimension_semantics<parallel>], iteration_bounds = array<i64: 2>, scalar_prefetch = 0 : i64, scratch_operands = 0 : i64, tpu.core_type = #tpu.core_type<tc>, window_params = [{transform_indices = @transform_0, window_bounds = array<i64: 256, 32>}, {pipeline_mode = #tpu.pipeline_mode<synchronous>, transform_indices = @transform_1, window_bounds = array<i64: 32, 16>}, {pipeline_mode = #tpu.pipeline_mode<synchronous>, transform_indices = @transform_2, window_bounds = array<i64: 1, 16>}, {pipeline_mode = #tpu.pipeline_mode<synchronous>, transform_indices = @transform_3, window_bounds = array<i64: 1, 16>}, {transform_indices = @transform_4, window_bounds = array<i64: 256, 16>}]} {
    %c0 = arith.constant 0 : index
    %c0_0 = arith.constant 0 : index
    %0 = vector.load %arg1[%c0, %c0_0] : memref<256x32xbf16, #tpu.memory_space<vmem>>, vector<256x32xbf16>
    %c0_1 = arith.constant 0 : index
    %c0_2 = arith.constant 0 : index
    %1 = vector.load %arg2[%c0_1, %c0_2] : memref<32x16xbf16, #tpu.memory_space<vmem>>, vector<32x16xbf16>
    %cst = arith.constant dense<0.000000e+00> : vector<256x16xf32>
    %2 = tpu.matmul %0, %1, %cst {dimension_numbers = #tpu.dot_dimension_numbers<[1], [0], [0], [1], [0, 0, 1, 1], [], []>} : vector<256x32xbf16>, vector<32x16xbf16>, vector<256x16xf32> -> vector<256x16xf32>
    %c0_3 = arith.constant 0 : index
    %c0_4 = arith.constant 0 : index
    %3 = vector.load %arg3[%c0_3, %c0_4] : memref<1x16xf32, #tpu.memory_space<vmem>>, vector<1x16xf32>
    %4 = vector.broadcast %3 : vector<1x16xf32> to vector<256x16xf32>
    %5 = arith.mulf %2, %4 : vector<256x16xf32>
    %c0_5 = arith.constant 0 : index
    %c0_6 = arith.constant 0 : index
    %6 = vector.load %arg4[%c0_5, %c0_6] : memref<1x16xf32, #tpu.memory_space<vmem>>, vector<1x16xf32>
    %7 = vector.broadcast %6 : vector<1x16xf32> to vector<256x16xf32>
    %8 = arith.addf %5, %7 : vector<256x16xf32>
    %cst_7 = arith.constant 3.000000e+00 : f32
    %9 = vector.broadcast %cst_7 : f32 to vector<256x16xf32>
    %10 = arith.addf %8, %9 : vector<256x16xf32>
    %cst_8 = arith.constant 0.000000e+00 : f32
    %cst_9 = arith.constant 6.000000e+00 : f32
    %11 = vector.broadcast %cst_8 : f32 to vector<256x16xf32>
    %12 = arith.maximumf %11, %10 : vector<256x16xf32>
    %13 = vector.broadcast %cst_9 : f32 to vector<256x16xf32>
    %14 = arith.minimumf %13, %12 : vector<256x16xf32>
    %15 = arith.mulf %8, %14 : vector<256x16xf32>
    %cst_10 = arith.constant 0.166666672 : f32
    %16 = vector.broadcast %cst_10 : f32 to vector<256x16xf32>
    %17 = arith.mulf %15, %16 : vector<256x16xf32>
    %18 = arith.truncf %17 : vector<256x16xf32> to vector<256x16xbf16>
    %c0_11 = arith.constant 0 : index
    %c0_12 = arith.constant 0 : index
    %19 = vector.load %arg5[%c0_11, %c0_12] : memref<256x16xbf16, #tpu.memory_space<vmem>>, vector<256x16xbf16>
    tpu.vector_store %arg5[%c0_11, %c0_12], %18 {strides = array<i32>} : memref<256x16xbf16, #tpu.memory_space<vmem>>, vector<256x16xbf16>,
    return
  }
  func.func @transform_0(%arg0: i32) -> (i32, i32) {
    %c0_i32 = arith.constant 0 : i32
    %c0_i32_0 = arith.constant 0 : i32
    return %arg0, %c0_i32 : i32, i32
  }
  func.func @transform_1(%arg0: i32) -> (i32, i32) {
    %c0_i32 = arith.constant 0 : i32
    %c0_i32_0 = arith.constant 0 : i32
    %c0_i32_1 = arith.constant 0 : i32
    return %c0_i32, %c0_i32_0 : i32, i32
  }
  func.func @transform_2(%arg0: i32) -> (i32, i32) {
    %c0_i32 = arith.constant 0 : i32
    %c0_i32_0 = arith.constant 0 : i32
    %c0_i32_1 = arith.constant 0 : i32
    return %c0_i32, %c0_i32_0 : i32, i32
  }
  func.func @transform_3(%arg0: i32) -> (i32, i32) {
    %c0_i32 = arith.constant 0 : i32
    %c0_i32_0 = arith.constant 0 : i32
    %c0_i32_1 = arith.constant 0 : i32
    return %c0_i32, %c0_i32_0 : i32, i32
  }
  func.func @transform_4(%arg0: i32) -> (i32, i32) {
    %c0_i32 = arith.constant 0 : i32
    %c0_i32_0 = arith.constant 0 : i32
    return %arg0, %c0_i32 : i32, i32
  }
}

module attributes {stable_mosaic.version = 11 : i64} {
  func.func @_block1_kernel(%arg0: i32, %arg1: memref<1x18x18x16xbf16, #tpu.memory_space<vmem>>, %arg2: memref<9x16xf32, #tpu.memory_space<vmem>>, %arg3: memref<1x16xf32, #tpu.memory_space<vmem>>, %arg4: memref<1x16xf32, #tpu.memory_space<vmem>>, %arg5: memref<16x16xbf16, #tpu.memory_space<vmem>>, %arg6: memref<1x16xf32, #tpu.memory_space<vmem>>, %arg7: memref<1x16xf32, #tpu.memory_space<vmem>>, %arg8: memref<1x256x16xbf16, #tpu.memory_space<vmem>>) attributes {dimension_semantics = [#tpu.dimension_semantics<parallel>], iteration_bounds = array<i64: 2>, scalar_prefetch = 0 : i64, scratch_operands = 0 : i64, tpu.core_type = #tpu.core_type<tc>, window_params = [{transform_indices = @transform_0, window_bounds = array<i64: 1, 18, 18, 16>}, {pipeline_mode = #tpu.pipeline_mode<synchronous>, transform_indices = @transform_1, window_bounds = array<i64: 9, 16>}, {pipeline_mode = #tpu.pipeline_mode<synchronous>, transform_indices = @transform_2, window_bounds = array<i64: 1, 16>}, {pipeline_mode = #tpu.pipeline_mode<synchronous>, transform_indices = @transform_3, window_bounds = array<i64: 1, 16>}, {pipeline_mode = #tpu.pipeline_mode<synchronous>, transform_indices = @transform_4, window_bounds = array<i64: 16, 16>}, {pipeline_mode = #tpu.pipeline_mode<synchronous>, transform_indices = @transform_5, window_bounds = array<i64: 1, 16>}, {pipeline_mode = #tpu.pipeline_mode<synchronous>, transform_indices = @transform_6, window_bounds = array<i64: 1, 16>}, {transform_indices = @transform_7, window_bounds = array<i64: 1, 256, 16>}]} {
    %c0 = arith.constant 0 : index
    %c0_0 = arith.constant 0 : index
    %c0_1 = arith.constant 0 : index
    %c0_2 = arith.constant 0 : index
    %0 = vector.load %arg1[%c0, %c0_0, %c0_1, %c0_2] : memref<1x18x18x16xbf16, #tpu.memory_space<vmem>>, vector<1x18x18x16xbf16>
    %1 = vector.shape_cast %0 : vector<1x18x18x16xbf16> to vector<18x18x16xbf16>
    %2 = arith.extf %1 : vector<18x18x16xbf16> to vector<18x18x16xf32>
    %c0_3 = arith.constant 0 : index
    %c0_4 = arith.constant 0 : index
    %3 = vector.load %arg2[%c0_3, %c0_4] : memref<9x16xf32, #tpu.memory_space<vmem>>, vector<9x16xf32>
    %4 = vector.extract_strided_slice %2 {offsets = [0, 0, 0], sizes = [16, 16, 16], strides = [1, 1, 1]} : vector<18x18x16xf32> to vector<16x16x16xf32>
    %5 = vector.extract_strided_slice %3 {offsets = [0, 0], sizes = [1, 16], strides = [1, 1]} : vector<9x16xf32> to vector<1x16xf32>
    %6 = vector.shape_cast %5 : vector<1x16xf32> to vector<16xf32>
    %7 = vector.shape_cast %6 : vector<16xf32> to vector<1x1x16xf32>
    %8 = vector.broadcast %7 : vector<1x1x16xf32> to vector<16x16x16xf32>
    %9 = arith.mulf %4, %8 : vector<16x16x16xf32>
    %10 = vector.extract_strided_slice %2 {offsets = [0, 1, 0], sizes = [16, 16, 16], strides = [1, 1, 1]} : vector<18x18x16xf32> to vector<16x16x16xf32>
    %11 = vector.extract_strided_slice %3 {offsets = [1, 0], sizes = [1, 16], strides = [1, 1]} : vector<9x16xf32> to vector<1x16xf32>
    %12 = vector.shape_cast %11 : vector<1x16xf32> to vector<16xf32>
    %13 = vector.shape_cast %12 : vector<16xf32> to vector<1x1x16xf32>
    %14 = vector.broadcast %13 : vector<1x1x16xf32> to vector<16x16x16xf32>
    %15 = arith.mulf %10, %14 : vector<16x16x16xf32>
    %16 = arith.addf %9, %15 : vector<16x16x16xf32>
    %17 = vector.extract_strided_slice %2 {offsets = [0, 2, 0], sizes = [16, 16, 16], strides = [1, 1, 1]} : vector<18x18x16xf32> to vector<16x16x16xf32>
    %18 = vector.extract_strided_slice %3 {offsets = [2, 0], sizes = [1, 16], strides = [1, 1]} : vector<9x16xf32> to vector<1x16xf32>
    %19 = vector.shape_cast %18 : vector<1x16xf32> to vector<16xf32>
    %20 = vector.shape_cast %19 : vector<16xf32> to vector<1x1x16xf32>
    %21 = vector.broadcast %20 : vector<1x1x16xf32> to vector<16x16x16xf32>
    %22 = arith.mulf %17, %21 : vector<16x16x16xf32>
    %23 = arith.addf %16, %22 : vector<16x16x16xf32>
    %24 = vector.extract_strided_slice %2 {offsets = [1, 0, 0], sizes = [16, 16, 16], strides = [1, 1, 1]} : vector<18x18x16xf32> to vector<16x16x16xf32>
    %25 = vector.extract_strided_slice %3 {offsets = [3, 0], sizes = [1, 16], strides = [1, 1]} : vector<9x16xf32> to vector<1x16xf32>
    %26 = vector.shape_cast %25 : vector<1x16xf32> to vector<16xf32>
    %27 = vector.shape_cast %26 : vector<16xf32> to vector<1x1x16xf32>
    %28 = vector.broadcast %27 : vector<1x1x16xf32> to vector<16x16x16xf32>
    %29 = arith.mulf %24, %28 : vector<16x16x16xf32>
    %30 = arith.addf %23, %29 : vector<16x16x16xf32>
    %31 = vector.extract_strided_slice %2 {offsets = [1, 1, 0], sizes = [16, 16, 16], strides = [1, 1, 1]} : vector<18x18x16xf32> to vector<16x16x16xf32>
    %32 = vector.extract_strided_slice %3 {offsets = [4, 0], sizes = [1, 16], strides = [1, 1]} : vector<9x16xf32> to vector<1x16xf32>
    %33 = vector.shape_cast %32 : vector<1x16xf32> to vector<16xf32>
    %34 = vector.shape_cast %33 : vector<16xf32> to vector<1x1x16xf32>
    %35 = vector.broadcast %34 : vector<1x1x16xf32> to vector<16x16x16xf32>
    %36 = arith.mulf %31, %35 : vector<16x16x16xf32>
    %37 = arith.addf %30, %36 : vector<16x16x16xf32>
    %38 = vector.extract_strided_slice %2 {offsets = [1, 2, 0], sizes = [16, 16, 16], strides = [1, 1, 1]} : vector<18x18x16xf32> to vector<16x16x16xf32>
    %39 = vector.extract_strided_slice %3 {offsets = [5, 0], sizes = [1, 16], strides = [1, 1]} : vector<9x16xf32> to vector<1x16xf32>
    %40 = vector.shape_cast %39 : vector<1x16xf32> to vector<16xf32>
    %41 = vector.shape_cast %40 : vector<16xf32> to vector<1x1x16xf32>
    %42 = vector.broadcast %41 : vector<1x1x16xf32> to vector<16x16x16xf32>
    %43 = arith.mulf %38, %42 : vector<16x16x16xf32>
    %44 = arith.addf %37, %43 : vector<16x16x16xf32>
    %45 = vector.extract_strided_slice %2 {offsets = [2, 0, 0], sizes = [16, 16, 16], strides = [1, 1, 1]} : vector<18x18x16xf32> to vector<16x16x16xf32>
    %46 = vector.extract_strided_slice %3 {offsets = [6, 0], sizes = [1, 16], strides = [1, 1]} : vector<9x16xf32> to vector<1x16xf32>
    %47 = vector.shape_cast %46 : vector<1x16xf32> to vector<16xf32>
    %48 = vector.shape_cast %47 : vector<16xf32> to vector<1x1x16xf32>
    %49 = vector.broadcast %48 : vector<1x1x16xf32> to vector<16x16x16xf32>
    %50 = arith.mulf %45, %49 : vector<16x16x16xf32>
    %51 = arith.addf %44, %50 : vector<16x16x16xf32>
    %52 = vector.extract_strided_slice %2 {offsets = [2, 1, 0], sizes = [16, 16, 16], strides = [1, 1, 1]} : vector<18x18x16xf32> to vector<16x16x16xf32>
    %53 = vector.extract_strided_slice %3 {offsets = [7, 0], sizes = [1, 16], strides = [1, 1]} : vector<9x16xf32> to vector<1x16xf32>
    %54 = vector.shape_cast %53 : vector<1x16xf32> to vector<16xf32>
    %55 = vector.shape_cast %54 : vector<16xf32> to vector<1x1x16xf32>
    %56 = vector.broadcast %55 : vector<1x1x16xf32> to vector<16x16x16xf32>
    %57 = arith.mulf %52, %56 : vector<16x16x16xf32>
    %58 = arith.addf %51, %57 : vector<16x16x16xf32>
    %59 = vector.extract_strided_slice %2 {offsets = [2, 2, 0], sizes = [16, 16, 16], strides = [1, 1, 1]} : vector<18x18x16xf32> to vector<16x16x16xf32>
    %60 = vector.extract_strided_slice %3 {offsets = [8, 0], sizes = [1, 16], strides = [1, 1]} : vector<9x16xf32> to vector<1x16xf32>
    %61 = vector.shape_cast %60 : vector<1x16xf32> to vector<16xf32>
    %62 = vector.shape_cast %61 : vector<16xf32> to vector<1x1x16xf32>
    %63 = vector.broadcast %62 : vector<1x1x16xf32> to vector<16x16x16xf32>
    %64 = arith.mulf %59, %63 : vector<16x16x16xf32>
    %65 = arith.addf %58, %64 : vector<16x16x16xf32>
    %c0_5 = arith.constant 0 : index
    %c0_6 = arith.constant 0 : index
    %66 = vector.load %arg3[%c0_5, %c0_6] : memref<1x16xf32, #tpu.memory_space<vmem>>, vector<1x16xf32>
    %67 = vector.shape_cast %66 : vector<1x16xf32> to vector<1x1x16xf32>
    %68 = vector.broadcast %67 : vector<1x1x16xf32> to vector<16x16x16xf32>
    %69 = arith.mulf %65, %68 : vector<16x16x16xf32>
    %c0_7 = arith.constant 0 : index
    %c0_8 = arith.constant 0 : index
    %70 = vector.load %arg4[%c0_7, %c0_8] : memref<1x16xf32, #tpu.memory_space<vmem>>, vector<1x16xf32>
    %71 = vector.shape_cast %70 : vector<1x16xf32> to vector<1x1x16xf32>
    %72 = vector.broadcast %71 : vector<1x1x16xf32> to vector<16x16x16xf32>
    %73 = arith.addf %69, %72 : vector<16x16x16xf32>
    %cst = arith.constant 0.000000e+00 : f32
    %74 = vector.broadcast %cst : f32 to vector<16x16x16xf32>
    %75 = arith.maximumf %73, %74 : vector<16x16x16xf32>
    %76 = vector.shape_cast %75 : vector<16x16x16xf32> to vector<256x16xf32>
    %77 = arith.truncf %76 : vector<256x16xf32> to vector<256x16xbf16>
    %c0_9 = arith.constant 0 : index
    %c0_10 = arith.constant 0 : index
    %78 = vector.load %arg5[%c0_9, %c0_10] : memref<16x16xbf16, #tpu.memory_space<vmem>>, vector<16x16xbf16>
    %cst_11 = arith.constant dense<0.000000e+00> : vector<256x16xf32>
    %79 = tpu.matmul %77, %78, %cst_11 {dimension_numbers = #tpu.dot_dimension_numbers<[1], [0], [0], [1], [0, 0, 1, 1], [], []>} : vector<256x16xbf16>, vector<16x16xbf16>, vector<256x16xf32> -> vector<256x16xf32>
    %c0_12 = arith.constant 0 : index
    %c0_13 = arith.constant 0 : index
    %80 = vector.load %arg6[%c0_12, %c0_13] : memref<1x16xf32, #tpu.memory_space<vmem>>, vector<1x16xf32>
    %81 = vector.broadcast %80 : vector<1x16xf32> to vector<256x16xf32>
    %82 = arith.mulf %79, %81 : vector<256x16xf32>
    %c0_14 = arith.constant 0 : index
    %c0_15 = arith.constant 0 : index
    %83 = vector.load %arg7[%c0_14, %c0_15] : memref<1x16xf32, #tpu.memory_space<vmem>>, vector<1x16xf32>
    %84 = vector.broadcast %83 : vector<1x16xf32> to vector<256x16xf32>
    %85 = arith.addf %82, %84 : vector<256x16xf32>
    %86 = vector.extract_strided_slice %2 {offsets = [1, 1, 0], sizes = [16, 16, 16], strides = [1, 1, 1]} : vector<18x18x16xf32> to vector<16x16x16xf32>
    %87 = vector.shape_cast %86 : vector<16x16x16xf32> to vector<256x16xf32>
    %88 = arith.addf %85, %87 : vector<256x16xf32>
    %89 = arith.truncf %88 : vector<256x16xf32> to vector<256x16xbf16>
    %c0_16 = arith.constant 0 : index
    %c0_17 = arith.constant 0 : index
    %c0_18 = arith.constant 0 : index
    %90 = vector.load %arg8[%c0_16, %c0_17, %c0_18] : memref<1x256x16xbf16, #tpu.memory_space<vmem>>, vector<1x256x16xbf16>
    %91 = vector.shape_cast %90 : vector<1x256x16xbf16> to vector<256x16xbf16>
    %92 = vector.shape_cast %89 : vector<256x16xbf16> to vector<1x256x16xbf16>
    tpu.vector_store %arg8[%c0_16, %c0_17, %c0_18], %92 {strides = array<i32>} : memref<1x256x16xbf16, #tpu.memory_space<vmem>>, vector<1x256x16xbf16>,
    return
  }
  func.func @transform_0(%arg0: i32) -> (i32, i32, i32, i32) {
    %c0_i32 = arith.constant 0 : i32
    %c0_i32_0 = arith.constant 0 : i32
    %c0_i32_1 = arith.constant 0 : i32
    %c0_i32_2 = arith.constant 0 : i32
    return %arg0, %c0_i32, %c0_i32_0, %c0_i32_1 : i32, i32, i32, i32
  }
  func.func @transform_1(%arg0: i32) -> (i32, i32) {
    %c0_i32 = arith.constant 0 : i32
    %c0_i32_0 = arith.constant 0 : i32
    %c0_i32_1 = arith.constant 0 : i32
    return %c0_i32, %c0_i32_0 : i32, i32
  }
  func.func @transform_2(%arg0: i32) -> (i32, i32) {
    %c0_i32 = arith.constant 0 : i32
    %c0_i32_0 = arith.constant 0 : i32
    %c0_i32_1 = arith.constant 0 : i32
    return %c0_i32, %c0_i32_0 : i32, i32
  }
  func.func @transform_3(%arg0: i32) -> (i32, i32) {
    %c0_i32 = arith.constant 0 : i32
    %c0_i32_0 = arith.constant 0 : i32
    %c0_i32_1 = arith.constant 0 : i32
    return %c0_i32, %c0_i32_0 : i32, i32
  }
  func.func @transform_4(%arg0: i32) -> (i32, i32) {
    %c0_i32 = arith.constant 0 : i32
    %c0_i32_0 = arith.constant 0 : i32
    %c0_i32_1 = arith.constant 0 : i32
    return %c0_i32, %c0_i32_0 : i32, i32
  }
  func.func @transform_5(%arg0: i32) -> (i32, i32) {
    %c0_i32 = arith.constant 0 : i32
    %c0_i32_0 = arith.constant 0 : i32
    %c0_i32_1 = arith.constant 0 : i32
    return %c0_i32, %c0_i32_0 : i32, i32
  }
  func.func @transform_6(%arg0: i32) -> (i32, i32) {
    %c0_i32 = arith.constant 0 : i32
    %c0_i32_0 = arith.constant 0 : i32
    %c0_i32_1 = arith.constant 0 : i32
    return %c0_i32, %c0_i32_0 : i32, i32
  }
  func.func @transform_7(%arg0: i32) -> (i32, i32, i32) {
    %c0_i32 = arith.constant 0 : i32
    %c0_i32_0 = arith.constant 0 : i32
    %c0_i32_1 = arith.constant 0 : i32
    return %arg0, %c0_i32, %c0_i32_0 : i32, i32, i32
  }
}

module attributes {stable_mosaic.version = 11 : i64} {
  func.func @_matmul_bn_act_kernel(%arg0: i32, %arg1: memref<256x16xbf16, #tpu.memory_space<vmem>>, %arg2: memref<16x48xbf16, #tpu.memory_space<vmem>>, %arg3: memref<1x48xf32, #tpu.memory_space<vmem>>, %arg4: memref<1x48xf32, #tpu.memory_space<vmem>>, %arg5: memref<256x48xbf16, #tpu.memory_space<vmem>>) attributes {dimension_semantics = [#tpu.dimension_semantics<parallel>], iteration_bounds = array<i64: 2>, scalar_prefetch = 0 : i64, scratch_operands = 0 : i64, tpu.core_type = #tpu.core_type<tc>, window_params = [{transform_indices = @transform_0, window_bounds = array<i64: 256, 16>}, {pipeline_mode = #tpu.pipeline_mode<synchronous>, transform_indices = @transform_1, window_bounds = array<i64: 16, 48>}, {pipeline_mode = #tpu.pipeline_mode<synchronous>, transform_indices = @transform_2, window_bounds = array<i64: 1, 48>}, {pipeline_mode = #tpu.pipeline_mode<synchronous>, transform_indices = @transform_3, window_bounds = array<i64: 1, 48>}, {transform_indices = @transform_4, window_bounds = array<i64: 256, 48>}]} {
    %c0 = arith.constant 0 : index
    %c0_0 = arith.constant 0 : index
    %0 = vector.load %arg1[%c0, %c0_0] : memref<256x16xbf16, #tpu.memory_space<vmem>>, vector<256x16xbf16>
    %c0_1 = arith.constant 0 : index
    %c0_2 = arith.constant 0 : index
    %1 = vector.load %arg2[%c0_1, %c0_2] : memref<16x48xbf16, #tpu.memory_space<vmem>>, vector<16x48xbf16>
    %cst = arith.constant dense<0.000000e+00> : vector<256x48xf32>
    %2 = tpu.matmul %0, %1, %cst {dimension_numbers = #tpu.dot_dimension_numbers<[1], [0], [0], [1], [0, 0, 1, 1], [], []>} : vector<256x16xbf16>, vector<16x48xbf16>, vector<256x48xf32> -> vector<256x48xf32>
    %c0_3 = arith.constant 0 : index
    %c0_4 = arith.constant 0 : index
    %3 = vector.load %arg3[%c0_3, %c0_4] : memref<1x48xf32, #tpu.memory_space<vmem>>, vector<1x48xf32>
    %4 = vector.broadcast %3 : vector<1x48xf32> to vector<256x48xf32>
    %5 = arith.mulf %2, %4 : vector<256x48xf32>
    %c0_5 = arith.constant 0 : index
    %c0_6 = arith.constant 0 : index
    %6 = vector.load %arg4[%c0_5, %c0_6] : memref<1x48xf32, #tpu.memory_space<vmem>>, vector<1x48xf32>
    %7 = vector.broadcast %6 : vector<1x48xf32> to vector<256x48xf32>
    %8 = arith.addf %5, %7 : vector<256x48xf32>
    %cst_7 = arith.constant 3.000000e+00 : f32
    %9 = vector.broadcast %cst_7 : f32 to vector<256x48xf32>
    %10 = arith.addf %8, %9 : vector<256x48xf32>
    %cst_8 = arith.constant 0.000000e+00 : f32
    %cst_9 = arith.constant 6.000000e+00 : f32
    %11 = vector.broadcast %cst_8 : f32 to vector<256x48xf32>
    %12 = arith.maximumf %11, %10 : vector<256x48xf32>
    %13 = vector.broadcast %cst_9 : f32 to vector<256x48xf32>
    %14 = arith.minimumf %13, %12 : vector<256x48xf32>
    %15 = arith.mulf %8, %14 : vector<256x48xf32>
    %cst_10 = arith.constant 0.166666672 : f32
    %16 = vector.broadcast %cst_10 : f32 to vector<256x48xf32>
    %17 = arith.mulf %15, %16 : vector<256x48xf32>
    %18 = arith.truncf %17 : vector<256x48xf32> to vector<256x48xbf16>
    %c0_11 = arith.constant 0 : index
    %c0_12 = arith.constant 0 : index
    %19 = vector.load %arg5[%c0_11, %c0_12] : memref<256x48xbf16, #tpu.memory_space<vmem>>, vector<256x48xbf16>
    tpu.vector_store %arg5[%c0_11, %c0_12], %18 {strides = array<i32>} : memref<256x48xbf16, #tpu.memory_space<vmem>>, vector<256x48xbf16>,
    return
  }
  func.func @transform_0(%arg0: i32) -> (i32, i32) {
    %c0_i32 = arith.constant 0 : i32
    %c0_i32_0 = arith.constant 0 : i32
    return %arg0, %c0_i32 : i32, i32
  }
  func.func @transform_1(%arg0: i32) -> (i32, i32) {
    %c0_i32 = arith.constant 0 : i32
    %c0_i32_0 = arith.constant 0 : i32
    %c0_i32_1 = arith.constant 0 : i32
    return %c0_i32, %c0_i32_0 : i32, i32
  }
  func.func @transform_2(%arg0: i32) -> (i32, i32) {
    %c0_i32 = arith.constant 0 : i32
    %c0_i32_0 = arith.constant 0 : i32
    %c0_i32_1 = arith.constant 0 : i32
    return %c0_i32, %c0_i32_0 : i32, i32
  }
  func.func @transform_3(%arg0: i32) -> (i32, i32) {
    %c0_i32 = arith.constant 0 : i32
    %c0_i32_0 = arith.constant 0 : i32
    %c0_i32_1 = arith.constant 0 : i32
    return %c0_i32, %c0_i32_0 : i32, i32
  }
  func.func @transform_4(%arg0: i32) -> (i32, i32) {
    %c0_i32 = arith.constant 0 : i32
    %c0_i32_0 = arith.constant 0 : i32
    return %arg0, %c0_i32 : i32, i32
  }
}

module attributes {stable_mosaic.version = 11 : i64} {
  func.func @_block2_kernel(%arg0: i32, %arg1: memref<1x9x9x48xbf16, #tpu.memory_space<vmem>>, %arg2: memref<1x9x9x48xbf16, #tpu.memory_space<vmem>>, %arg3: memref<1x9x9x48xbf16, #tpu.memory_space<vmem>>, %arg4: memref<1x9x9x48xbf16, #tpu.memory_space<vmem>>, %arg5: memref<9x48xf32, #tpu.memory_space<vmem>>, %arg6: memref<1x48xf32, #tpu.memory_space<vmem>>, %arg7: memref<1x48xf32, #tpu.memory_space<vmem>>, %arg8: memref<48x12xf32, #tpu.memory_space<vmem>>, %arg9: memref<1x12xf32, #tpu.memory_space<vmem>>, %arg10: memref<12x48xf32, #tpu.memory_space<vmem>>, %arg11: memref<1x48xf32, #tpu.memory_space<vmem>>, %arg12: memref<48x24xbf16, #tpu.memory_space<vmem>>, %arg13: memref<1x24xf32, #tpu.memory_space<vmem>>, %arg14: memref<1x24xf32, #tpu.memory_space<vmem>>, %arg15: memref<1x64x24xbf16, #tpu.memory_space<vmem>>) attributes {dimension_semantics = [#tpu.dimension_semantics<parallel>], iteration_bounds = array<i64: 2>, scalar_prefetch = 0 : i64, scratch_operands = 0 : i64, tpu.core_type = #tpu.core_type<tc>, window_params = [{transform_indices = @transform_0, window_bounds = array<i64: 1, 9, 9, 48>}, {transform_indices = @transform_1, window_bounds = array<i64: 1, 9, 9, 48>}, {transform_indices = @transform_2, window_bounds = array<i64: 1, 9, 9, 48>}, {transform_indices = @transform_3, window_bounds = array<i64: 1, 9, 9, 48>}, {pipeline_mode = #tpu.pipeline_mode<synchronous>, transform_indices = @transform_4, window_bounds = array<i64: 9, 48>}, {pipeline_mode = #tpu.pipeline_mode<synchronous>, transform_indices = @transform_5, window_bounds = array<i64: 1, 48>}, {pipeline_mode = #tpu.pipeline_mode<synchronous>, transform_indices = @transform_6, window_bounds = array<i64: 1, 48>}, {pipeline_mode = #tpu.pipeline_mode<synchronous>, transform_indices = @transform_7, window_bounds = array<i64: 48, 12>}, {pipeline_mode = #tpu.pipeline_mode<synchronous>, transform_indices = @transform_8, window_bounds = array<i64: 1, 12>}, {pipeline_mode = #tpu.pipeline_mode<synchronous>, transform_indices = @transform_9, window_bounds = array<i64: 12, 48>}, {pipeline_mode = #tpu.pipeline_mode<synchronous>, transform_indices = @transform_10, window_bounds = array<i64: 1, 48>}, {pipeline_mode = #tpu.pipeline_mode<synchronous>, transform_indices = @transform_11, window_bounds = array<i64: 48, 24>}, {pipeline_mode = #tpu.pipeline_mode<synchronous>, transform_indices = @transform_12, window_bounds = array<i64: 1, 24>}, {pipeline_mode = #tpu.pipeline_mode<synchronous>, transform_indices = @transform_13, window_bounds = array<i64: 1, 24>}, {transform_indices = @transform_14, window_bounds = array<i64: 1, 64, 24>}]} {
    %c0 = arith.constant 0 : index
    %c0_0 = arith.constant 0 : index
    %c0_1 = arith.constant 0 : index
    %c0_2 = arith.constant 0 : index
    %0 = vector.load %arg1[%c0, %c0_0, %c0_1, %c0_2] : memref<1x9x9x48xbf16, #tpu.memory_space<vmem>>, vector<1x9x9x48xbf16>
    %1 = vector.shape_cast %0 : vector<1x9x9x48xbf16> to vector<9x9x48xbf16>
    %2 = arith.extf %1 : vector<9x9x48xbf16> to vector<9x9x48xf32>
    %c0_3 = arith.constant 0 : index
    %c0_4 = arith.constant 0 : index
    %c0_5 = arith.constant 0 : index
    %c0_6 = arith.constant 0 : index
    %3 = vector.load %arg2[%c0_3, %c0_4, %c0_5, %c0_6] : memref<1x9x9x48xbf16, #tpu.memory_space<vmem>>, vector<1x9x9x48xbf16>
    %4 = vector.shape_cast %3 : vector<1x9x9x48xbf16> to vector<9x9x48xbf16>
    %5 = arith.extf %4 : vector<9x9x48xbf16> to vector<9x9x48xf32>
    %c0_7 = arith.constant 0 : index
    %c0_8 = arith.constant 0 : index
    %c0_9 = arith.constant 0 : index
    %c0_10 = arith.constant 0 : index
    %6 = vector.load %arg3[%c0_7, %c0_8, %c0_9, %c0_10] : memref<1x9x9x48xbf16, #tpu.memory_space<vmem>>, vector<1x9x9x48xbf16>
    %7 = vector.shape_cast %6 : vector<1x9x9x48xbf16> to vector<9x9x48xbf16>
    %8 = arith.extf %7 : vector<9x9x48xbf16> to vector<9x9x48xf32>
    %c0_11 = arith.constant 0 : index
    %c0_12 = arith.constant 0 : index
    %c0_13 = arith.constant 0 : index
    %c0_14 = arith.constant 0 : index
    %9 = vector.load %arg4[%c0_11, %c0_12, %c0_13, %c0_14] : memref<1x9x9x48xbf16, #tpu.memory_space<vmem>>, vector<1x9x9x48xbf16>
    %10 = vector.shape_cast %9 : vector<1x9x9x48xbf16> to vector<9x9x48xbf16>
    %11 = arith.extf %10 : vector<9x9x48xbf16> to vector<9x9x48xf32>
    %c0_15 = arith.constant 0 : index
    %c0_16 = arith.constant 0 : index
    %12 = vector.load %arg5[%c0_15, %c0_16] : memref<9x48xf32, #tpu.memory_space<vmem>>, vector<9x48xf32>
    %13 = vector.extract_strided_slice %2 {offsets = [0, 0, 0], sizes = [8, 8, 48], strides = [1, 1, 1]} : vector<9x9x48xf32> to vector<8x8x48xf32>
    %14 = vector.extract_strided_slice %12 {offsets = [0, 0], sizes = [1, 48], strides = [1, 1]} : vector<9x48xf32> to vector<1x48xf32>
    %15 = vector.shape_cast %14 : vector<1x48xf32> to vector<48xf32>
    %16 = vector.shape_cast %15 : vector<48xf32> to vector<1x1x48xf32>
    %17 = vector.broadcast %16 : vector<1x1x48xf32> to vector<8x8x48xf32>
    %18 = arith.mulf %13, %17 : vector<8x8x48xf32>
    %19 = vector.extract_strided_slice %5 {offsets = [0, 0, 0], sizes = [8, 8, 48], strides = [1, 1, 1]} : vector<9x9x48xf32> to vector<8x8x48xf32>
    %20 = vector.extract_strided_slice %12 {offsets = [1, 0], sizes = [1, 48], strides = [1, 1]} : vector<9x48xf32> to vector<1x48xf32>
    %21 = vector.shape_cast %20 : vector<1x48xf32> to vector<48xf32>
    %22 = vector.shape_cast %21 : vector<48xf32> to vector<1x1x48xf32>
    %23 = vector.broadcast %22 : vector<1x1x48xf32> to vector<8x8x48xf32>
    %24 = arith.mulf %19, %23 : vector<8x8x48xf32>
    %25 = arith.addf %18, %24 : vector<8x8x48xf32>
    %26 = vector.extract_strided_slice %2 {offsets = [0, 1, 0], sizes = [8, 8, 48], strides = [1, 1, 1]} : vector<9x9x48xf32> to vector<8x8x48xf32>
    %27 = vector.extract_strided_slice %12 {offsets = [2, 0], sizes = [1, 48], strides = [1, 1]} : vector<9x48xf32> to vector<1x48xf32>
    %28 = vector.shape_cast %27 : vector<1x48xf32> to vector<48xf32>
    %29 = vector.shape_cast %28 : vector<48xf32> to vector<1x1x48xf32>
    %30 = vector.broadcast %29 : vector<1x1x48xf32> to vector<8x8x48xf32>
    %31 = arith.mulf %26, %30 : vector<8x8x48xf32>
    %32 = arith.addf %25, %31 : vector<8x8x48xf32>
    %33 = vector.extract_strided_slice %8 {offsets = [0, 0, 0], sizes = [8, 8, 48], strides = [1, 1, 1]} : vector<9x9x48xf32> to vector<8x8x48xf32>
    %34 = vector.extract_strided_slice %12 {offsets = [3, 0], sizes = [1, 48], strides = [1, 1]} : vector<9x48xf32> to vector<1x48xf32>
    %35 = vector.shape_cast %34 : vector<1x48xf32> to vector<48xf32>
    %36 = vector.shape_cast %35 : vector<48xf32> to vector<1x1x48xf32>
    %37 = vector.broadcast %36 : vector<1x1x48xf32> to vector<8x8x48xf32>
    %38 = arith.mulf %33, %37 : vector<8x8x48xf32>
    %39 = arith.addf %32, %38 : vector<8x8x48xf32>
    %40 = vector.extract_strided_slice %11 {offsets = [0, 0, 0], sizes = [8, 8, 48], strides = [1, 1, 1]} : vector<9x9x48xf32> to vector<8x8x48xf32>
    %41 = vector.extract_strided_slice %12 {offsets = [4, 0], sizes = [1, 48], strides = [1, 1]} : vector<9x48xf32> to vector<1x48xf32>
    %42 = vector.shape_cast %41 : vector<1x48xf32> to vector<48xf32>
    %43 = vector.shape_cast %42 : vector<48xf32> to vector<1x1x48xf32>
    %44 = vector.broadcast %43 : vector<1x1x48xf32> to vector<8x8x48xf32>
    %45 = arith.mulf %40, %44 : vector<8x8x48xf32>
    %46 = arith.addf %39, %45 : vector<8x8x48xf32>
    %47 = vector.extract_strided_slice %8 {offsets = [0, 1, 0], sizes = [8, 8, 48], strides = [1, 1, 1]} : vector<9x9x48xf32> to vector<8x8x48xf32>
    %48 = vector.extract_strided_slice %12 {offsets = [5, 0], sizes = [1, 48], strides = [1, 1]} : vector<9x48xf32> to vector<1x48xf32>
    %49 = vector.shape_cast %48 : vector<1x48xf32> to vector<48xf32>
    %50 = vector.shape_cast %49 : vector<48xf32> to vector<1x1x48xf32>
    %51 = vector.broadcast %50 : vector<1x1x48xf32> to vector<8x8x48xf32>
    %52 = arith.mulf %47, %51 : vector<8x8x48xf32>
    %53 = arith.addf %46, %52 : vector<8x8x48xf32>
    %54 = vector.extract_strided_slice %2 {offsets = [1, 0, 0], sizes = [8, 8, 48], strides = [1, 1, 1]} : vector<9x9x48xf32> to vector<8x8x48xf32>
    %55 = vector.extract_strided_slice %12 {offsets = [6, 0], sizes = [1, 48], strides = [1, 1]} : vector<9x48xf32> to vector<1x48xf32>
    %56 = vector.shape_cast %55 : vector<1x48xf32> to vector<48xf32>
    %57 = vector.shape_cast %56 : vector<48xf32> to vector<1x1x48xf32>
    %58 = vector.broadcast %57 : vector<1x1x48xf32> to vector<8x8x48xf32>
    %59 = arith.mulf %54, %58 : vector<8x8x48xf32>
    %60 = arith.addf %53, %59 : vector<8x8x48xf32>
    %61 = vector.extract_strided_slice %5 {offsets = [1, 0, 0], sizes = [8, 8, 48], strides = [1, 1, 1]} : vector<9x9x48xf32> to vector<8x8x48xf32>
    %62 = vector.extract_strided_slice %12 {offsets = [7, 0], sizes = [1, 48], strides = [1, 1]} : vector<9x48xf32> to vector<1x48xf32>
    %63 = vector.shape_cast %62 : vector<1x48xf32> to vector<48xf32>
    %64 = vector.shape_cast %63 : vector<48xf32> to vector<1x1x48xf32>
    %65 = vector.broadcast %64 : vector<1x1x48xf32> to vector<8x8x48xf32>
    %66 = arith.mulf %61, %65 : vector<8x8x48xf32>
    %67 = arith.addf %60, %66 : vector<8x8x48xf32>
    %68 = vector.extract_strided_slice %2 {offsets = [1, 1, 0], sizes = [8, 8, 48], strides = [1, 1, 1]} : vector<9x9x48xf32> to vector<8x8x48xf32>
    %69 = vector.extract_strided_slice %12 {offsets = [8, 0], sizes = [1, 48], strides = [1, 1]} : vector<9x48xf32> to vector<1x48xf32>
    %70 = vector.shape_cast %69 : vector<1x48xf32> to vector<48xf32>
    %71 = vector.shape_cast %70 : vector<48xf32> to vector<1x1x48xf32>
    %72 = vector.broadcast %71 : vector<1x1x48xf32> to vector<8x8x48xf32>
    %73 = arith.mulf %68, %72 : vector<8x8x48xf32>
    %74 = arith.addf %67, %73 : vector<8x8x48xf32>
    %c0_17 = arith.constant 0 : index
    %c0_18 = arith.constant 0 : index
    %75 = vector.load %arg6[%c0_17, %c0_18] : memref<1x48xf32, #tpu.memory_space<vmem>>, vector<1x48xf32>
    %76 = vector.shape_cast %75 : vector<1x48xf32> to vector<1x1x48xf32>
    %77 = vector.broadcast %76 : vector<1x1x48xf32> to vector<8x8x48xf32>
    %78 = arith.mulf %74, %77 : vector<8x8x48xf32>
    %c0_19 = arith.constant 0 : index
    %c0_20 = arith.constant 0 : index
    %79 = vector.load %arg7[%c0_19, %c0_20] : memref<1x48xf32, #tpu.memory_space<vmem>>, vector<1x48xf32>
    %80 = vector.shape_cast %79 : vector<1x48xf32> to vector<1x1x48xf32>
    %81 = vector.broadcast %80 : vector<1x1x48xf32> to vector<8x8x48xf32>
    %82 = arith.addf %78, %81 : vector<8x8x48xf32>
    %cst = arith.constant 3.000000e+00 : f32
    %83 = vector.broadcast %cst : f32 to vector<8x8x48xf32>
    %84 = arith.addf %82, %83 : vector<8x8x48xf32>
    %cst_21 = arith.constant 0.000000e+00 : f32
    %cst_22 = arith.constant 6.000000e+00 : f32
    %85 = vector.broadcast %cst_21 : f32 to vector<8x8x48xf32>
    %86 = arith.maximumf %85, %84 : vector<8x8x48xf32>
    %87 = vector.broadcast %cst_22 : f32 to vector<8x8x48xf32>
    %88 = arith.minimumf %87, %86 : vector<8x8x48xf32>
    %89 = arith.mulf %82, %88 : vector<8x8x48xf32>
    %cst_23 = arith.constant 0.166666672 : f32
    %90 = vector.broadcast %cst_23 : f32 to vector<8x8x48xf32>
    %91 = arith.mulf %89, %90 : vector<8x8x48xf32>
    %92 = vector.shape_cast %91 : vector<8x8x48xf32> to vector<64x48xf32>
    %cst_24 = arith.constant dense<0.000000e+00> : vector<48xf32>
    %93 = vector.multi_reduction <add>, %92, %cst_24 [0] : vector<64x48xf32> to vector<48xf32>
    %94 = vector.shape_cast %93 : vector<48xf32> to vector<1x48xf32>
    %cst_25 = arith.constant 6.400000e+01 : f32
    %95 = vector.broadcast %cst_25 : f32 to vector<1x48xf32>
    %96 = arith.divf %94, %95 : vector<1x48xf32>
    %c0_26 = arith.constant 0 : index
    %c0_27 = arith.constant 0 : index
    %97 = vector.load %arg8[%c0_26, %c0_27] : memref<48x12xf32, #tpu.memory_space<vmem>>, vector<48x12xf32>
    %cst_28 = arith.constant dense<0.000000e+00> : vector<1x12xf32>
    %98 = tpu.matmul %96, %97, %cst_28 {dimension_numbers = #tpu.dot_dimension_numbers<[1], [0], [0], [1], [0, 0, 1, 1], [], []>} : vector<1x48xf32>, vector<48x12xf32>, vector<1x12xf32> -> vector<1x12xf32>
    %c0_29 = arith.constant 0 : index
    %c0_30 = arith.constant 0 : index
    %99 = vector.load %arg9[%c0_29, %c0_30] : memref<1x12xf32, #tpu.memory_space<vmem>>, vector<1x12xf32>
    %100 = arith.addf %98, %99 : vector<1x12xf32>
    %cst_31 = arith.constant 0.000000e+00 : f32
    %101 = vector.broadcast %cst_31 : f32 to vector<1x12xf32>
    %102 = arith.maximumf %100, %101 : vector<1x12xf32>
    %c0_32 = arith.constant 0 : index
    %c0_33 = arith.constant 0 : index
    %103 = vector.load %arg10[%c0_32, %c0_33] : memref<12x48xf32, #tpu.memory_space<vmem>>, vector<12x48xf32>
    %cst_34 = arith.constant dense<0.000000e+00> : vector<1x48xf32>
    %104 = tpu.matmul %102, %103, %cst_34 {dimension_numbers = #tpu.dot_dimension_numbers<[1], [0], [0], [1], [0, 0, 1, 1], [], []>} : vector<1x12xf32>, vector<12x48xf32>, vector<1x48xf32> -> vector<1x48xf32>
    %c0_35 = arith.constant 0 : index
    %c0_36 = arith.constant 0 : index
    %105 = vector.load %arg11[%c0_35, %c0_36] : memref<1x48xf32, #tpu.memory_space<vmem>>, vector<1x48xf32>
    %106 = arith.addf %104, %105 : vector<1x48xf32>
    %cst_37 = arith.constant 3.000000e+00 : f32
    %107 = vector.broadcast %cst_37 : f32 to vector<1x48xf32>
    %108 = arith.addf %106, %107 : vector<1x48xf32>
    %cst_38 = arith.constant 0.000000e+00 : f32
    %cst_39 = arith.constant 6.000000e+00 : f32
    %109 = vector.broadcast %cst_38 : f32 to vector<1x48xf32>
    %110 = arith.maximumf %109, %108 : vector<1x48xf32>
    %111 = vector.broadcast %cst_39 : f32 to vector<1x48xf32>
    %112 = arith.minimumf %111, %110 : vector<1x48xf32>
    %cst_40 = arith.constant 0.166666672 : f32
    %113 = vector.broadcast %cst_40 : f32 to vector<1x48xf32>
    %114 = arith.mulf %112, %113 : vector<1x48xf32>
    %115 = vector.broadcast %114 : vector<1x48xf32> to vector<64x48xf32>
    %116 = arith.mulf %92, %115 : vector<64x48xf32>
    %117 = arith.truncf %116 : vector<64x48xf32> to vector<64x48xbf16>
    %c0_41 = arith.constant 0 : index
    %c0_42 = arith.constant 0 : index
    %118 = vector.load %arg12[%c0_41, %c0_42] : memref<48x24xbf16, #tpu.memory_space<vmem>>, vector<48x24xbf16>
    %cst_43 = arith.constant dense<0.000000e+00> : vector<64x24xf32>
    %119 = tpu.matmul %117, %118, %cst_43 {dimension_numbers = #tpu.dot_dimension_numbers<[1], [0], [0], [1], [0, 0, 1, 1], [], []>} : vector<64x48xbf16>, vector<48x24xbf16>, vector<64x24xf32> -> vector<64x24xf32>
    %c0_44 = arith.constant 0 : index
    %c0_45 = arith.constant 0 : index
    %120 = vector.load %arg13[%c0_44, %c0_45] : memref<1x24xf32, #tpu.memory_space<vmem>>, vector<1x24xf32>
    %121 = vector.broadcast %120 : vector<1x24xf32> to vector<64x24xf32>
    %122 = arith.mulf %119, %121 : vector<64x24xf32>
    %c0_46 = arith.constant 0 : index
    %c0_47 = arith.constant 0 : index
    %123 = vector.load %arg14[%c0_46, %c0_47] : memref<1x24xf32, #tpu.memory_space<vmem>>, vector<1x24xf32>
    %124 = vector.broadcast %123 : vector<1x24xf32> to vector<64x24xf32>
    %125 = arith.addf %122, %124 : vector<64x24xf32>
    %126 = arith.truncf %125 : vector<64x24xf32> to vector<64x24xbf16>
    %c0_48 = arith.constant 0 : index
    %c0_49 = arith.constant 0 : index
    %c0_50 = arith.constant 0 : index
    %127 = vector.load %arg15[%c0_48, %c0_49, %c0_50] : memref<1x64x24xbf16, #tpu.memory_space<vmem>>, vector<1x64x24xbf16>
    %128 = vector.shape_cast %127 : vector<1x64x24xbf16> to vector<64x24xbf16>
    %129 = vector.shape_cast %126 : vector<64x24xbf16> to vector<1x64x24xbf16>
    tpu.vector_store %arg15[%c0_48, %c0_49, %c0_50], %129 {strides = array<i32>} : memref<1x64x24xbf16, #tpu.memory_space<vmem>>, vector<1x64x24xbf16>,
    return
  }
  func.func @transform_0(%arg0: i32) -> (i32, i32, i32, i32) {
    %c0_i32 = arith.constant 0 : i32
    %c0_i32_0 = arith.constant 0 : i32
    %c0_i32_1 = arith.constant 0 : i32
    %c0_i32_2 = arith.constant 0 : i32
    return %arg0, %c0_i32, %c0_i32_0, %c0_i32_1 : i32, i32, i32, i32
  }
  func.func @transform_1(%arg0: i32) -> (i32, i32, i32, i32) {
    %c0_i32 = arith.constant 0 : i32
    %c0_i32_0 = arith.constant 0 : i32
    %c0_i32_1 = arith.constant 0 : i32
    %c0_i32_2 = arith.constant 0 : i32
    return %arg0, %c0_i32, %c0_i32_0, %c0_i32_1 : i32, i32, i32, i32
  }
  func.func @transform_2(%arg0: i32) -> (i32, i32, i32, i32) {
    %c0_i32 = arith.constant 0 : i32
    %c0_i32_0 = arith.constant 0 : i32
    %c0_i32_1 = arith.constant 0 : i32
    %c0_i32_2 = arith.constant 0 : i32
    return %arg0, %c0_i32, %c0_i32_0, %c0_i32_1 : i32, i32, i32, i32
  }
  func.func @transform_3(%arg0: i32) -> (i32, i32, i32, i32) {
    %c0_i32 = arith.constant 0 : i32
    %c0_i32_0 = arith.constant 0 : i32
    %c0_i32_1 = arith.constant 0 : i32
    %c0_i32_2 = arith.constant 0 : i32
    return %arg0, %c0_i32, %c0_i32_0, %c0_i32_1 : i32, i32, i32, i32
  }
  func.func @transform_4(%arg0: i32) -> (i32, i32) {
    %c0_i32 = arith.constant 0 : i32
    %c0_i32_0 = arith.constant 0 : i32
    %c0_i32_1 = arith.constant 0 : i32
    return %c0_i32, %c0_i32_0 : i32, i32
  }
  func.func @transform_5(%arg0: i32) -> (i32, i32) {
    %c0_i32 = arith.constant 0 : i32
    %c0_i32_0 = arith.constant 0 : i32
    %c0_i32_1 = arith.constant 0 : i32
    return %c0_i32, %c0_i32_0 : i32, i32
  }
  func.func @transform_6(%arg0: i32) -> (i32, i32) {
    %c0_i32 = arith.constant 0 : i32
    %c0_i32_0 = arith.constant 0 : i32
    %c0_i32_1 = arith.constant 0 : i32
    return %c0_i32, %c0_i32_0 : i32, i32
  }
  func.func @transform_7(%arg0: i32) -> (i32, i32) {
    %c0_i32 = arith.constant 0 : i32
    %c0_i32_0 = arith.constant 0 : i32
    %c0_i32_1 = arith.constant 0 : i32
    return %c0_i32, %c0_i32_0 : i32, i32
  }
  func.func @transform_8(%arg0: i32) -> (i32, i32) {
    %c0_i32 = arith.constant 0 : i32
    %c0_i32_0 = arith.constant 0 : i32
    %c0_i32_1 = arith.constant 0 : i32
    return %c0_i32, %c0_i32_0 : i32, i32
  }
  func.func @transform_9(%arg0: i32) -> (i32, i32) {
    %c0_i32 = arith.constant 0 : i32
    %c0_i32_0 = arith.constant 0 : i32
    %c0_i32_1 = arith.constant 0 : i32
    return %c0_i32, %c0_i32_0 : i32, i32
  }
  func.func @transform_10(%arg0: i32) -> (i32, i32) {
    %c0_i32 = arith.constant 0 : i32
    %c0_i32_0 = arith.constant 0 : i32
    %c0_i32_1 = arith.constant 0 : i32
    return %c0_i32, %c0_i32_0 : i32, i32
  }
  func.func @transform_11(%arg0: i32) -> (i32, i32) {
    %c0_i32 = arith.constant 0 : i32
    %c0_i32_0 = arith.constant 0 : i32
    %c0_i32_1 = arith.constant 0 : i32
    return %c0_i32, %c0_i32_0 : i32, i32
  }
  func.func @transform_12(%arg0: i32) -> (i32, i32) {
    %c0_i32 = arith.constant 0 : i32
    %c0_i32_0 = arith.constant 0 : i32
    %c0_i32_1 = arith.constant 0 : i32
    return %c0_i32, %c0_i32_0 : i32, i32
  }
  func.func @transform_13(%arg0: i32) -> (i32, i32) {
    %c0_i32 = arith.constant 0 : i32
    %c0_i32_0 = arith.constant 0 : i32
    %c0_i32_1 = arith.constant 0 : i32
    return %c0_i32, %c0_i32_0 : i32, i32
  }
  func.func @transform_14(%arg0: i32) -> (i32, i32, i32) {
    %c0_i32 = arith.constant 0 : i32
    %c0_i32_0 = arith.constant 0 : i32
    %c0_i32_1 = arith.constant 0 : i32
    return %arg0, %c0_i32, %c0_i32_0 : i32, i32, i32
  }
}

module attributes {stable_mosaic.version = 11 : i64} {
  func.func @_head_kernel(%arg0: memref<2x64x24xbf16, #tpu.memory_space<vmem>>, %arg1: memref<24x64xbf16, #tpu.memory_space<vmem>>, %arg2: memref<1x64xf32, #tpu.memory_space<vmem>>, %arg3: memref<64x10xbf16, #tpu.memory_space<vmem>>, %arg4: memref<1x10xf32, #tpu.memory_space<vmem>>, %arg5: memref<2x10xf32, #tpu.memory_space<vmem>>) attributes {dimension_semantics = [], scalar_prefetch = 0 : i64, scratch_operands = 0 : i64, tpu.core_type = #tpu.core_type<tc>} {
    %c0 = arith.constant 0 : index
    %c0_0 = arith.constant 0 : index
    %c0_1 = arith.constant 0 : index
    %0 = vector.load %arg0[%c0, %c0_0, %c0_1] : memref<2x64x24xbf16, #tpu.memory_space<vmem>>, vector<2x64x24xbf16>
    %1 = arith.extf %0 : vector<2x64x24xbf16> to vector<2x64x24xf32>
    %cst = arith.constant dense<0.000000e+00> : vector<2x24xf32>
    %2 = vector.multi_reduction <add>, %1, %cst [1] : vector<2x64x24xf32> to vector<2x24xf32>
    %cst_2 = arith.constant 6.400000e+01 : f32
    %3 = vector.broadcast %cst_2 : f32 to vector<2x24xf32>
    %4 = arith.divf %2, %3 : vector<2x24xf32>
    %5 = arith.truncf %4 : vector<2x24xf32> to vector<2x24xbf16>
    %c0_3 = arith.constant 0 : index
    %c0_4 = arith.constant 0 : index
    %6 = vector.load %arg1[%c0_3, %c0_4] : memref<24x64xbf16, #tpu.memory_space<vmem>>, vector<24x64xbf16>
    %cst_5 = arith.constant dense<0.000000e+00> : vector<2x64xf32>
    %7 = tpu.matmul %5, %6, %cst_5 {dimension_numbers = #tpu.dot_dimension_numbers<[1], [0], [0], [1], [0, 0, 1, 1], [], []>} : vector<2x24xbf16>, vector<24x64xbf16>, vector<2x64xf32> -> vector<2x64xf32>
    %c0_6 = arith.constant 0 : index
    %c0_7 = arith.constant 0 : index
    %8 = vector.load %arg2[%c0_6, %c0_7] : memref<1x64xf32, #tpu.memory_space<vmem>>, vector<1x64xf32>
    %9 = vector.broadcast %8 : vector<1x64xf32> to vector<2x64xf32>
    %10 = arith.addf %7, %9 : vector<2x64xf32>
    %cst_8 = arith.constant 3.000000e+00 : f32
    %11 = vector.broadcast %cst_8 : f32 to vector<2x64xf32>
    %12 = arith.addf %10, %11 : vector<2x64xf32>
    %cst_9 = arith.constant 0.000000e+00 : f32
    %cst_10 = arith.constant 6.000000e+00 : f32
    %13 = vector.broadcast %cst_9 : f32 to vector<2x64xf32>
    %14 = arith.maximumf %13, %12 : vector<2x64xf32>
    %15 = vector.broadcast %cst_10 : f32 to vector<2x64xf32>
    %16 = arith.minimumf %15, %14 : vector<2x64xf32>
    %17 = arith.mulf %10, %16 : vector<2x64xf32>
    %cst_11 = arith.constant 0.166666672 : f32
    %18 = vector.broadcast %cst_11 : f32 to vector<2x64xf32>
    %19 = arith.mulf %17, %18 : vector<2x64xf32>
    %20 = arith.truncf %19 : vector<2x64xf32> to vector<2x64xbf16>
    %c0_12 = arith.constant 0 : index
    %c0_13 = arith.constant 0 : index
    %21 = vector.load %arg3[%c0_12, %c0_13] : memref<64x10xbf16, #tpu.memory_space<vmem>>, vector<64x10xbf16>
    %cst_14 = arith.constant dense<0.000000e+00> : vector<2x10xf32>
    %22 = tpu.matmul %20, %21, %cst_14 {dimension_numbers = #tpu.dot_dimension_numbers<[1], [0], [0], [1], [0, 0, 1, 1], [], []>} : vector<2x64xbf16>, vector<64x10xbf16>, vector<2x10xf32> -> vector<2x10xf32>
    %c0_15 = arith.constant 0 : index
    %c0_16 = arith.constant 0 : index
    %23 = vector.load %arg4[%c0_15, %c0_16] : memref<1x10xf32, #tpu.memory_space<vmem>>, vector<1x10xf32>
    %24 = vector.broadcast %23 : vector<1x10xf32> to vector<2x10xf32>
    %25 = arith.addf %22, %24 : vector<2x10xf32>
    %c0_17 = arith.constant 0 : index
    %c0_18 = arith.constant 0 : index
    %26 = vector.load %arg5[%c0_17, %c0_18] : memref<2x10xf32, #tpu.memory_space<vmem>>, vector<2x10xf32>
    tpu.vector_store %arg5[%c0_17, %c0_18], %25 {strides = array<i32>} : memref<2x10xf32, #tpu.memory_space<vmem>>, vector<2x10xf32>,
    return
  }
}

</mosaic_0001>

<llo_original>
// kernel: mobilenetv3_forward.5
$region0: #{mobilenetv3_forward.5}
  #allocation0 [shape = 'u32[]', space=smem, size = 0x4, offset = 0x4, fixed_abs, tag = 'smem constant byte address 0x4 - core index']
  #allocation1 [shape = 'u32[144,128]{1,0:T(1,128)}', space=vmem, size = 0x12000, scoped, tag = 'internal scratch']
  %s0 = inlined_call_operand.vmem [shape: bf16[512,32], index: 0, kind: input, shape index: {}]
  %s1 = inlined_call_operand.vmem [shape: bf16[32,16], index: 1, kind: input, shape index: {}]
  %s2 = inlined_call_operand.vmem [shape: f32[1,16], index: 2, kind: input, shape index: {}]
  %s3 = inlined_call_operand.vmem [shape: f32[1,16], index: 3, kind: input, shape index: {}]
  %s4 = inlined_call_operand.vmem [shape: bf16[512,16], index: 4, kind: output, shape index: {}]
  %s5 = sld [smem:[#allocation0]]
  $region49: #{mobilenetv3_forward.5} parent=0
    _
  %s7 = ssub.s32 1, %s5
  %s8 = scalar_select 0, %s7, %s5
  loop: start=0, step=1, limit=4
  $region2: #{mobilenetv3_forward.5} parent=0 // loop_pre_header
    _
  $region3: #{mobilenetv3_forward.5} parent=0 // loop_header
    %s10 = sphi 0, %s14
    %p11 = scmp.ge.s32.totalorder %s10, 4
    %s20 = sphi 0, %s22
    %s23 = sphi 0, %s20
    %s24 = sphi 0, %s23
    %s40 = sphi 0, %s24
    %s44 = sphi 0, %s44
    %s46 = sphi 0, %s44
    %s47 = sphi 0, %s46
    %s61 = sphi 0, %s47
    %s65 = sphi 0, %s65
    %s67 = sphi 0, %s65
    %s68 = sphi 0, %s67
    %s82 = sphi 0, %s68
    %s86 = sphi 0, %s86
    %s88 = sphi 0, %s86
    %s89 = sphi 0, %s88
    %s103 = sphi 0, %s89
    %s109 = sphi 0, %s111
    %s112 = sphi 0, %s109
    %s113 = sphi 0, %s112
    %s129 = sphi 0, %s113
  $region4: #{mobilenetv3_forward.5} parent=0 // loop_header_branch
    %13 = sbr.rel (%p11) target = $region8
  $region5: #{mobilenetv3_forward.5} parent=0 // loop_body
    %s15 = ssub.s32 %s10, 1
    %s16 = ssub.s32 %s10, 2
    %s17 = sadd.s32 %s10, 1
    %s18 = ssub.s32 %s10, %s17
    %p19 = scmp.eq.s32.totalorder %s18, 0
    %s21 = sadd.s32 %s20, 1
    %s22 = scalar_select %p19, %s20, %s21
    %p25 = pneg %p19
    %p26 = scmp.eq.s32.totalorder %s10, 1
    %p27 = por %p25, %p26
    %p28 = scmp.ne.s32.totalorder %s20, %s23
    %p29 = scmp.eq.s32.totalorder %s10, 0
    %p30 = por %p28, %p29
    %p31 = scmp.ne.s32.totalorder %s20, %s23
    %p32 = scmp.eq.s32.totalorder %s15, 1
    %p33 = por %p31, %p32
    %p34 = scmp.ne.s32.totalorder %s23, %s24
    %p35 = scmp.eq.s32.totalorder %s15, 0
    %p36 = por %p34, %p35
    %p37 = scmp.ne.s32.totalorder %s23, %s24
    %p38 = scmp.eq.s32.totalorder %s16, 1
    %p39 = por %p37, %p38
    %p41 = scmp.ne.s32.totalorder %s24, %s40
    %p42 = scmp.eq.s32.totalorder %s16, 0
    %p43 = por %p41, %p42
    %s45 = sadd.s32 %s44, 1
    %p48 = scmp.eq.s32.totalorder %s10, 1
    %p49 = scmp.ne.s32.totalorder %s44, %s46
    %p50 = scmp.eq.s32.totalorder %s10, 0
    %p51 = por %p49, %p50
    %p52 = scmp.ne.s32.totalorder %s44, %s46
    %p53 = scmp.eq.s32.totalorder %s15, 1
    %p54 = por %p52, %p53
    %p55 = scmp.ne.s32.totalorder %s46, %s47
    %p56 = scmp.eq.s32.totalorder %s15, 0
    %p57 = por %p55, %p56
    %p58 = scmp.ne.s32.totalorder %s46, %s47
    %p59 = scmp.eq.s32.totalorder %s16, 1
    %p60 = por %p58, %p59
    %p62 = scmp.ne.s32.totalorder %s47, %s61
    %p63 = scmp.eq.s32.totalorder %s16, 0
    %p64 = por %p62, %p63
    %s66 = sadd.s32 %s65, 1
    %p69 = scmp.eq.s32.totalorder %s10, 1
    %p70 = scmp.ne.s32.totalorder %s65, %s67
    %p71 = scmp.eq.s32.totalorder %s10, 0
    %p72 = por %p70, %p71
    %p73 = scmp.ne.s32.totalorder %s65, %s67
    %p74 = scmp.eq.s32.totalorder %s15, 1
    %p75 = por %p73, %p74
    %p76 = scmp.ne.s32.totalorder %s67, %s68
    %p77 = scmp.eq.s32.totalorder %s15, 0
    %p78 = por %p76, %p77
    %p79 = scmp.ne.s32.totalorder %s67, %s68
    %p80 = scmp.eq.s32.totalorder %s16, 1
    %p81 = por %p79, %p80
    %p83 = scmp.ne.s32.totalorder %s68, %s82
    %p84 = scmp.eq.s32.totalorder %s16, 0
    %p85 = por %p83, %p84
    %s87 = sadd.s32 %s86, 1
    %p90 = scmp.eq.s32.totalorder %s10, 1
    %p91 = scmp.ne.s32.totalorder %s86, %s88
    %p92 = scmp.eq.s32.totalorder %s10, 0
    %p93 = por %p91, %p92
    %p94 = scmp.ne.s32.totalorder %s86, %s88
    %p95 = scmp.eq.s32.totalorder %s15, 1
    %p96 = por %p94, %p95
    %p97 = scmp.ne.s32.totalorder %s88, %s89
    %p98 = scmp.eq.s32.totalorder %s15, 0
    %p99 = por %p97, %p98
    %p100 = scmp.ne.s32.totalorder %s88, %s89
    %p101 = scmp.eq.s32.totalorder %s16, 1
    %p102 = por %p100, %p101
    %p104 = scmp.ne.s32.totalorder %s89, %s103
    %p105 = scmp.eq.s32.totalorder %s16, 0
    %p106 = por %p104, %p105
    %s107 = ssub.s32 %s10, %s17
    %p108 = scmp.eq.s32.totalorder %s107, 0
    %s110 = sadd.s32 %s109, 1
    %s111 = scalar_select %p108, %s109, %s110
    %p114 = pneg %p108
    %p115 = scmp.eq.s32.totalorder %s10, 1
    %p116 = por %p114, %p115
    %p117 = scmp.ne.s32.totalorder %s109, %s112
    %p118 = scmp.eq.s32.totalorder %s10, 0
    %p119 = por %p117, %p118
    %p120 = scmp.ne.s32.totalorder %s109, %s112
    %p121 = scmp.eq.s32.totalorder %s15, 1
    %p122 = por %p120, %p121
    %p123 = scmp.ne.s32.totalorder %s112, %s113
    %p124 = scmp.eq.s32.totalorder %s15, 0
    %p125 = por %p123, %p124
    %p126 = scmp.ne.s32.totalorder %s112, %s113
    %p127 = scmp.eq.s32.totalorder %s16, 1
    %p128 = por %p126, %p127
    %p130 = scmp.ne.s32.totalorder %s113, %s129
    %p131 = scmp.eq.s32.totalorder %s16, 0
    %p132 = por %p130, %p131
    %p133 = scmp.le.s32.totalorder 1, %s10
    %p134 = scmp.lt.s32.totalorder %s10, 3
    %p135 = pnand %p133, %p134
    %p136 = pneg %p135
    // Predicated region
    $region9: #{mobilenetv3_forward.5} parent=5 // pred_check
      _
    $region10: #{mobilenetv3_forward.5} parent=5 // pred_check_branch
      %138 = sbr.rel (%p135) target = $region12
    $region11: #{mobilenetv3_forward.5} parent=5 // pred_region
      %s139 = ssub.s32 %s10, 1
      // Predicated region
      $region13: #{mobilenetv3_forward.5} parent=11 // pred_check
        %p140 = pneg %p57
      $region14: #{mobilenetv3_forward.5} parent=11 // pred_check_branch
        %142 = sbr.rel (%p140) target = $region16
      $region15: #{mobilenetv3_forward.5} parent=11 // pred_region
        _
      $region16: #{mobilenetv3_forward.5} parent=11 // pred_fallthru
        _
      // Predicated region
      $region17: #{mobilenetv3_forward.5} parent=11 // pred_check
        %p143 = pneg %p78
      $region18: #{mobilenetv3_forward.5} parent=11 // pred_check_branch
        %145 = sbr.rel (%p143) target = $region20
      $region19: #{mobilenetv3_forward.5} parent=11 // pred_region
        _
      $region20: #{mobilenetv3_forward.5} parent=11 // pred_fallthru
        _
      // Predicated region
      $region21: #{mobilenetv3_forward.5} parent=11 // pred_check
        %p146 = pneg %p99
      $region22: #{mobilenetv3_forward.5} parent=11 // pred_check_branch
        %148 = sbr.rel (%p146) target = $region24
      $region23: #{mobilenetv3_forward.5} parent=11 // pred_region
        _
      $region24: #{mobilenetv3_forward.5} parent=11 // pred_fallthru
        _
    $region12: #{mobilenetv3_forward.5} parent=5 // pred_fallthru
      _
    %p149 = scmp.lt.s32.totalorder %s10, 2
    // Predicated region
    $region25: #{mobilenetv3_forward.5} parent=5 // pred_check
      %p150 = pneg %p149
    $region26: #{mobilenetv3_forward.5} parent=5 // pred_check_branch
      %152 = sbr.rel (%p150) target = $region28
    $region27: #{mobilenetv3_forward.5} parent=5 // pred_region
      // Predicated region
      $region29: #{mobilenetv3_forward.5} parent=27 // pred_check
        %p153 = pneg %p30
      $region30: #{mobilenetv3_forward.5} parent=27 // pred_check_branch
        %155 = sbr.rel (%p153) target = $region32
      $region31: #{mobilenetv3_forward.5} parent=27 // pred_region
        %s156 = smul.u32 32, %s10
        %p157 = scmp.lt.s32.totalorder %s156, 63
        %s158 = scalar_select %p157, %s156, 63
        %s159 = smul.addr %s158, 4
        %s160 = scalar_lea.vmem %s0, %s159
        %s161 = smul.u32 32, %s10
      $region32: #{mobilenetv3_forward.5} parent=27 // pred_fallthru
        _
    $region28: #{mobilenetv3_forward.5} parent=5 // pred_fallthru
      _
    %p162 = scmp.le.s32.totalorder 1, %s10
    %p163 = scmp.lt.s32.totalorder %s10, 3
    %p164 = pnand %p162, %p163
    %p165 = pneg %p164
    // Predicated region
    $region33: #{mobilenetv3_forward.5} parent=5 // pred_check
      _
    $region34: #{mobilenetv3_forward.5} parent=5 // pred_check_branch
      %167 = sbr.rel (%p164) target = $region36
    $region35: #{mobilenetv3_forward.5} parent=5 // pred_region
      %s168 = ssub.s32 %s10, 1
      %s169 = smul.u32 32, %s15
      %p170 = scmp.lt.s32.totalorder %s169, 63
      %s171 = scalar_select %p170, %s169, 63
      %s172 = smul.addr %s171, 4
      %s173 = scalar_lea.vmem %s0, %s172
      %p174 = pneg %p36
      %p175 = pneg %p33
      %p176 = pneg %p57
      %p177 = pneg %p54
      %p178 = pneg %p78
      %p179 = pneg %p75
      %p180 = pneg %p99
      %p181 = pneg %p96
      %p182 = pneg %p125
      %p183 = pneg %p122
      %s184 = smul.u32 32, %s15
      %p185 = scmp.lt.s32.totalorder %s184, 63
      %s186 = scalar_select %p185, %s184, 63
      %s187 = smul.addr %s186, 4
      %s188 = scalar_lea.vmem %s4, %s187
      %s189 = smul.u32 32, %s15
      %p190 = scmp.lt.s32.totalorder %s189, 63
      %s191 = scalar_select %p190, %s189, 63
      %s192 = smul.addr %s191, 4
      %s193 = scalar_lea.vmem %s0, %s192
      %s194 = smul.u32 32, %s15
      %s195 = smul.u32 32, %s15
      %p196 = scmp.lt.s32.totalorder %s195, 63
      %s197 = scalar_select %p196, %s195, 63
      %s198 = smul.addr %s197, 4
      %s199 = scalar_lea.vmem %s4, %s198
      %s200 = smul.u32 32, %s15
      %v202 = vld [vmem:[%s193] sm:$0xf]
      %v203 = vld [vmem:[%s193 + $0x4] sm:$0xf]
      %v204 = vld [vmem:[%s193 + $0x8] sm:$0xf]
      %v205 = vld [vmem:[%s193 + $0xc] sm:$0xf]
      %v206 = vld [vmem:[%s193 + $0x10] sm:$0xf]
      %v207 = vld [vmem:[%s193 + $0x14] sm:$0xf]
      %v208 = vld [vmem:[%s193 + $0x18] sm:$0xf]
      %v209 = vld [vmem:[%s193 + $0x1c] sm:$0xf]
      %v210 = vld [vmem:[%s193 + $0x20] sm:$0xf]
      %v211 = vld [vmem:[%s193 + $0x24] sm:$0xf]
      %v212 = vld [vmem:[%s193 + $0x28] sm:$0xf]
      %v213 = vld [vmem:[%s193 + $0x2c] sm:$0xf]
      %v214 = vld [vmem:[%s193 + $0x30] sm:$0xf]
      %v215 = vld [vmem:[%s193 + $0x34] sm:$0xf]
      %v216 = vld [vmem:[%s193 + $0x38] sm:$0xf]
      %v217 = vld [vmem:[%s193 + $0x3c] sm:$0xf]
      %v218 = vld [vmem:[%s193 + $0x40] sm:$0xf]
      %v219 = vld [vmem:[%s193 + $0x44] sm:$0xf]
      %v220 = vld [vmem:[%s193 + $0x48] sm:$0xf]
      %v221 = vld [vmem:[%s193 + $0x4c] sm:$0xf]
      %v222 = vld [vmem:[%s193 + $0x50] sm:$0xf]
      %v223 = vld [vmem:[%s193 + $0x54] sm:$0xf]
      %v224 = vld [vmem:[%s193 + $0x58] sm:$0xf]
      %v225 = vld [vmem:[%s193 + $0x5c] sm:$0xf]
      %v226 = vld [vmem:[%s193 + $0x60] sm:$0xf]
      %v227 = vld [vmem:[%s193 + $0x64] sm:$0xf]
      %v228 = vld [vmem:[%s193 + $0x68] sm:$0xf]
      %v229 = vld [vmem:[%s193 + $0x6c] sm:$0xf]
      %v230 = vld [vmem:[%s193 + $0x70] sm:$0xf]
      %v231 = vld [vmem:[%s193 + $0x74] sm:$0xf]
      %v232 = vld [vmem:[%s193 + $0x78] sm:$0xf]
      %v233 = vld [vmem:[%s193 + $0x7c] sm:$0xf]
      %v234 = vld [vmem:[%s1] sm:$0xf]
      %v235 = vld [vmem:[%s1 + $0x4] sm:$0xf]
      %v236 = vld [vmem:[%s1 + $0x8] sm:$0xf]
      %v237 = vld [vmem:[%s1 + $0xc] sm:$0xf]
      %v270 = vunpack.c.l.b16 %v202
      %v271 = vunpack.c.l.b16 %v203
      %v272 = vunpack.c.l.b16 %v204
      %v273 = vunpack.c.l.b16 %v205
      %v274 = vunpack.c.l.b16 %v206
      %v275 = vunpack.c.l.b16 %v207
      %v276 = vunpack.c.l.b16 %v208
      %v277 = vunpack.c.l.b16 %v209
      %v278 = vunpack.c.l.b16 %v210
      %v279 = vunpack.c.l.b16 %v211
      %v280 = vunpack.c.l.b16 %v212
      %v281 = vunpack.c.l.b16 %v213
      %v282 = vunpack.c.l.b16 %v214
      %v283 = vunpack.c.l.b16 %v215
      %v284 = vunpack.c.l.b16 %v216
      %v285 = vunpack.c.l.b16 %v217
      %v286 = vunpack.c.l.b16 %v218
      %v287 = vunpack.c.l.b16 %v219
      %v288 = vunpack.c.l.b16 %v220
      %v289 = vunpack.c.l.b16 %v221
      %v290 = vunpack.c.l.b16 %v222
      %v291 = vunpack.c.l.b16 %v223
      %v292 = vunpack.c.l.b16 %v224
      %v293 = vunpack.c.l.b16 %v225
      %v294 = vunpack.c.l.b16 %v226
      %v295 = vunpack.c.l.b16 %v227
      %v296 = vunpack.c.l.b16 %v228
      %v297 = vunpack.c.l.b16 %v229
      %v298 = vunpack.c.l.b16 %v230
      %v299 = vunpack.c.l.b16 %v231
      %v300 = vunpack.c.l.b16 %v232
      %v301 = vunpack.c.l.b16 %v233
      %v302 = vpack.c.b16 %v271, %v270
      %v303 = vpack.c.b16 %v273, %v272
      %v304 = vpack.c.b16 %v275, %v274
      %v305 = vpack.c.b16 %v277, %v276
      %v306 = vpack.c.b16 %v279, %v278
      %v307 = vpack.c.b16 %v281, %v280
      %v308 = vpack.c.b16 %v283, %v282
      %v309 = vpack.c.b16 %v285, %v284
      %v310 = vpack.c.b16 %v287, %v286
      %v311 = vpack.c.b16 %v289, %v288
      %v312 = vpack.c.b16 %v291, %v290
      %v313 = vpack.c.b16 %v293, %v292
      %v314 = vpack.c.b16 %v295, %v294
      %v315 = vpack.c.b16 %v297, %v296
      %v316 = vpack.c.b16 %v299, %v298
      %v317 = vpack.c.b16 %v301, %v300
      %v322 = vunpack.c.l.b16 %v234
      %v323 = vunpack.c.l.b16 %v235
      %v324 = vunpack.c.l.b16 %v236
      %v325 = vunpack.c.l.b16 %v237
      %v326 = vpack.c.b16 %v323, %v322
      %v327 = vpack.c.b16 %v325, %v324
      %vm330 = vcmask 261120
      %v332 = vsel %vm330, %v302, 0
      %v335 = vsel %vm330, %v303, 0
      %v338 = vsel %vm330, %v304, 0
      %v341 = vsel %vm330, %v305, 0
      %v344 = vsel %vm330, %v306, 0
      %v347 = vsel %vm330, %v307, 0
      %v350 = vsel %vm330, %v308, 0
      %v353 = vsel %vm330, %v309, 0
      %v356 = vsel %vm330, %v310, 0
      %v359 = vsel %vm330, %v311, 0
      %v362 = vsel %vm330, %v312, 0
      %v365 = vsel %vm330, %v313, 0
      %v368 = vsel %vm330, %v314, 0
      %v371 = vsel %vm330, %v315, 0
      %v374 = vsel %vm330, %v316, 0
      %v377 = vsel %vm330, %v317, 0
      %379 = vmatprep.subr.bf16.mxu0 0
      %380 = vmatpush1.bf16.msra.mxu0 0
      %381 = vmatprep.subr.bf16.mxu0 0
      %382 = vmatpush1.bf16.msra.mxu0 0
      %383 = vmatprep.subr.bf16.mxu0 0
      %384 = vmatpush1.bf16.msra.mxu0 0
      %385 = vmatprep.subr.bf16.mxu0 0
      %386 = vmatpush1.bf16.msra.mxu0 0
      %387 = vmatprep.subr.bf16.mxu0 0
      %388 = vmatpush1.bf16.msra.mxu0 0
      %389 = vmatprep.subr.bf16.mxu0 0
      %390 = vmatpush1.bf16.msra.mxu0 0
      %391 = vmatprep.subr.bf16.mxu0 0
      %392 = vmatpush1.bf16.msra.mxu0 %v327
      %393 = vmatprep.subr.bf16.mxu0 0
      %394 = vmatpush1.bf16.msra.mxu0 %v326
      %395 = vmatprep.subr.bf16.mxu0 0
      %396 = vmatpush2.bf16.msra.mxu0 0
      %397 = vmatprep.subr.bf16.mxu0 0
      %398 = vmatpush2.bf16.msra.mxu0 0
      %399 = vmatprep.subr.bf16.mxu0 0
      %400 = vmatpush2.bf16.msra.mxu0 0
      %401 = vmatprep.subr.bf16.mxu0 0
      %402 = vmatpush2.bf16.msra.mxu0 0
      %403 = vmatprep.subr.bf16.mxu0 0
      %404 = vmatpush2.bf16.msra.mxu0 0
      %405 = vmatprep.subr.bf16.mxu0 0
      %406 = vmatpush2.bf16.msra.mxu0 0
      %407 = vmatprep.subr.bf16.mxu0 0
      %408 = vmatpush2.bf16.msra.mxu0 0
      %409 = vmatprep.subr.bf16.mxu0 0
      %410 = vmatpush2.bf16.msra.mxu0 0
      %411 = vmatprep.mubr.bf16.mxu0 0
      %412 = vmatmul.mubr.bf16.gmra.mxu0 %v332
      %v413 = vpop.f32.mrf.mxu0
      %v414 = vadd.f32 0.0, %v413
      %v415 = vpop.f32.mrf.mxu0
      %v416 = vpop.f32.mrf.mxu0
      %v417 = vadd.f32 0.0, %v416
      %v418 = vpop.f32.mrf.mxu0
      %419 = vmatprep.mubr.bf16.mxu0 0
      %420 = vmatmul.mubr.bf16.gmra.mxu0 %v335
      %v421 = vpop.f32.mrf.mxu0
      %v422 = vadd.f32 0.0, %v421
      %v423 = vpop.f32.mrf.mxu0
      %v424 = vpop.f32.mrf.mxu0
      %v425 = vadd.f32 0.0, %v424
      %v426 = vpop.f32.mrf.mxu0
      %427 = vmatprep.mubr.bf16.mxu0 0
      %428 = vmatmul.mubr.bf16.gmra.mxu0 %v338
      %v429 = vpop.f32.mrf.mxu0
      %v430 = vadd.f32 0.0, %v429
      %v431 = vpop.f32.mrf.mxu0
      %v432 = vpop.f32.mrf.mxu0
      %v433 = vadd.f32 0.0, %v432
      %v434 = vpop.f32.mrf.mxu0
      %435 = vmatprep.mubr.bf16.mxu0 0
      %436 = vmatmul.mubr.bf16.gmra.mxu0 %v341
      %v437 = vpop.f32.mrf.mxu0
      %v438 = vadd.f32 0.0, %v437
      %v439 = vpop.f32.mrf.mxu0
      %v440 = vpop.f32.mrf.mxu0
      %v441 = vadd.f32 0.0, %v440
      %v442 = vpop.f32.mrf.mxu0
      %443 = vmatprep.mubr.bf16.mxu0 0
      %444 = vmatmul.mubr.bf16.gmra.mxu0 %v344
      %v445 = vpop.f32.mrf.mxu0
      %v446 = vadd.f32 0.0, %v445
      %v447 = vpop.f32.mrf.mxu0
      %v448 = vpop.f32.mrf.mxu0
      %v449 = vadd.f32 0.0, %v448
      %v450 = vpop.f32.mrf.mxu0
      %451 = vmatprep.mubr.bf16.mxu0 0
      %452 = vmatmul.mubr.bf16.gmra.mxu0 %v347
      %v453 = vpop.f32.mrf.mxu0
      %v454 = vadd.f32 0.0, %v453
      %v455 = vpop.f32.mrf.mxu0
      %v456 = vpop.f32.mrf.mxu0
      %v457 = vadd.f32 0.0, %v456
      %v458 = vpop.f32.mrf.mxu0
      %459 = vmatprep.mubr.bf16.mxu0 0
      %460 = vmatmul.mubr.bf16.gmra.mxu0 %v350
      %v461 = vpop.f32.mrf.mxu0
      %v462 = vadd.f32 0.0, %v461
      %v463 = vpop.f32.mrf.mxu0
      %v464 = vpop.f32.mrf.mxu0
      %v465 = vadd.f32 0.0, %v464
      %v466 = vpop.f32.mrf.mxu0
      %467 = vmatprep.mubr.bf16.mxu0 0
      %468 = vmatmul.mubr.bf16.gmra.mxu0 %v353
      %v469 = vpop.f32.mrf.mxu0
      %v470 = vadd.f32 0.0, %v469
      %v471 = vpop.f32.mrf.mxu0
      %v472 = vpop.f32.mrf.mxu0
      %v473 = vadd.f32 0.0, %v472
      %v474 = vpop.f32.mrf.mxu0
      %475 = vmatprep.mubr.bf16.mxu0 0
      %476 = vmatmul.mubr.bf16.gmra.mxu0 %v356
      %v477 = vpop.f32.mrf.mxu0
      %v478 = vadd.f32 0.0, %v477
      %v479 = vpop.f32.mrf.mxu0
      %v480 = vpop.f32.mrf.mxu0
      %v481 = vadd.f32 0.0, %v480
      %v482 = vpop.f32.mrf.mxu0
      %483 = vmatprep.mubr.bf16.mxu0 0
      %484 = vmatmul.mubr.bf16.gmra.mxu0 %v359
      %v485 = vpop.f32.mrf.mxu0
      %v486 = vadd.f32 0.0, %v485
      %v487 = vpop.f32.mrf.mxu0
      %v488 = vpop.f32.mrf.mxu0
      %v489 = vadd.f32 0.0, %v488
      %v490 = vpop.f32.mrf.mxu0
      %491 = vmatprep.mubr.bf16.mxu0 0
      %492 = vmatmul.mubr.bf16.gmra.mxu0 %v362
      %v493 = vpop.f32.mrf.mxu0
      %v494 = vadd.f32 0.0, %v493
      %v495 = vpop.f32.mrf.mxu0
      %v496 = vpop.f32.mrf.mxu0
      %v497 = vadd.f32 0.0, %v496
      %v498 = vpop.f32.mrf.mxu0
      %499 = vmatprep.mubr.bf16.mxu0 0
      %500 = vmatmul.mubr.bf16.gmra.mxu0 %v365
      %v501 = vpop.f32.mrf.mxu0
      %v502 = vadd.f32 0.0, %v501
      %v503 = vpop.f32.mrf.mxu0
      %v504 = vpop.f32.mrf.mxu0
      %v505 = vadd.f32 0.0, %v504
      %v506 = vpop.f32.mrf.mxu0
      %507 = vmatprep.mubr.bf16.mxu0 0
      %508 = vmatmul.mubr.bf16.gmra.mxu0 %v368
      %v509 = vpop.f32.mrf.mxu0
      %v510 = vadd.f32 0.0, %v509
      %v511 = vpop.f32.mrf.mxu0
      %v512 = vpop.f32.mrf.mxu0
      %v513 = vadd.f32 0.0, %v512
      %v514 = vpop.f32.mrf.mxu0
      %515 = vmatprep.mubr.bf16.mxu0 0
      %516 = vmatmul.mubr.bf16.gmra.mxu0 %v371
      %v517 = vpop.f32.mrf.mxu0
      %v518 = vadd.f32 0.0, %v517
      %v519 = vpop.f32.mrf.mxu0
      %v520 = vpop.f32.mrf.mxu0
      %v521 = vadd.f32 0.0, %v520
      %v522 = vpop.f32.mrf.mxu0
      %523 = vmatprep.mubr.bf16.mxu0 0
      %524 = vmatmul.mubr.bf16.gmra.mxu0 %v374
      %v525 = vpop.f32.mrf.mxu0
      %v526 = vadd.f32 0.0, %v525
      %v527 = vpop.f32.mrf.mxu0
      %v528 = vpop.f32.mrf.mxu0
      %v529 = vadd.f32 0.0, %v528
      %v530 = vpop.f32.mrf.mxu0
      %531 = vmatprep.mubr.bf16.mxu0 0
      %532 = vmatmul.mubr.bf16.gmra.mxu0 %v377
      %v533 = vpop.f32.mrf.mxu0
      %v534 = vadd.f32 0.0, %v533
      %v535 = vpop.f32.mrf.mxu0
      %v536 = vpop.f32.mrf.mxu0
      %v537 = vadd.f32 0.0, %v536
      %v538 = vpop.f32.mrf.mxu0
      %539 = vdwg.mxu0
      %v540 = vld [vmem:[%s2] sm:$0x1]
      %v542 = vlaneseq
      %v543 = vshrl.u32 %v542, 7
      %v544 = vsub.s32 0, %v543
      %v545 = vrot.slane %v540, %v544
      %v547 = vmul.f32 %v414, %v545
      %v548 = vmul.f32 %v417, %v545
      %v549 = vmul.f32 %v422, %v545
      %v550 = vmul.f32 %v425, %v545
      %v551 = vmul.f32 %v430, %v545
      %v552 = vmul.f32 %v433, %v545
      %v553 = vmul.f32 %v438, %v545
      %v554 = vmul.f32 %v441, %v545
      %v555 = vmul.f32 %v446, %v545
      %v556 = vmul.f32 %v449, %v545
      %v557 = vmul.f32 %v454, %v545
      %v558 = vmul.f32 %v457, %v545
      %v559 = vmul.f32 %v462, %v545
      %v560 = vmul.f32 %v465, %v545
      %v561 = vmul.f32 %v470, %v545
      %v562 = vmul.f32 %v473, %v545
      %v563 = vmul.f32 %v478, %v545
      %v564 = vmul.f32 %v481, %v545
      %v565 = vmul.f32 %v486, %v545
      %v566 = vmul.f32 %v489, %v545
      %v567 = vmul.f32 %v494, %v545
      %v568 = vmul.f32 %v497, %v545
      %v569 = vmul.f32 %v502, %v545
      %v570 = vmul.f32 %v505, %v545
      %v571 = vmul.f32 %v510, %v545
      %v572 = vmul.f32 %v513, %v545
      %v573 = vmul.f32 %v518, %v545
      %v574 = vmul.f32 %v521, %v545
      %v575 = vmul.f32 %v526, %v545
      %v576 = vmul.f32 %v529, %v545
      %v577 = vmul.f32 %v534, %v545
      %v578 = vmul.f32 %v537, %v545
      %v579 = vld [vmem:[%s3] sm:$0x1]
      %v581 = vlaneseq
      %v582 = vshrl.u32 %v581, 7
      %v583 = vsub.s32 0, %v582
      %v584 = vrot.slane %v579, %v583
      %v586 = vadd.f32 %v547, %v584
      %v587 = vadd.f32 %v548, %v584
      %v588 = vadd.f32 %v549, %v584
      %v589 = vadd.f32 %v550, %v584
      %v590 = vadd.f32 %v551, %v584
      %v591 = vadd.f32 %v552, %v584
      %v592 = vadd.f32 %v553, %v584
      %v593 = vadd.f32 %v554, %v584
      %v594 = vadd.f32 %v555, %v584
      %v595 = vadd.f32 %v556, %v584
      %v596 = vadd.f32 %v557, %v584
      %v597 = vadd.f32 %v558, %v584
      %v598 = vadd.f32 %v559, %v584
      %v599 = vadd.f32 %v560, %v584
      %v600 = vadd.f32 %v561, %v584
      %v601 = vadd.f32 %v562, %v584
      %v602 = vadd.f32 %v563, %v584
      %v603 = vadd.f32 %v564, %v584
      %v604 = vadd.f32 %v565, %v584
      %v605 = vadd.f32 %v566, %v584
      %v606 = vadd.f32 %v567, %v584
      %v607 = vadd.f32 %v568, %v584
      %v608 = vadd.f32 %v569, %v584
      %v609 = vadd.f32 %v570, %v584
      %v610 = vadd.f32 %v571, %v584
      %v611 = vadd.f32 %v572, %v584
      %v612 = vadd.f32 %v573, %v584
      %v613 = vadd.f32 %v574, %v584
      %v614 = vadd.f32 %v575, %v584
      %v615 = vadd.f32 %v576, %v584
      %v616 = vadd.f32 %v577, %v584
      %v617 = vadd.f32 %v578, %v584
      %v618 = vadd.f32 %v586, 3.0
      %v619 = vadd.f32 %v587, 3.0
      %v620 = vadd.f32 %v588, 3.0
      %v621 = vadd.f32 %v589, 3.0
      %v622 = vadd.f32 %v590, 3.0
      %v623 = vadd.f32 %v591, 3.0
      %v624 = vadd.f32 %v592, 3.0
      %v625 = vadd.f32 %v593, 3.0
      %v626 = vadd.f32 %v594, 3.0
      %v627 = vadd.f32 %v595, 3.0
      %v628 = vadd.f32 %v596, 3.0
      %v629 = vadd.f32 %v597, 3.0
      %v630 = vadd.f32 %v598, 3.0
      %v631 = vadd.f32 %v599, 3.0
      %v632 = vadd.f32 %v600, 3.0
      %v633 = vadd.f32 %v601, 3.0
      %v634 = vadd.f32 %v602, 3.0
      %v635 = vadd.f32 %v603, 3.0
      %v636 = vadd.f32 %v604, 3.0
      %v637 = vadd.f32 %v605, 3.0
      %v638 = vadd.f32 %v606, 3.0
      %v639 = vadd.f32 %v607, 3.0
      %v640 = vadd.f32 %v608, 3.0
      %v641 = vadd.f32 %v609, 3.0
      %v642 = vadd.f32 %v610, 3.0
      %v643 = vadd.f32 %v611, 3.0
      %v644 = vadd.f32 %v612, 3.0
      %v645 = vadd.f32 %v613, 3.0
      %v646 = vadd.f32 %v614, 3.0
      %v647 = vadd.f32 %v615, 3.0
      %v648 = vadd.f32 %v616, 3.0
      %v649 = vadd.f32 %v617, 3.0
      %v650 = vmax.f32 %v618, 0.0
      %v651 = vmax.f32 %v619, 0.0
      %v652 = vmax.f32 %v620, 0.0
      %v653 = vmax.f32 %v621, 0.0
      %v654 = vmax.f32 %v622, 0.0
      %v655 = vmax.f32 %v623, 0.0
      %v656 = vmax.f32 %v624, 0.0
      %v657 = vmax.f32 %v625, 0.0
      %v658 = vmax.f32 %v626, 0.0
      %v659 = vmax.f32 %v627, 0.0
      %v660 = vmax.f32 %v628, 0.0
      %v661 = vmax.f32 %v629, 0.0
      %v662 = vmax.f32 %v630, 0.0
      %v663 = vmax.f32 %v631, 0.0
      %v664 = vmax.f32 %v632, 0.0
      %v665 = vmax.f32 %v633, 0.0
      %v666 = vmax.f32 %v634, 0.0
      %v667 = vmax.f32 %v635, 0.0
      %v668 = vmax.f32 %v636, 0.0
      %v669 = vmax.f32 %v637, 0.0
      %v670 = vmax.f32 %v638, 0.0
      %v671 = vmax.f32 %v639, 0.0
      %v672 = vmax.f32 %v640, 0.0
      %v673 = vmax.f32 %v641, 0.0
      %v674 = vmax.f32 %v642, 0.0
      %v675 = vmax.f32 %v643, 0.0
      %v676 = vmax.f32 %v644, 0.0
      %v677 = vmax.f32 %v645, 0.0
      %v678 = vmax.f32 %v646, 0.0
      %v679 = vmax.f32 %v647, 0.0
      %v680 = vmax.f32 %v648, 0.0
      %v681 = vmax.f32 %v649, 0.0
      %v682 = vmin.f32 %v650, 6.0
      %v683 = vmin.f32 %v651, 6.0
      %v684 = vmin.f32 %v652, 6.0
      %v685 = vmin.f32 %v653, 6.0
      %v686 = vmin.f32 %v654, 6.0
      %v687 = vmin.f32 %v655, 6.0
      %v688 = vmin.f32 %v656, 6.0
      %v689 = vmin.f32 %v657, 6.0
      %v690 = vmin.f32 %v658, 6.0
      %v691 = vmin.f32 %v659, 6.0
      %v692 = vmin.f32 %v660, 6.0
      %v693 = vmin.f32 %v661, 6.0
      %v694 = vmin.f32 %v662, 6.0
      %v695 = vmin.f32 %v663, 6.0
      %v696 = vmin.f32 %v664, 6.0
      %v697 = vmin.f32 %v665, 6.0
      %v698 = vmin.f32 %v666, 6.0
      %v699 = vmin.f32 %v667, 6.0
      %v700 = vmin.f32 %v668, 6.0
      %v701 = vmin.f32 %v669, 6.0
      %v702 = vmin.f32 %v670, 6.0
      %v703 = vmin.f32 %v671, 6.0
      %v704 = vmin.f32 %v672, 6.0
      %v705 = vmin.f32 %v673, 6.0
      %v706 = vmin.f32 %v674, 6.0
      %v707 = vmin.f32 %v675, 6.0
      %v708 = vmin.f32 %v676, 6.0
      %v709 = vmin.f32 %v677, 6.0
      %v710 = vmin.f32 %v678, 6.0
      %v711 = vmin.f32 %v679, 6.0
      %v712 = vmin.f32 %v680, 6.0
      %v713 = vmin.f32 %v681, 6.0
      %v714 = vmul.f32 %v586, %v682
      %v715 = vmul.f32 %v587, %v683
      %v716 = vmul.f32 %v588, %v684
      %v717 = vmul.f32 %v589, %v685
      %v718 = vmul.f32 %v590, %v686
      %v719 = vmul.f32 %v591, %v687
      %v720 = vmul.f32 %v592, %v688
      %v721 = vmul.f32 %v593, %v689
      %v722 = vmul.f32 %v594, %v690
      %v723 = vmul.f32 %v595, %v691
      %v724 = vmul.f32 %v596, %v692
      %v725 = vmul.f32 %v597, %v693
      %v726 = vmul.f32 %v598, %v694
      %v727 = vmul.f32 %v599, %v695
      %v728 = vmul.f32 %v600, %v696
      %v729 = vmul.f32 %v601, %v697
      %v730 = vmul.f32 %v602, %v698
      %v731 = vmul.f32 %v603, %v699
      %v732 = vmul.f32 %v604, %v700
      %v733 = vmul.f32 %v605, %v701
      %v734 = vmul.f32 %v606, %v702
      %v735 = vmul.f32 %v607, %v703
      %v736 = vmul.f32 %v608, %v704
      %v737 = vmul.f32 %v609, %v705
      %v738 = vmul.f32 %v610, %v706
      %v739 = vmul.f32 %v611, %v707
      %v740 = vmul.f32 %v612, %v708
      %v741 = vmul.f32 %v613, %v709
      %v742 = vmul.f32 %v614, %v710
      %v743 = vmul.f32 %v615, %v711
      %v744 = vmul.f32 %v616, %v712
      %v745 = vmul.f32 %v617, %v713
      %v746 = vmul.f32 %v714, 0.16666667
      %v747 = vmul.f32 %v715, 0.16666667
      %v748 = vmul.f32 %v716, 0.16666667
      %v749 = vmul.f32 %v717, 0.16666667
      %v750 = vmul.f32 %v718, 0.16666667
      %v751 = vmul.f32 %v719, 0.16666667
      %v752 = vmul.f32 %v720, 0.16666667
      %v753 = vmul.f32 %v721, 0.16666667
      %v754 = vmul.f32 %v722, 0.16666667
      %v755 = vmul.f32 %v723, 0.16666667
      %v756 = vmul.f32 %v724, 0.16666667
      %v757 = vmul.f32 %v725, 0.16666667
      %v758 = vmul.f32 %v726, 0.16666667
      %v759 = vmul.f32 %v727, 0.16666667
      %v760 = vmul.f32 %v728, 0.16666667
      %v761 = vmul.f32 %v729, 0.16666667
      %v762 = vmul.f32 %v730, 0.16666667
      %v763 = vmul.f32 %v731, 0.16666667
      %v764 = vmul.f32 %v732, 0.16666667
      %v765 = vmul.f32 %v733, 0.16666667
      %v766 = vmul.f32 %v734, 0.16666667
      %v767 = vmul.f32 %v735, 0.16666667
      %v768 = vmul.f32 %v736, 0.16666667
      %v769 = vmul.f32 %v737, 0.16666667
      %v770 = vmul.f32 %v738, 0.16666667
      %v771 = vmul.f32 %v739, 0.16666667
      %v772 = vmul.f32 %v740, 0.16666667
      %v773 = vmul.f32 %v741, 0.16666667
      %v774 = vmul.f32 %v742, 0.16666667
      %v775 = vmul.f32 %v743, 0.16666667
      %v776 = vmul.f32 %v744, 0.16666667
      %v777 = vmul.f32 %v745, 0.16666667
      %v778 = vpack.c.bf16 %v747, %v746
      %v779 = vpack.c.bf16 %v749, %v748
      %v780 = vpack.c.bf16 %v751, %v750
      %v781 = vpack.c.bf16 %v753, %v752
      %v782 = vpack.c.bf16 %v755, %v754
      %v783 = vpack.c.bf16 %v757, %v756
      %v784 = vpack.c.bf16 %v759, %v758
      %v785 = vpack.c.bf16 %v761, %v760
      %v786 = vpack.c.bf16 %v763, %v762
      %v787 = vpack.c.bf16 %v765, %v764
      %v788 = vpack.c.bf16 %v767, %v766
      %v789 = vpack.c.bf16 %v769, %v768
      %v790 = vpack.c.bf16 %v771, %v770
      %v791 = vpack.c.bf16 %v773, %v772
      %v792 = vpack.c.bf16 %v775, %v774
      %v793 = vpack.c.bf16 %v777, %v776
      %v810 = vunpack.c.l.b16 %v778
      %v811 = vunpack.c.h.b16 %v778
      %v812 = vunpack.c.l.b16 %v779
      %v813 = vunpack.c.h.b16 %v779
      %v814 = vunpack.c.l.b16 %v780
      %v815 = vunpack.c.h.b16 %v780
      %v816 = vunpack.c.l.b16 %v781
      %v817 = vunpack.c.h.b16 %v781
      %v818 = vunpack.c.l.b16 %v782
      %v819 = vunpack.c.h.b16 %v782
      %v820 = vunpack.c.l.b16 %v783
      %v821 = vunpack.c.h.b16 %v783
      %v822 = vunpack.c.l.b16 %v784
      %v823 = vunpack.c.h.b16 %v784
      %v824 = vunpack.c.l.b16 %v785
      %v825 = vunpack.c.h.b16 %v785
      %v826 = vunpack.c.l.b16 %v786
      %v827 = vunpack.c.h.b16 %v786
      %v828 = vunpack.c.l.b16 %v787
      %v829 = vunpack.c.h.b16 %v787
      %v830 = vunpack.c.l.b16 %v788
      %v831 = vunpack.c.h.b16 %v788
      %v832 = vunpack.c.l.b16 %v789
      %v833 = vunpack.c.h.b16 %v789
      %v834 = vunpack.c.l.b16 %v790
      %v835 = vunpack.c.h.b16 %v790
      %v836 = vunpack.c.l.b16 %v791
      %v837 = vunpack.c.h.b16 %v791
      %v838 = vunpack.c.l.b16 %v792
      %v839 = vunpack.c.h.b16 %v792
      %v840 = vunpack.c.l.b16 %v793
      %v841 = vunpack.c.h.b16 %v793
      %v842 = vpack.c.b16 %v810, %v810
      %v843 = vpack.c.b16 %v811, %v811
      %v844 = vpack.c.b16 %v812, %v812
      %v845 = vpack.c.b16 %v813, %v813
      %v846 = vpack.c.b16 %v814, %v814
      %v847 = vpack.c.b16 %v815, %v815
      %v848 = vpack.c.b16 %v816, %v816
      %v849 = vpack.c.b16 %v817, %v817
      %v850 = vpack.c.b16 %v818, %v818
      %v851 = vpack.c.b16 %v819, %v819
      %v852 = vpack.c.b16 %v820, %v820
      %v853 = vpack.c.b16 %v821, %v821
      %v854 = vpack.c.b16 %v822, %v822
      %v855 = vpack.c.b16 %v823, %v823
      %v856 = vpack.c.b16 %v824, %v824
      %v857 = vpack.c.b16 %v825, %v825
      %v858 = vpack.c.b16 %v826, %v826
      %v859 = vpack.c.b16 %v827, %v827
      %v860 = vpack.c.b16 %v828, %v828
      %v861 = vpack.c.b16 %v829, %v829
      %v862 = vpack.c.b16 %v830, %v830
      %v863 = vpack.c.b16 %v831, %v831
      %v864 = vpack.c.b16 %v832, %v832
      %v865 = vpack.c.b16 %v833, %v833
      %v866 = vpack.c.b16 %v834, %v834
      %v867 = vpack.c.b16 %v835, %v835
      %v868 = vpack.c.b16 %v836, %v836
      %v869 = vpack.c.b16 %v837, %v837
      %v870 = vpack.c.b16 %v838, %v838
      %v871 = vpack.c.b16 %v839, %v839
      %v872 = vpack.c.b16 %v840, %v840
      %v873 = vpack.c.b16 %v841, %v841
      %vm906 = vcmask 125952
      %907 = vst.msk [vmem:[%s199] sm:$0xf] %vm906, %v842
      %908 = vst.msk [vmem:[%s199 + $0x4] sm:$0xf] %vm906, %v843
      %909 = vst.msk [vmem:[%s199 + $0x8] sm:$0xf] %vm906, %v844
      %910 = vst.msk [vmem:[%s199 + $0xc] sm:$0xf] %vm906, %v845
      %911 = vst.msk [vmem:[%s199 + $0x10] sm:$0xf] %vm906, %v846
      %912 = vst.msk [vmem:[%s199 + $0x14] sm:$0xf] %vm906, %v847
      %913 = vst.msk [vmem:[%s199 + $0x18] sm:$0xf] %vm906, %v848
      %914 = vst.msk [vmem:[%s199 + $0x1c] sm:$0xf] %vm906, %v849
      %915 = vst.msk [vmem:[%s199 + $0x20] sm:$0xf] %vm906, %v850
      %916 = vst.msk [vmem:[%s199 + $0x24] sm:$0xf] %vm906, %v851
      %917 = vst.msk [vmem:[%s199 + $0x28] sm:$0xf] %vm906, %v852
      %918 = vst.msk [vmem:[%s199 + $0x2c] sm:$0xf] %vm906, %v853
      %919 = vst.msk [vmem:[%s199 + $0x30] sm:$0xf] %vm906, %v854
      %920 = vst.msk [vmem:[%s199 + $0x34] sm:$0xf] %vm906, %v855
      %921 = vst.msk [vmem:[%s199 + $0x38] sm:$0xf] %vm906, %v856
      %922 = vst.msk [vmem:[%s199 + $0x3c] sm:$0xf] %vm906, %v857
      %923 = vst.msk [vmem:[%s199 + $0x40] sm:$0xf] %vm906, %v858
      %924 = vst.msk [vmem:[%s199 + $0x44] sm:$0xf] %vm906, %v859
      %925 = vst.msk [vmem:[%s199 + $0x48] sm:$0xf] %vm906, %v860
      %926 = vst.msk [vmem:[%s199 + $0x4c] sm:$0xf] %vm906, %v861
      %927 = vst.msk [vmem:[%s199 + $0x50] sm:$0xf] %vm906, %v862
      %928 = vst.msk [vmem:[%s199 + $0x54] sm:$0xf] %vm906, %v863
      %929 = vst.msk [vmem:[%s199 + $0x58] sm:$0xf] %vm906, %v864
      %930 = vst.msk [vmem:[%s199 + $0x5c] sm:$0xf] %vm906, %v865
      %931 = vst.msk [vmem:[%s199 + $0x60] sm:$0xf] %vm906, %v866
      %932 = vst.msk [vmem:[%s199 + $0x64] sm:$0xf] %vm906, %v867
      %933 = vst.msk [vmem:[%s199 + $0x68] sm:$0xf] %vm906, %v868
      %934 = vst.msk [vmem:[%s199 + $0x6c] sm:$0xf] %vm906, %v869
      %935 = vst.msk [vmem:[%s199 + $0x70] sm:$0xf] %vm906, %v870
      %936 = vst.msk [vmem:[%s199 + $0x74] sm:$0xf] %vm906, %v871
      %937 = vst.msk [vmem:[%s199 + $0x78] sm:$0xf] %vm906, %v872
      %938 = vst.msk [vmem:[%s199 + $0x7c] sm:$0xf] %vm906, %v873
      %s939 = smul.u32 32, %s15
      %p940 = scmp.lt.s32.totalorder %s939, 63
      %s941 = scalar_select %p940, %s939, 63
      %s942 = smul.addr %s941, 4
      %s943 = scalar_lea.vmem %s4, %s942
      // Predicated region
      $region37: #{mobilenetv3_forward.5} parent=35 // pred_check
        %p944 = pneg %p122
      $region38: #{mobilenetv3_forward.5} parent=35 // pred_check_branch
        %946 = sbr.rel (%p944) target = $region40
      $region39: #{mobilenetv3_forward.5} parent=35 // pred_region
        %s947 = smul.u32 32, %s15
      $region40: #{mobilenetv3_forward.5} parent=35 // pred_fallthru
        _
    $region36: #{mobilenetv3_forward.5} parent=5 // pred_fallthru
      _
    %p948 = scmp.le.s32.totalorder 2, %s10
    // Predicated region
    $region41: #{mobilenetv3_forward.5} parent=5 // pred_check
      %p949 = pneg %p948
    $region42: #{mobilenetv3_forward.5} parent=5 // pred_check_branch
      %951 = sbr.rel (%p949) target = $region44
    $region43: #{mobilenetv3_forward.5} parent=5 // pred_region
      %s952 = ssub.s32 %s10, 2
      // Predicated region
      $region45: #{mobilenetv3_forward.5} parent=43 // pred_check
        %p953 = pneg %p128
      $region46: #{mobilenetv3_forward.5} parent=43 // pred_check_branch
        %955 = sbr.rel (%p953) target = $region48
      $region47: #{mobilenetv3_forward.5} parent=43 // pred_region
        %s956 = smul.u32 32, %s16
        %p957 = scmp.lt.s32.totalorder %s956, 63
        %s958 = scalar_select %p957, %s956, 63
        %s959 = smul.addr %s958, 4
        %s960 = scalar_lea.vmem %s4, %s959
      $region48: #{mobilenetv3_forward.5} parent=43 // pred_fallthru
        _
    $region44: #{mobilenetv3_forward.5} parent=5 // pred_fallthru
      _
  $region6: #{mobilenetv3_forward.5} parent=0 // loop_footer
    %s14 = sadd.s32 1, %s10
  $region7: #{mobilenetv3_forward.5} parent=0 // loop_footer_branch
    %9 = sbr.rel target = $region3
  $region8: #{mobilenetv3_forward.5} parent=0 // loop_exit
    _

// kernel: mobilenetv3_forward.7
$region0: #{mobilenetv3_forward.7}
  #allocation0 [shape = 'u32[]', space=smem, size = 0x4, offset = 0x4, fixed_abs, tag = 'smem constant byte address 0x4 - core index']
  #allocation1 [shape = 'u32[144,128]{1,0:T(1,128)}', space=vmem, size = 0x12000, scoped, tag = 'internal scratch']
  %s0 = inlined_call_operand.vmem [shape: bf16[512,16], index: 0, kind: input, shape index: {}]
  %s1 = inlined_call_operand.vmem [shape: bf16[16,48], index: 1, kind: input, shape index: {}]
  %s2 = inlined_call_operand.vmem [shape: f32[1,48], index: 2, kind: input, shape index: {}]
  %s3 = inlined_call_operand.vmem [shape: f32[1,48], index: 3, kind: input, shape index: {}]
  %s4 = inlined_call_operand.vmem [shape: bf16[512,48], index: 4, kind: output, shape index: {}]
  %s5 = sld [smem:[#allocation0]]
  $region49: #{mobilenetv3_forward.7} parent=0
    _
  %s7 = ssub.s32 1, %s5
  %s8 = scalar_select 0, %s7, %s5
  loop: start=0, step=1, limit=4
  $region2: #{mobilenetv3_forward.7} parent=0 // loop_pre_header
    _
  $region3: #{mobilenetv3_forward.7} parent=0 // loop_header
    %s10 = sphi 0, %s14
    %p11 = scmp.ge.s32.totalorder %s10, 4
    %s20 = sphi 0, %s22
    %s23 = sphi 0, %s20
    %s24 = sphi 0, %s23
    %s40 = sphi 0, %s24
    %s44 = sphi 0, %s44
    %s46 = sphi 0, %s44
    %s47 = sphi 0, %s46
    %s61 = sphi 0, %s47
    %s65 = sphi 0, %s65
    %s67 = sphi 0, %s65
    %s68 = sphi 0, %s67
    %s82 = sphi 0, %s68
    %s86 = sphi 0, %s86
    %s88 = sphi 0, %s86
    %s89 = sphi 0, %s88
    %s103 = sphi 0, %s89
    %s109 = sphi 0, %s111
    %s112 = sphi 0, %s109
    %s113 = sphi 0, %s112
    %s129 = sphi 0, %s113
  $region4: #{mobilenetv3_forward.7} parent=0 // loop_header_branch
    %13 = sbr.rel (%p11) target = $region8
  $region5: #{mobilenetv3_forward.7} parent=0 // loop_body
    %s15 = ssub.s32 %s10, 1
    %s16 = ssub.s32 %s10, 2
    %s17 = sadd.s32 %s10, 1
    %s18 = ssub.s32 %s10, %s17
    %p19 = scmp.eq.s32.totalorder %s18, 0
    %s21 = sadd.s32 %s20, 1
    %s22 = scalar_select %p19, %s20, %s21
    %p25 = pneg %p19
    %p26 = scmp.eq.s32.totalorder %s10, 1
    %p27 = por %p25, %p26
    %p28 = scmp.ne.s32.totalorder %s20, %s23
    %p29 = scmp.eq.s32.totalorder %s10, 0
    %p30 = por %p28, %p29
    %p31 = scmp.ne.s32.totalorder %s20, %s23
    %p32 = scmp.eq.s32.totalorder %s15, 1
    %p33 = por %p31, %p32
    %p34 = scmp.ne.s32.totalorder %s23, %s24
    %p35 = scmp.eq.s32.totalorder %s15, 0
    %p36 = por %p34, %p35
    %p37 = scmp.ne.s32.totalorder %s23, %s24
    %p38 = scmp.eq.s32.totalorder %s16, 1
    %p39 = por %p37, %p38
    %p41 = scmp.ne.s32.totalorder %s24, %s40
    %p42 = scmp.eq.s32.totalorder %s16, 0
    %p43 = por %p41, %p42
    %s45 = sadd.s32 %s44, 1
    %p48 = scmp.eq.s32.totalorder %s10, 1
    %p49 = scmp.ne.s32.totalorder %s44, %s46
    %p50 = scmp.eq.s32.totalorder %s10, 0
    %p51 = por %p49, %p50
    %p52 = scmp.ne.s32.totalorder %s44, %s46
    %p53 = scmp.eq.s32.totalorder %s15, 1
    %p54 = por %p52, %p53
    %p55 = scmp.ne.s32.totalorder %s46, %s47
    %p56 = scmp.eq.s32.totalorder %s15, 0
    %p57 = por %p55, %p56
    %p58 = scmp.ne.s32.totalorder %s46, %s47
    %p59 = scmp.eq.s32.totalorder %s16, 1
    %p60 = por %p58, %p59
    %p62 = scmp.ne.s32.totalorder %s47, %s61
    %p63 = scmp.eq.s32.totalorder %s16, 0
    %p64 = por %p62, %p63
    %s66 = sadd.s32 %s65, 1
    %p69 = scmp.eq.s32.totalorder %s10, 1
    %p70 = scmp.ne.s32.totalorder %s65, %s67
    %p71 = scmp.eq.s32.totalorder %s10, 0
    %p72 = por %p70, %p71
    %p73 = scmp.ne.s32.totalorder %s65, %s67
    %p74 = scmp.eq.s32.totalorder %s15, 1
    %p75 = por %p73, %p74
    %p76 = scmp.ne.s32.totalorder %s67, %s68
    %p77 = scmp.eq.s32.totalorder %s15, 0
    %p78 = por %p76, %p77
    %p79 = scmp.ne.s32.totalorder %s67, %s68
    %p80 = scmp.eq.s32.totalorder %s16, 1
    %p81 = por %p79, %p80
    %p83 = scmp.ne.s32.totalorder %s68, %s82
    %p84 = scmp.eq.s32.totalorder %s16, 0
    %p85 = por %p83, %p84
    %s87 = sadd.s32 %s86, 1
    %p90 = scmp.eq.s32.totalorder %s10, 1
    %p91 = scmp.ne.s32.totalorder %s86, %s88
    %p92 = scmp.eq.s32.totalorder %s10, 0
    %p93 = por %p91, %p92
    %p94 = scmp.ne.s32.totalorder %s86, %s88
    %p95 = scmp.eq.s32.totalorder %s15, 1
    %p96 = por %p94, %p95
    %p97 = scmp.ne.s32.totalorder %s88, %s89
    %p98 = scmp.eq.s32.totalorder %s15, 0
    %p99 = por %p97, %p98
    %p100 = scmp.ne.s32.totalorder %s88, %s89
    %p101 = scmp.eq.s32.totalorder %s16, 1
    %p102 = por %p100, %p101
    %p104 = scmp.ne.s32.totalorder %s89, %s103
    %p105 = scmp.eq.s32.totalorder %s16, 0
    %p106 = por %p104, %p105
    %s107 = ssub.s32 %s10, %s17
    %p108 = scmp.eq.s32.totalorder %s107, 0
    %s110 = sadd.s32 %s109, 1
    %s111 = scalar_select %p108, %s109, %s110
    %p114 = pneg %p108
    %p115 = scmp.eq.s32.totalorder %s10, 1
    %p116 = por %p114, %p115
    %p117 = scmp.ne.s32.totalorder %s109, %s112
    %p118 = scmp.eq.s32.totalorder %s10, 0
    %p119 = por %p117, %p118
    %p120 = scmp.ne.s32.totalorder %s109, %s112
    %p121 = scmp.eq.s32.totalorder %s15, 1
    %p122 = por %p120, %p121
    %p123 = scmp.ne.s32.totalorder %s112, %s113
    %p124 = scmp.eq.s32.totalorder %s15, 0
    %p125 = por %p123, %p124
    %p126 = scmp.ne.s32.totalorder %s112, %s113
    %p127 = scmp.eq.s32.totalorder %s16, 1
    %p128 = por %p126, %p127
    %p130 = scmp.ne.s32.totalorder %s113, %s129
    %p131 = scmp.eq.s32.totalorder %s16, 0
    %p132 = por %p130, %p131
    %p133 = scmp.le.s32.totalorder 1, %s10
    %p134 = scmp.lt.s32.totalorder %s10, 3
    %p135 = pnand %p133, %p134
    %p136 = pneg %p135
    // Predicated region
    $region9: #{mobilenetv3_forward.7} parent=5 // pred_check
      _
    $region10: #{mobilenetv3_forward.7} parent=5 // pred_check_branch
      %138 = sbr.rel (%p135) target = $region12
    $region11: #{mobilenetv3_forward.7} parent=5 // pred_region
      %s139 = ssub.s32 %s10, 1
      // Predicated region
      $region13: #{mobilenetv3_forward.7} parent=11 // pred_check
        %p140 = pneg %p57
      $region14: #{mobilenetv3_forward.7} parent=11 // pred_check_branch
        %142 = sbr.rel (%p140) target = $region16
      $region15: #{mobilenetv3_forward.7} parent=11 // pred_region
        _
      $region16: #{mobilenetv3_forward.7} parent=11 // pred_fallthru
        _
      // Predicated region
      $region17: #{mobilenetv3_forward.7} parent=11 // pred_check
        %p143 = pneg %p78
      $region18: #{mobilenetv3_forward.7} parent=11 // pred_check_branch
        %145 = sbr.rel (%p143) target = $region20
      $region19: #{mobilenetv3_forward.7} parent=11 // pred_region
        _
      $region20: #{mobilenetv3_forward.7} parent=11 // pred_fallthru
        _
      // Predicated region
      $region21: #{mobilenetv3_forward.7} parent=11 // pred_check
        %p146 = pneg %p99
      $region22: #{mobilenetv3_forward.7} parent=11 // pred_check_branch
        %148 = sbr.rel (%p146) target = $region24
      $region23: #{mobilenetv3_forward.7} parent=11 // pred_region
        _
      $region24: #{mobilenetv3_forward.7} parent=11 // pred_fallthru
        _
    $region12: #{mobilenetv3_forward.7} parent=5 // pred_fallthru
      _
    %p149 = scmp.lt.s32.totalorder %s10, 2
    // Predicated region
    $region25: #{mobilenetv3_forward.7} parent=5 // pred_check
      %p150 = pneg %p149
    $region26: #{mobilenetv3_forward.7} parent=5 // pred_check_branch
      %152 = sbr.rel (%p150) target = $region28
    $region27: #{mobilenetv3_forward.7} parent=5 // pred_region
      // Predicated region
      $region29: #{mobilenetv3_forward.7} parent=27 // pred_check
        %p153 = pneg %p30
      $region30: #{mobilenetv3_forward.7} parent=27 // pred_check_branch
        %155 = sbr.rel (%p153) target = $region32
      $region31: #{mobilenetv3_forward.7} parent=27 // pred_region
        %s156 = smul.u32 32, %s10
        %p157 = scmp.lt.s32.totalorder %s156, 63
        %s158 = scalar_select %p157, %s156, 63
        %s159 = smul.addr %s158, 4
        %s160 = scalar_lea.vmem %s0, %s159
        %s161 = smul.u32 32, %s10
      $region32: #{mobilenetv3_forward.7} parent=27 // pred_fallthru
        _
    $region28: #{mobilenetv3_forward.7} parent=5 // pred_fallthru
      _
    %p162 = scmp.le.s32.totalorder 1, %s10
    %p163 = scmp.lt.s32.totalorder %s10, 3
    %p164 = pnand %p162, %p163
    %p165 = pneg %p164
    // Predicated region
    $region33: #{mobilenetv3_forward.7} parent=5 // pred_check
      _
    $region34: #{mobilenetv3_forward.7} parent=5 // pred_check_branch
      %167 = sbr.rel (%p164) target = $region36
    $region35: #{mobilenetv3_forward.7} parent=5 // pred_region
      %s168 = ssub.s32 %s10, 1
      %s169 = smul.u32 32, %s15
      %p170 = scmp.lt.s32.totalorder %s169, 63
      %s171 = scalar_select %p170, %s169, 63
      %s172 = smul.addr %s171, 4
      %s173 = scalar_lea.vmem %s0, %s172
      %p174 = pneg %p36
      %p175 = pneg %p33
      %p176 = pneg %p57
      %p177 = pneg %p54
      %p178 = pneg %p78
      %p179 = pneg %p75
      %p180 = pneg %p99
      %p181 = pneg %p96
      %p182 = pneg %p125
      %p183 = pneg %p122
      %s184 = smul.u32 32, %s15
      %p185 = scmp.lt.s32.totalorder %s184, 63
      %s186 = scalar_select %p185, %s184, 63
      %s187 = smul.addr %s186, 4
      %s188 = scalar_lea.vmem %s4, %s187
      %s189 = smul.u32 32, %s15
      %p190 = scmp.lt.s32.totalorder %s189, 63
      %s191 = scalar_select %p190, %s189, 63
      %s192 = smul.addr %s191, 4
      %s193 = scalar_lea.vmem %s0, %s192
      %s194 = smul.u32 32, %s15
      %s195 = smul.u32 32, %s15
      %p196 = scmp.lt.s32.totalorder %s195, 63
      %s197 = scalar_select %p196, %s195, 63
      %s198 = smul.addr %s197, 4
      %s199 = scalar_lea.vmem %s4, %s198
      %s200 = smul.u32 32, %s15
      %v202 = vld [vmem:[%s193] sm:$0xf]
      %v203 = vld [vmem:[%s193 + $0x4] sm:$0xf]
      %v204 = vld [vmem:[%s193 + $0x8] sm:$0xf]
      %v205 = vld [vmem:[%s193 + $0xc] sm:$0xf]
      %v206 = vld [vmem:[%s193 + $0x10] sm:$0xf]
      %v207 = vld [vmem:[%s193 + $0x14] sm:$0xf]
      %v208 = vld [vmem:[%s193 + $0x18] sm:$0xf]
      %v209 = vld [vmem:[%s193 + $0x1c] sm:$0xf]
      %v210 = vld [vmem:[%s193 + $0x20] sm:$0xf]
      %v211 = vld [vmem:[%s193 + $0x24] sm:$0xf]
      %v212 = vld [vmem:[%s193 + $0x28] sm:$0xf]
      %v213 = vld [vmem:[%s193 + $0x2c] sm:$0xf]
      %v214 = vld [vmem:[%s193 + $0x30] sm:$0xf]
      %v215 = vld [vmem:[%s193 + $0x34] sm:$0xf]
      %v216 = vld [vmem:[%s193 + $0x38] sm:$0xf]
      %v217 = vld [vmem:[%s193 + $0x3c] sm:$0xf]
      %v218 = vld [vmem:[%s193 + $0x40] sm:$0xf]
      %v219 = vld [vmem:[%s193 + $0x44] sm:$0xf]
      %v220 = vld [vmem:[%s193 + $0x48] sm:$0xf]
      %v221 = vld [vmem:[%s193 + $0x4c] sm:$0xf]
      %v222 = vld [vmem:[%s193 + $0x50] sm:$0xf]
      %v223 = vld [vmem:[%s193 + $0x54] sm:$0xf]
      %v224 = vld [vmem:[%s193 + $0x58] sm:$0xf]
      %v225 = vld [vmem:[%s193 + $0x5c] sm:$0xf]
      %v226 = vld [vmem:[%s193 + $0x60] sm:$0xf]
      %v227 = vld [vmem:[%s193 + $0x64] sm:$0xf]
      %v228 = vld [vmem:[%s193 + $0x68] sm:$0xf]
      %v229 = vld [vmem:[%s193 + $0x6c] sm:$0xf]
      %v230 = vld [vmem:[%s193 + $0x70] sm:$0xf]
      %v231 = vld [vmem:[%s193 + $0x74] sm:$0xf]
      %v232 = vld [vmem:[%s193 + $0x78] sm:$0xf]
      %v233 = vld [vmem:[%s193 + $0x7c] sm:$0xf]
      %v234 = vld [vmem:[%s1] sm:$0xf]
      %v235 = vld [vmem:[%s1 + $0x4] sm:$0xf]
      %v268 = vunpack.c.l.b16 %v202
      %v269 = vunpack.c.l.b16 %v203
      %v270 = vunpack.c.l.b16 %v204
      %v271 = vunpack.c.l.b16 %v205
      %v272 = vunpack.c.l.b16 %v206
      %v273 = vunpack.c.l.b16 %v207
      %v274 = vunpack.c.l.b16 %v208
      %v275 = vunpack.c.l.b16 %v209
      %v276 = vunpack.c.l.b16 %v210
      %v277 = vunpack.c.l.b16 %v211
      %v278 = vunpack.c.l.b16 %v212
      %v279 = vunpack.c.l.b16 %v213
      %v280 = vunpack.c.l.b16 %v214
      %v281 = vunpack.c.l.b16 %v215
      %v282 = vunpack.c.l.b16 %v216
      %v283 = vunpack.c.l.b16 %v217
      %v284 = vunpack.c.l.b16 %v218
      %v285 = vunpack.c.l.b16 %v219
      %v286 = vunpack.c.l.b16 %v220
      %v287 = vunpack.c.l.b16 %v221
      %v288 = vunpack.c.l.b16 %v222
      %v289 = vunpack.c.l.b16 %v223
      %v290 = vunpack.c.l.b16 %v224
      %v291 = vunpack.c.l.b16 %v225
      %v292 = vunpack.c.l.b16 %v226
      %v293 = vunpack.c.l.b16 %v227
      %v294 = vunpack.c.l.b16 %v228
      %v295 = vunpack.c.l.b16 %v229
      %v296 = vunpack.c.l.b16 %v230
      %v297 = vunpack.c.l.b16 %v231
      %v298 = vunpack.c.l.b16 %v232
      %v299 = vunpack.c.l.b16 %v233
      %v300 = vpack.c.b16 %v269, %v268
      %v301 = vpack.c.b16 %v271, %v270
      %v302 = vpack.c.b16 %v273, %v272
      %v303 = vpack.c.b16 %v275, %v274
      %v304 = vpack.c.b16 %v277, %v276
      %v305 = vpack.c.b16 %v279, %v278
      %v306 = vpack.c.b16 %v281, %v280
      %v307 = vpack.c.b16 %v283, %v282
      %v308 = vpack.c.b16 %v285, %v284
      %v309 = vpack.c.b16 %v287, %v286
      %v310 = vpack.c.b16 %v289, %v288
      %v311 = vpack.c.b16 %v291, %v290
      %v312 = vpack.c.b16 %v293, %v292
      %v313 = vpack.c.b16 %v295, %v294
      %v314 = vpack.c.b16 %v297, %v296
      %v315 = vpack.c.b16 %v299, %v298
      %v318 = vunpack.c.l.b16 %v234
      %v319 = vunpack.c.l.b16 %v235
      %v320 = vpack.c.b16 %v319, %v318
      %vm322 = vcmask 130048
      %v324 = vsel %vm322, %v300, 0
      %v327 = vsel %vm322, %v301, 0
      %v330 = vsel %vm322, %v302, 0
      %v333 = vsel %vm322, %v303, 0
      %v336 = vsel %vm322, %v304, 0
      %v339 = vsel %vm322, %v305, 0
      %v342 = vsel %vm322, %v306, 0
      %v345 = vsel %vm322, %v307, 0
      %v348 = vsel %vm322, %v308, 0
      %v351 = vsel %vm322, %v309, 0
      %v354 = vsel %vm322, %v310, 0
      %v357 = vsel %vm322, %v311, 0
      %v360 = vsel %vm322, %v312, 0
      %v363 = vsel %vm322, %v313, 0
      %v366 = vsel %vm322, %v314, 0
      %v369 = vsel %vm322, %v315, 0
      %371 = vmatprep.subr.bf16.mxu0 0
      %372 = vmatpush1.bf16.msra.mxu0 0
      %373 = vmatprep.subr.bf16.mxu0 0
      %374 = vmatpush1.bf16.msra.mxu0 0
      %375 = vmatprep.subr.bf16.mxu0 0
      %376 = vmatpush1.bf16.msra.mxu0 0
      %377 = vmatprep.subr.bf16.mxu0 0
      %378 = vmatpush1.bf16.msra.mxu0 0
      %379 = vmatprep.subr.bf16.mxu0 0
      %380 = vmatpush1.bf16.msra.mxu0 0
      %381 = vmatprep.subr.bf16.mxu0 0
      %382 = vmatpush1.bf16.msra.mxu0 0
      %383 = vmatprep.subr.bf16.mxu0 0
      %384 = vmatpush1.bf16.msra.mxu0 0
      %385 = vmatprep.subr.bf16.mxu0 0
      %386 = vmatpush1.bf16.msra.mxu0 %v320
      %387 = vmatprep.subr.bf16.mxu0 0
      %388 = vmatpush2.bf16.msra.mxu0 0
      %389 = vmatprep.subr.bf16.mxu0 0
      %390 = vmatpush2.bf16.msra.mxu0 0
      %391 = vmatprep.subr.bf16.mxu0 0
      %392 = vmatpush2.bf16.msra.mxu0 0
      %393 = vmatprep.subr.bf16.mxu0 0
      %394 = vmatpush2.bf16.msra.mxu0 0
      %395 = vmatprep.subr.bf16.mxu0 0
      %396 = vmatpush2.bf16.msra.mxu0 0
      %397 = vmatprep.subr.bf16.mxu0 0
      %398 = vmatpush2.bf16.msra.mxu0 0
      %399 = vmatprep.subr.bf16.mxu0 0
      %400 = vmatpush2.bf16.msra.mxu0 0
      %401 = vmatprep.subr.bf16.mxu0 0
      %402 = vmatpush2.bf16.msra.mxu0 0
      %403 = vmatprep.mubr.bf16.mxu0 0
      %404 = vmatmul.mubr.bf16.gmra.mxu0 %v324
      %v405 = vpop.f32.mrf.mxu0
      %v406 = vadd.f32 0.0, %v405
      %v407 = vpop.f32.mrf.mxu0
      %v408 = vpop.f32.mrf.mxu0
      %v409 = vadd.f32 0.0, %v408
      %v410 = vpop.f32.mrf.mxu0
      %411 = vmatprep.mubr.bf16.mxu0 0
      %412 = vmatmul.mubr.bf16.gmra.mxu0 %v327
      %v413 = vpop.f32.mrf.mxu0
      %v414 = vadd.f32 0.0, %v413
      %v415 = vpop.f32.mrf.mxu0
      %v416 = vpop.f32.mrf.mxu0
      %v417 = vadd.f32 0.0, %v416
      %v418 = vpop.f32.mrf.mxu0
      %419 = vmatprep.mubr.bf16.mxu0 0
      %420 = vmatmul.mubr.bf16.gmra.mxu0 %v330
      %v421 = vpop.f32.mrf.mxu0
      %v422 = vadd.f32 0.0, %v421
      %v423 = vpop.f32.mrf.mxu0
      %v424 = vpop.f32.mrf.mxu0
      %v425 = vadd.f32 0.0, %v424
      %v426 = vpop.f32.mrf.mxu0
      %427 = vmatprep.mubr.bf16.mxu0 0
      %428 = vmatmul.mubr.bf16.gmra.mxu0 %v333
      %v429 = vpop.f32.mrf.mxu0
      %v430 = vadd.f32 0.0, %v429
      %v431 = vpop.f32.mrf.mxu0
      %v432 = vpop.f32.mrf.mxu0
      %v433 = vadd.f32 0.0, %v432
      %v434 = vpop.f32.mrf.mxu0
      %435 = vmatprep.mubr.bf16.mxu0 0
      %436 = vmatmul.mubr.bf16.gmra.mxu0 %v336
      %v437 = vpop.f32.mrf.mxu0
      %v438 = vadd.f32 0.0, %v437
      %v439 = vpop.f32.mrf.mxu0
      %v440 = vpop.f32.mrf.mxu0
      %v441 = vadd.f32 0.0, %v440
      %v442 = vpop.f32.mrf.mxu0
      %443 = vmatprep.mubr.bf16.mxu0 0
      %444 = vmatmul.mubr.bf16.gmra.mxu0 %v339
      %v445 = vpop.f32.mrf.mxu0
      %v446 = vadd.f32 0.0, %v445
      %v447 = vpop.f32.mrf.mxu0
      %v448 = vpop.f32.mrf.mxu0
      %v449 = vadd.f32 0.0, %v448
      %v450 = vpop.f32.mrf.mxu0
      %451 = vmatprep.mubr.bf16.mxu0 0
      %452 = vmatmul.mubr.bf16.gmra.mxu0 %v342
      %v453 = vpop.f32.mrf.mxu0
      %v454 = vadd.f32 0.0, %v453
      %v455 = vpop.f32.mrf.mxu0
      %v456 = vpop.f32.mrf.mxu0
      %v457 = vadd.f32 0.0, %v456
      %v458 = vpop.f32.mrf.mxu0
      %459 = vmatprep.mubr.bf16.mxu0 0
      %460 = vmatmul.mubr.bf16.gmra.mxu0 %v345
      %v461 = vpop.f32.mrf.mxu0
      %v462 = vadd.f32 0.0, %v461
      %v463 = vpop.f32.mrf.mxu0
      %v464 = vpop.f32.mrf.mxu0
      %v465 = vadd.f32 0.0, %v464
      %v466 = vpop.f32.mrf.mxu0
      %467 = vmatprep.mubr.bf16.mxu0 0
      %468 = vmatmul.mubr.bf16.gmra.mxu0 %v348
      %v469 = vpop.f32.mrf.mxu0
      %v470 = vadd.f32 0.0, %v469
      %v471 = vpop.f32.mrf.mxu0
      %v472 = vpop.f32.mrf.mxu0
      %v473 = vadd.f32 0.0, %v472
      %v474 = vpop.f32.mrf.mxu0
      %475 = vmatprep.mubr.bf16.mxu0 0
      %476 = vmatmul.mubr.bf16.gmra.mxu0 %v351
      %v477 = vpop.f32.mrf.mxu0
      %v478 = vadd.f32 0.0, %v477
      %v479 = vpop.f32.mrf.mxu0
      %v480 = vpop.f32.mrf.mxu0
      %v481 = vadd.f32 0.0, %v480
      %v482 = vpop.f32.mrf.mxu0
      %483 = vmatprep.mubr.bf16.mxu0 0
      %484 = vmatmul.mubr.bf16.gmra.mxu0 %v354
      %v485 = vpop.f32.mrf.mxu0
      %v486 = vadd.f32 0.0, %v485
      %v487 = vpop.f32.mrf.mxu0
      %v488 = vpop.f32.mrf.mxu0
      %v489 = vadd.f32 0.0, %v488
      %v490 = vpop.f32.mrf.mxu0
      %491 = vmatprep.mubr.bf16.mxu0 0
      %492 = vmatmul.mubr.bf16.gmra.mxu0 %v357
      %v493 = vpop.f32.mrf.mxu0
      %v494 = vadd.f32 0.0, %v493
      %v495 = vpop.f32.mrf.mxu0
      %v496 = vpop.f32.mrf.mxu0
      %v497 = vadd.f32 0.0, %v496
      %v498 = vpop.f32.mrf.mxu0
      %499 = vmatprep.mubr.bf16.mxu0 0
      %500 = vmatmul.mubr.bf16.gmra.mxu0 %v360
      %v501 = vpop.f32.mrf.mxu0
      %v502 = vadd.f32 0.0, %v501
      %v503 = vpop.f32.mrf.mxu0
      %v504 = vpop.f32.mrf.mxu0
      %v505 = vadd.f32 0.0, %v504
      %v506 = vpop.f32.mrf.mxu0
      %507 = vmatprep.mubr.bf16.mxu0 0
      %508 = vmatmul.mubr.bf16.gmra.mxu0 %v363
      %v509 = vpop.f32.mrf.mxu0
      %v510 = vadd.f32 0.0, %v509
      %v511 = vpop.f32.mrf.mxu0
      %v512 = vpop.f32.mrf.mxu0
      %v513 = vadd.f32 0.0, %v512
      %v514 = vpop.f32.mrf.mxu0
      %515 = vmatprep.mubr.bf16.mxu0 0
      %516 = vmatmul.mubr.bf16.gmra.mxu0 %v366
      %v517 = vpop.f32.mrf.mxu0
      %v518 = vadd.f32 0.0, %v517
      %v519 = vpop.f32.mrf.mxu0
      %v520 = vpop.f32.mrf.mxu0
      %v521 = vadd.f32 0.0, %v520
      %v522 = vpop.f32.mrf.mxu0
      %523 = vmatprep.mubr.bf16.mxu0 0
      %524 = vmatmul.mubr.bf16.gmra.mxu0 %v369
      %v525 = vpop.f32.mrf.mxu0
      %v526 = vadd.f32 0.0, %v525
      %v527 = vpop.f32.mrf.mxu0
      %v528 = vpop.f32.mrf.mxu0
      %v529 = vadd.f32 0.0, %v528
      %v530 = vpop.f32.mrf.mxu0
      %531 = vdwg.mxu0
      %v532 = vld [vmem:[%s2] sm:$0x1]
      %v534 = vlaneseq
      %v535 = vshrl.u32 %v534, 7
      %v536 = vsub.s32 0, %v535
      %v537 = vrot.slane %v532, %v536
      %v539 = vmul.f32 %v406, %v537
      %v540 = vmul.f32 %v409, %v537
      %v541 = vmul.f32 %v414, %v537
      %v542 = vmul.f32 %v417, %v537
      %v543 = vmul.f32 %v422, %v537
      %v544 = vmul.f32 %v425, %v537
      %v545 = vmul.f32 %v430, %v537
      %v546 = vmul.f32 %v433, %v537
      %v547 = vmul.f32 %v438, %v537
      %v548 = vmul.f32 %v441, %v537
      %v549 = vmul.f32 %v446, %v537
      %v550 = vmul.f32 %v449, %v537
      %v551 = vmul.f32 %v454, %v537
      %v552 = vmul.f32 %v457, %v537
      %v553 = vmul.f32 %v462, %v537
      %v554 = vmul.f32 %v465, %v537
      %v555 = vmul.f32 %v470, %v537
      %v556 = vmul.f32 %v473, %v537
      %v557 = vmul.f32 %v478, %v537
      %v558 = vmul.f32 %v481, %v537
      %v559 = vmul.f32 %v486, %v537
      %v560 = vmul.f32 %v489, %v537
      %v561 = vmul.f32 %v494, %v537
      %v562 = vmul.f32 %v497, %v537
      %v563 = vmul.f32 %v502, %v537
      %v564 = vmul.f32 %v505, %v537
      %v565 = vmul.f32 %v510, %v537
      %v566 = vmul.f32 %v513, %v537
      %v567 = vmul.f32 %v518, %v537
      %v568 = vmul.f32 %v521, %v537
      %v569 = vmul.f32 %v526, %v537
      %v570 = vmul.f32 %v529, %v537
      %v571 = vld [vmem:[%s3] sm:$0x1]
      %v573 = vlaneseq
      %v574 = vshrl.u32 %v573, 7
      %v575 = vsub.s32 0, %v574
      %v576 = vrot.slane %v571, %v575
      %v578 = vadd.f32 %v539, %v576
      %v579 = vadd.f32 %v540, %v576
      %v580 = vadd.f32 %v541, %v576
      %v581 = vadd.f32 %v542, %v576
      %v582 = vadd.f32 %v543, %v576
      %v583 = vadd.f32 %v544, %v576
      %v584 = vadd.f32 %v545, %v576
      %v585 = vadd.f32 %v546, %v576
      %v586 = vadd.f32 %v547, %v576
      %v587 = vadd.f32 %v548, %v576
      %v588 = vadd.f32 %v549, %v576
      %v589 = vadd.f32 %v550, %v576
      %v590 = vadd.f32 %v551, %v576
      %v591 = vadd.f32 %v552, %v576
      %v592 = vadd.f32 %v553, %v576
      %v593 = vadd.f32 %v554, %v576
      %v594 = vadd.f32 %v555, %v576
      %v595 = vadd.f32 %v556, %v576
      %v596 = vadd.f32 %v557, %v576
      %v597 = vadd.f32 %v558, %v576
      %v598 = vadd.f32 %v559, %v576
      %v599 = vadd.f32 %v560, %v576
      %v600 = vadd.f32 %v561, %v576
      %v601 = vadd.f32 %v562, %v576
      %v602 = vadd.f32 %v563, %v576
      %v603 = vadd.f32 %v564, %v576
      %v604 = vadd.f32 %v565, %v576
      %v605 = vadd.f32 %v566, %v576
      %v606 = vadd.f32 %v567, %v576
      %v607 = vadd.f32 %v568, %v576
      %v608 = vadd.f32 %v569, %v576
      %v609 = vadd.f32 %v570, %v576
      %v610 = vadd.f32 %v578, 3.0
      %v611 = vadd.f32 %v579, 3.0
      %v612 = vadd.f32 %v580, 3.0
      %v613 = vadd.f32 %v581, 3.0
      %v614 = vadd.f32 %v582, 3.0
      %v615 = vadd.f32 %v583, 3.0
      %v616 = vadd.f32 %v584, 3.0
      %v617 = vadd.f32 %v585, 3.0
      %v618 = vadd.f32 %v586, 3.0
      %v619 = vadd.f32 %v587, 3.0
      %v620 = vadd.f32 %v588, 3.0
      %v621 = vadd.f32 %v589, 3.0
      %v622 = vadd.f32 %v590, 3.0
      %v623 = vadd.f32 %v591, 3.0
      %v624 = vadd.f32 %v592, 3.0
      %v625 = vadd.f32 %v593, 3.0
      %v626 = vadd.f32 %v594, 3.0
      %v627 = vadd.f32 %v595, 3.0
      %v628 = vadd.f32 %v596, 3.0
      %v629 = vadd.f32 %v597, 3.0
      %v630 = vadd.f32 %v598, 3.0
      %v631 = vadd.f32 %v599, 3.0
      %v632 = vadd.f32 %v600, 3.0
      %v633 = vadd.f32 %v601, 3.0
      %v634 = vadd.f32 %v602, 3.0
      %v635 = vadd.f32 %v603, 3.0
      %v636 = vadd.f32 %v604, 3.0
      %v637 = vadd.f32 %v605, 3.0
      %v638 = vadd.f32 %v606, 3.0
      %v639 = vadd.f32 %v607, 3.0
      %v640 = vadd.f32 %v608, 3.0
      %v641 = vadd.f32 %v609, 3.0
      %v642 = vmax.f32 %v610, 0.0
      %v643 = vmax.f32 %v611, 0.0
      %v644 = vmax.f32 %v612, 0.0
      %v645 = vmax.f32 %v613, 0.0
      %v646 = vmax.f32 %v614, 0.0
      %v647 = vmax.f32 %v615, 0.0
      %v648 = vmax.f32 %v616, 0.0
      %v649 = vmax.f32 %v617, 0.0
      %v650 = vmax.f32 %v618, 0.0
      %v651 = vmax.f32 %v619, 0.0
      %v652 = vmax.f32 %v620, 0.0
      %v653 = vmax.f32 %v621, 0.0
      %v654 = vmax.f32 %v622, 0.0
      %v655 = vmax.f32 %v623, 0.0
      %v656 = vmax.f32 %v624, 0.0
      %v657 = vmax.f32 %v625, 0.0
      %v658 = vmax.f32 %v626, 0.0
      %v659 = vmax.f32 %v627, 0.0
      %v660 = vmax.f32 %v628, 0.0
      %v661 = vmax.f32 %v629, 0.0
      %v662 = vmax.f32 %v630, 0.0
      %v663 = vmax.f32 %v631, 0.0
      %v664 = vmax.f32 %v632, 0.0
      %v665 = vmax.f32 %v633, 0.0
      %v666 = vmax.f32 %v634, 0.0
      %v667 = vmax.f32 %v635, 0.0
      %v668 = vmax.f32 %v636, 0.0
      %v669 = vmax.f32 %v637, 0.0
      %v670 = vmax.f32 %v638, 0.0
      %v671 = vmax.f32 %v639, 0.0
      %v672 = vmax.f32 %v640, 0.0
      %v673 = vmax.f32 %v641, 0.0
      %v674 = vmin.f32 %v642, 6.0
      %v675 = vmin.f32 %v643, 6.0
      %v676 = vmin.f32 %v644, 6.0
      %v677 = vmin.f32 %v645, 6.0
      %v678 = vmin.f32 %v646, 6.0
      %v679 = vmin.f32 %v647, 6.0
      %v680 = vmin.f32 %v648, 6.0
      %v681 = vmin.f32 %v649, 6.0
      %v682 = vmin.f32 %v650, 6.0
      %v683 = vmin.f32 %v651, 6.0
      %v684 = vmin.f32 %v652, 6.0
      %v685 = vmin.f32 %v653, 6.0
      %v686 = vmin.f32 %v654, 6.0
      %v687 = vmin.f32 %v655, 6.0
      %v688 = vmin.f32 %v656, 6.0
      %v689 = vmin.f32 %v657, 6.0
      %v690 = vmin.f32 %v658, 6.0
      %v691 = vmin.f32 %v659, 6.0
      %v692 = vmin.f32 %v660, 6.0
      %v693 = vmin.f32 %v661, 6.0
      %v694 = vmin.f32 %v662, 6.0
      %v695 = vmin.f32 %v663, 6.0
      %v696 = vmin.f32 %v664, 6.0
      %v697 = vmin.f32 %v665, 6.0
      %v698 = vmin.f32 %v666, 6.0
      %v699 = vmin.f32 %v667, 6.0
      %v700 = vmin.f32 %v668, 6.0
      %v701 = vmin.f32 %v669, 6.0
      %v702 = vmin.f32 %v670, 6.0
      %v703 = vmin.f32 %v671, 6.0
      %v704 = vmin.f32 %v672, 6.0
      %v705 = vmin.f32 %v673, 6.0
      %v706 = vmul.f32 %v578, %v674
      %v707 = vmul.f32 %v579, %v675
      %v708 = vmul.f32 %v580, %v676
      %v709 = vmul.f32 %v581, %v677
      %v710 = vmul.f32 %v582, %v678
      %v711 = vmul.f32 %v583, %v679
      %v712 = vmul.f32 %v584, %v680
      %v713 = vmul.f32 %v585, %v681
      %v714 = vmul.f32 %v586, %v682
      %v715 = vmul.f32 %v587, %v683
      %v716 = vmul.f32 %v588, %v684
      %v717 = vmul.f32 %v589, %v685
      %v718 = vmul.f32 %v590, %v686
      %v719 = vmul.f32 %v591, %v687
      %v720 = vmul.f32 %v592, %v688
      %v721 = vmul.f32 %v593, %v689
      %v722 = vmul.f32 %v594, %v690
      %v723 = vmul.f32 %v595, %v691
      %v724 = vmul.f32 %v596, %v692
      %v725 = vmul.f32 %v597, %v693
      %v726 = vmul.f32 %v598, %v694
      %v727 = vmul.f32 %v599, %v695
      %v728 = vmul.f32 %v600, %v696
      %v729 = vmul.f32 %v601, %v697
      %v730 = vmul.f32 %v602, %v698
      %v731 = vmul.f32 %v603, %v699
      %v732 = vmul.f32 %v604, %v700
      %v733 = vmul.f32 %v605, %v701
      %v734 = vmul.f32 %v606, %v702
      %v735 = vmul.f32 %v607, %v703
      %v736 = vmul.f32 %v608, %v704
      %v737 = vmul.f32 %v609, %v705
      %v738 = vmul.f32 %v706, 0.16666667
      %v739 = vmul.f32 %v707, 0.16666667
      %v740 = vmul.f32 %v708, 0.16666667
      %v741 = vmul.f32 %v709, 0.16666667
      %v742 = vmul.f32 %v710, 0.16666667
      %v743 = vmul.f32 %v711, 0.16666667
      %v744 = vmul.f32 %v712, 0.16666667
      %v745 = vmul.f32 %v713, 0.16666667
      %v746 = vmul.f32 %v714, 0.16666667
      %v747 = vmul.f32 %v715, 0.16666667
      %v748 = vmul.f32 %v716, 0.16666667
      %v749 = vmul.f32 %v717, 0.16666667
      %v750 = vmul.f32 %v718, 0.16666667
      %v751 = vmul.f32 %v719, 0.16666667
      %v752 = vmul.f32 %v720, 0.16666667
      %v753 = vmul.f32 %v721, 0.16666667
      %v754 = vmul.f32 %v722, 0.16666667
      %v755 = vmul.f32 %v723, 0.16666667
      %v756 = vmul.f32 %v724, 0.16666667
      %v757 = vmul.f32 %v725, 0.16666667
      %v758 = vmul.f32 %v726, 0.16666667
      %v759 = vmul.f32 %v727, 0.16666667
      %v760 = vmul.f32 %v728, 0.16666667
      %v761 = vmul.f32 %v729, 0.16666667
      %v762 = vmul.f32 %v730, 0.16666667
      %v763 = vmul.f32 %v731, 0.16666667
      %v764 = vmul.f32 %v732, 0.16666667
      %v765 = vmul.f32 %v733, 0.16666667
      %v766 = vmul.f32 %v734, 0.16666667
      %v767 = vmul.f32 %v735, 0.16666667
      %v768 = vmul.f32 %v736, 0.16666667
      %v769 = vmul.f32 %v737, 0.16666667
      %v770 = vpack.c.bf16 %v739, %v738
      %v771 = vpack.c.bf16 %v741, %v740
      %v772 = vpack.c.bf16 %v743, %v742
      %v773 = vpack.c.bf16 %v745, %v744
      %v774 = vpack.c.bf16 %v747, %v746
      %v775 = vpack.c.bf16 %v749, %v748
      %v776 = vpack.c.bf16 %v751, %v750
      %v777 = vpack.c.bf16 %v753, %v752
      %v778 = vpack.c.bf16 %v755, %v754
      %v779 = vpack.c.bf16 %v757, %v756
      %v780 = vpack.c.bf16 %v759, %v758
      %v781 = vpack.c.bf16 %v761, %v760
      %v782 = vpack.c.bf16 %v763, %v762
      %v783 = vpack.c.bf16 %v765, %v764
      %v784 = vpack.c.bf16 %v767, %v766
      %v785 = vpack.c.bf16 %v769, %v768
      %v802 = vunpack.c.l.b16 %v770
      %v803 = vunpack.c.h.b16 %v770
      %v804 = vunpack.c.l.b16 %v771
      %v805 = vunpack.c.h.b16 %v771
      %v806 = vunpack.c.l.b16 %v772
      %v807 = vunpack.c.h.b16 %v772
      %v808 = vunpack.c.l.b16 %v773
      %v809 = vunpack.c.h.b16 %v773
      %v810 = vunpack.c.l.b16 %v774
      %v811 = vunpack.c.h.b16 %v774
      %v812 = vunpack.c.l.b16 %v775
      %v813 = vunpack.c.h.b16 %v775
      %v814 = vunpack.c.l.b16 %v776
      %v815 = vunpack.c.h.b16 %v776
      %v816 = vunpack.c.l.b16 %v777
      %v817 = vunpack.c.h.b16 %v777
      %v818 = vunpack.c.l.b16 %v778
      %v819 = vunpack.c.h.b16 %v778
      %v820 = vunpack.c.l.b16 %v779
      %v821 = vunpack.c.h.b16 %v779
      %v822 = vunpack.c.l.b16 %v780
      %v823 = vunpack.c.h.b16 %v780
      %v824 = vunpack.c.l.b16 %v781
      %v825 = vunpack.c.h.b16 %v781
      %v826 = vunpack.c.l.b16 %v782
      %v827 = vunpack.c.h.b16 %v782
      %v828 = vunpack.c.l.b16 %v783
      %v829 = vunpack.c.h.b16 %v783
      %v830 = vunpack.c.l.b16 %v784
      %v831 = vunpack.c.h.b16 %v784
      %v832 = vunpack.c.l.b16 %v785
      %v833 = vunpack.c.h.b16 %v785
      %v834 = vpack.c.b16 %v802, %v802
      %v835 = vpack.c.b16 %v803, %v803
      %v836 = vpack.c.b16 %v804, %v804
      %v837 = vpack.c.b16 %v805, %v805
      %v838 = vpack.c.b16 %v806, %v806
      %v839 = vpack.c.b16 %v807, %v807
      %v840 = vpack.c.b16 %v808, %v808
      %v841 = vpack.c.b16 %v809, %v809
      %v842 = vpack.c.b16 %v810, %v810
      %v843 = vpack.c.b16 %v811, %v811
      %v844 = vpack.c.b16 %v812, %v812
      %v845 = vpack.c.b16 %v813, %v813
      %v846 = vpack.c.b16 %v814, %v814
      %v847 = vpack.c.b16 %v815, %v815
      %v848 = vpack.c.b16 %v816, %v816
      %v849 = vpack.c.b16 %v817, %v817
      %v850 = vpack.c.b16 %v818, %v818
      %v851 = vpack.c.b16 %v819, %v819
      %v852 = vpack.c.b16 %v820, %v820
      %v853 = vpack.c.b16 %v821, %v821
      %v854 = vpack.c.b16 %v822, %v822
      %v855 = vpack.c.b16 %v823, %v823
      %v856 = vpack.c.b16 %v824, %v824
      %v857 = vpack.c.b16 %v825, %v825
      %v858 = vpack.c.b16 %v826, %v826
      %v859 = vpack.c.b16 %v827, %v827
      %v860 = vpack.c.b16 %v828, %v828
      %v861 = vpack.c.b16 %v829, %v829
      %v862 = vpack.c.b16 %v830, %v830
      %v863 = vpack.c.b16 %v831, %v831
      %v864 = vpack.c.b16 %v832, %v832
      %v865 = vpack.c.b16 %v833, %v833
      %vm898 = vcmask 388096
      %899 = vst.msk [vmem:[%s199] sm:$0xf] %vm898, %v834
      %900 = vst.msk [vmem:[%s199 + $0x4] sm:$0xf] %vm898, %v835
      %901 = vst.msk [vmem:[%s199 + $0x8] sm:$0xf] %vm898, %v836
      %902 = vst.msk [vmem:[%s199 + $0xc] sm:$0xf] %vm898, %v837
      %903 = vst.msk [vmem:[%s199 + $0x10] sm:$0xf] %vm898, %v838
      %904 = vst.msk [vmem:[%s199 + $0x14] sm:$0xf] %vm898, %v839
      %905 = vst.msk [vmem:[%s199 + $0x18] sm:$0xf] %vm898, %v840
      %906 = vst.msk [vmem:[%s199 + $0x1c] sm:$0xf] %vm898, %v841
      %907 = vst.msk [vmem:[%s199 + $0x20] sm:$0xf] %vm898, %v842
      %908 = vst.msk [vmem:[%s199 + $0x24] sm:$0xf] %vm898, %v843
      %909 = vst.msk [vmem:[%s199 + $0x28] sm:$0xf] %vm898, %v844
      %910 = vst.msk [vmem:[%s199 + $0x2c] sm:$0xf] %vm898, %v845
      %911 = vst.msk [vmem:[%s199 + $0x30] sm:$0xf] %vm898, %v846
      %912 = vst.msk [vmem:[%s199 + $0x34] sm:$0xf] %vm898, %v847
      %913 = vst.msk [vmem:[%s199 + $0x38] sm:$0xf] %vm898, %v848
      %914 = vst.msk [vmem:[%s199 + $0x3c] sm:$0xf] %vm898, %v849
      %915 = vst.msk [vmem:[%s199 + $0x40] sm:$0xf] %vm898, %v850
      %916 = vst.msk [vmem:[%s199 + $0x44] sm:$0xf] %vm898, %v851
      %917 = vst.msk [vmem:[%s199 + $0x48] sm:$0xf] %vm898, %v852
      %918 = vst.msk [vmem:[%s199 + $0x4c] sm:$0xf] %vm898, %v853
      %919 = vst.msk [vmem:[%s199 + $0x50] sm:$0xf] %vm898, %v854
      %920 = vst.msk [vmem:[%s199 + $0x54] sm:$0xf] %vm898, %v855
      %921 = vst.msk [vmem:[%s199 + $0x58] sm:$0xf] %vm898, %v856
      %922 = vst.msk [vmem:[%s199 + $0x5c] sm:$0xf] %vm898, %v857
      %923 = vst.msk [vmem:[%s199 + $0x60] sm:$0xf] %vm898, %v858
      %924 = vst.msk [vmem:[%s199 + $0x64] sm:$0xf] %vm898, %v859
      %925 = vst.msk [vmem:[%s199 + $0x68] sm:$0xf] %vm898, %v860
      %926 = vst.msk [vmem:[%s199 + $0x6c] sm:$0xf] %vm898, %v861
      %927 = vst.msk [vmem:[%s199 + $0x70] sm:$0xf] %vm898, %v862
      %928 = vst.msk [vmem:[%s199 + $0x74] sm:$0xf] %vm898, %v863
      %929 = vst.msk [vmem:[%s199 + $0x78] sm:$0xf] %vm898, %v864
      %930 = vst.msk [vmem:[%s199 + $0x7c] sm:$0xf] %vm898, %v865
      %s931 = smul.u32 32, %s15
      %p932 = scmp.lt.s32.totalorder %s931, 63
      %s933 = scalar_select %p932, %s931, 63
      %s934 = smul.addr %s933, 4
      %s935 = scalar_lea.vmem %s4, %s934
      // Predicated region
      $region37: #{mobilenetv3_forward.7} parent=35 // pred_check
        %p936 = pneg %p122
      $region38: #{mobilenetv3_forward.7} parent=35 // pred_check_branch
        %938 = sbr.rel (%p936) target = $region40
      $region39: #{mobilenetv3_forward.7} parent=35 // pred_region
        %s939 = smul.u32 32, %s15
      $region40: #{mobilenetv3_forward.7} parent=35 // pred_fallthru
        _
    $region36: #{mobilenetv3_forward.7} parent=5 // pred_fallthru
      _
    %p940 = scmp.le.s32.totalorder 2, %s10
    // Predicated region
    $region41: #{mobilenetv3_forward.7} parent=5 // pred_check
      %p941 = pneg %p940
    $region42: #{mobilenetv3_forward.7} parent=5 // pred_check_branch
      %943 = sbr.rel (%p941) target = $region44
    $region43: #{mobilenetv3_forward.7} parent=5 // pred_region
      %s944 = ssub.s32 %s10, 2
      // Predicated region
      $region45: #{mobilenetv3_forward.7} parent=43 // pred_check
        %p945 = pneg %p128
      $region46: #{mobilenetv3_forward.7} parent=43 // pred_check_branch
        %947 = sbr.rel (%p945) target = $region48
      $region47: #{mobilenetv3_forward.7} parent=43 // pred_region
        %s948 = smul.u32 32, %s16
        %p949 = scmp.lt.s32.totalorder %s948, 63
        %s950 = scalar_select %p949, %s948, 63
        %s951 = smul.addr %s950, 4
        %s952 = scalar_lea.vmem %s4, %s951
      $region48: #{mobilenetv3_forward.7} parent=43 // pred_fallthru
        _
    $region44: #{mobilenetv3_forward.7} parent=5 // pred_fallthru
      _
  $region6: #{mobilenetv3_forward.7} parent=0 // loop_footer
    %s14 = sadd.s32 1, %s10
  $region7: #{mobilenetv3_forward.7} parent=0 // loop_footer_branch
    %9 = sbr.rel target = $region3
  $region8: #{mobilenetv3_forward.7} parent=0 // loop_exit
    _

// kernel: mobilenetv3_forward.6
$region0: #{mobilenetv3_forward.6}
  #allocation0 [shape = 'u32[]', space=smem, size = 0x4, offset = 0x4, fixed_abs, tag = 'smem constant byte address 0x4 - core index']
  #allocation1 [shape = 'u32[144,128]{1,0:T(1,128)}', space=vmem, size = 0x12000, scoped, tag = 'internal scratch']
  %s0 = inlined_call_operand.vmem [shape: bf16[2,18,18,16], index: 0, kind: input, shape index: {}]
  %s1 = inlined_call_operand.vmem [shape: f32[9,16], index: 1, kind: input, shape index: {}]
  %s2 = inlined_call_operand.vmem [shape: f32[1,16], index: 2, kind: input, shape index: {}]
  %s3 = inlined_call_operand.vmem [shape: f32[1,16], index: 3, kind: input, shape index: {}]
  %s4 = inlined_call_operand.vmem [shape: bf16[16,16], index: 4, kind: input, shape index: {}]
  %s5 = inlined_call_operand.vmem [shape: f32[1,16], index: 5, kind: input, shape index: {}]
  %s6 = inlined_call_operand.vmem [shape: f32[1,16], index: 6, kind: input, shape index: {}]
  %s7 = inlined_call_operand.vmem [shape: bf16[2,256,16], index: 7, kind: output, shape index: {}]
  %s8 = sld [smem:[#allocation0]]
  $region61: #{mobilenetv3_forward.6} parent=0
    _
  %s10 = ssub.s32 1, %s8
  %s11 = scalar_select 0, %s10, %s8
  loop: start=0, step=1, limit=4
  $region2: #{mobilenetv3_forward.6} parent=0 // loop_pre_header
    _
  $region3: #{mobilenetv3_forward.6} parent=0 // loop_header
    %s13 = sphi 0, %s17
    %p14 = scmp.ge.s32.totalorder %s13, 4
    %s23 = sphi 0, %s25
    %s26 = sphi 0, %s23
    %s27 = sphi 0, %s26
    %s43 = sphi 0, %s27
    %s47 = sphi 0, %s47
    %s49 = sphi 0, %s47
    %s50 = sphi 0, %s49
    %s64 = sphi 0, %s50
    %s68 = sphi 0, %s68
    %s70 = sphi 0, %s68
    %s71 = sphi 0, %s70
    %s85 = sphi 0, %s71
    %s89 = sphi 0, %s89
    %s91 = sphi 0, %s89
    %s92 = sphi 0, %s91
    %s106 = sphi 0, %s92
    %s110 = sphi 0, %s110
    %s112 = sphi 0, %s110
    %s113 = sphi 0, %s112
    %s127 = sphi 0, %s113
    %s131 = sphi 0, %s131
    %s133 = sphi 0, %s131
    %s134 = sphi 0, %s133
    %s148 = sphi 0, %s134
    %s152 = sphi 0, %s152
    %s154 = sphi 0, %s152
    %s155 = sphi 0, %s154
    %s169 = sphi 0, %s155
    %s175 = sphi 0, %s177
    %s178 = sphi 0, %s175
    %s179 = sphi 0, %s178
    %s195 = sphi 0, %s179
  $region4: #{mobilenetv3_forward.6} parent=0 // loop_header_branch
    %16 = sbr.rel (%p14) target = $region8
  $region5: #{mobilenetv3_forward.6} parent=0 // loop_body
    %s18 = ssub.s32 %s13, 1
    %s19 = ssub.s32 %s13, 2
    %s20 = sadd.s32 %s13, 1
    %s21 = ssub.s32 %s13, %s20
    %p22 = scmp.eq.s32.totalorder %s21, 0
    %s24 = sadd.s32 %s23, 1
    %s25 = scalar_select %p22, %s23, %s24
    %p28 = pneg %p22
    %p29 = scmp.eq.s32.totalorder %s13, 1
    %p30 = por %p28, %p29
    %p31 = scmp.ne.s32.totalorder %s23, %s26
    %p32 = scmp.eq.s32.totalorder %s13, 0
    %p33 = por %p31, %p32
    %p34 = scmp.ne.s32.totalorder %s23, %s26
    %p35 = scmp.eq.s32.totalorder %s18, 1
    %p36 = por %p34, %p35
    %p37 = scmp.ne.s32.totalorder %s26, %s27
    %p38 = scmp.eq.s32.totalorder %s18, 0
    %p39 = por %p37, %p38
    %p40 = scmp.ne.s32.totalorder %s26, %s27
    %p41 = scmp.eq.s32.totalorder %s19, 1
    %p42 = por %p40, %p41
    %p44 = scmp.ne.s32.totalorder %s27, %s43
    %p45 = scmp.eq.s32.totalorder %s19, 0
    %p46 = por %p44, %p45
    %s48 = sadd.s32 %s47, 1
    %p51 = scmp.eq.s32.totalorder %s13, 1
    %p52 = scmp.ne.s32.totalorder %s47, %s49
    %p53 = scmp.eq.s32.totalorder %s13, 0
    %p54 = por %p52, %p53
    %p55 = scmp.ne.s32.totalorder %s47, %s49
    %p56 = scmp.eq.s32.totalorder %s18, 1
    %p57 = por %p55, %p56
    %p58 = scmp.ne.s32.totalorder %s49, %s50
    %p59 = scmp.eq.s32.totalorder %s18, 0
    %p60 = por %p58, %p59
    %p61 = scmp.ne.s32.totalorder %s49, %s50
    %p62 = scmp.eq.s32.totalorder %s19, 1
    %p63 = por %p61, %p62
    %p65 = scmp.ne.s32.totalorder %s50, %s64
    %p66 = scmp.eq.s32.totalorder %s19, 0
    %p67 = por %p65, %p66
    %s69 = sadd.s32 %s68, 1
    %p72 = scmp.eq.s32.totalorder %s13, 1
    %p73 = scmp.ne.s32.totalorder %s68, %s70
    %p74 = scmp.eq.s32.totalorder %s13, 0
    %p75 = por %p73, %p74
    %p76 = scmp.ne.s32.totalorder %s68, %s70
    %p77 = scmp.eq.s32.totalorder %s18, 1
    %p78 = por %p76, %p77
    %p79 = scmp.ne.s32.totalorder %s70, %s71
    %p80 = scmp.eq.s32.totalorder %s18, 0
    %p81 = por %p79, %p80
    %p82 = scmp.ne.s32.totalorder %s70, %s71
    %p83 = scmp.eq.s32.totalorder %s19, 1
    %p84 = por %p82, %p83
    %p86 = scmp.ne.s32.totalorder %s71, %s85
    %p87 = scmp.eq.s32.totalorder %s19, 0
    %p88 = por %p86, %p87
    %s90 = sadd.s32 %s89, 1
    %p93 = scmp.eq.s32.totalorder %s13, 1
    %p94 = scmp.ne.s32.totalorder %s89, %s91
    %p95 = scmp.eq.s32.totalorder %s13, 0
    %p96 = por %p94, %p95
    %p97 = scmp.ne.s32.totalorder %s89, %s91
    %p98 = scmp.eq.s32.totalorder %s18, 1
    %p99 = por %p97, %p98
    %p100 = scmp.ne.s32.totalorder %s91, %s92
    %p101 = scmp.eq.s32.totalorder %s18, 0
    %p102 = por %p100, %p101
    %p103 = scmp.ne.s32.totalorder %s91, %s92
    %p104 = scmp.eq.s32.totalorder %s19, 1
    %p105 = por %p103, %p104
    %p107 = scmp.ne.s32.totalorder %s92, %s106
    %p108 = scmp.eq.s32.totalorder %s19, 0
    %p109 = por %p107, %p108
    %s111 = sadd.s32 %s110, 1
    %p114 = scmp.eq.s32.totalorder %s13, 1
    %p115 = scmp.ne.s32.totalorder %s110, %s112
    %p116 = scmp.eq.s32.totalorder %s13, 0
    %p117 = por %p115, %p116
    %p118 = scmp.ne.s32.totalorder %s110, %s112
    %p119 = scmp.eq.s32.totalorder %s18, 1
    %p120 = por %p118, %p119
    %p121 = scmp.ne.s32.totalorder %s112, %s113
    %p122 = scmp.eq.s32.totalorder %s18, 0
    %p123 = por %p121, %p122
    %p124 = scmp.ne.s32.totalorder %s112, %s113
    %p125 = scmp.eq.s32.totalorder %s19, 1
    %p126 = por %p124, %p125
    %p128 = scmp.ne.s32.totalorder %s113, %s127
    %p129 = scmp.eq.s32.totalorder %s19, 0
    %p130 = por %p128, %p129
    %s132 = sadd.s32 %s131, 1
    %p135 = scmp.eq.s32.totalorder %s13, 1
    %p136 = scmp.ne.s32.totalorder %s131, %s133
    %p137 = scmp.eq.s32.totalorder %s13, 0
    %p138 = por %p136, %p137
    %p139 = scmp.ne.s32.totalorder %s131, %s133
    %p140 = scmp.eq.s32.totalorder %s18, 1
    %p141 = por %p139, %p140
    %p142 = scmp.ne.s32.totalorder %s133, %s134
    %p143 = scmp.eq.s32.totalorder %s18, 0
    %p144 = por %p142, %p143
    %p145 = scmp.ne.s32.totalorder %s133, %s134
    %p146 = scmp.eq.s32.totalorder %s19, 1
    %p147 = por %p145, %p146
    %p149 = scmp.ne.s32.totalorder %s134, %s148
    %p150 = scmp.eq.s32.totalorder %s19, 0
    %p151 = por %p149, %p150
    %s153 = sadd.s32 %s152, 1
    %p156 = scmp.eq.s32.totalorder %s13, 1
    %p157 = scmp.ne.s32.totalorder %s152, %s154
    %p158 = scmp.eq.s32.totalorder %s13, 0
    %p159 = por %p157, %p158
    %p160 = scmp.ne.s32.totalorder %s152, %s154
    %p161 = scmp.eq.s32.totalorder %s18, 1
    %p162 = por %p160, %p161
    %p163 = scmp.ne.s32.totalorder %s154, %s155
    %p164 = scmp.eq.s32.totalorder %s18, 0
    %p165 = por %p163, %p164
    %p166 = scmp.ne.s32.totalorder %s154, %s155
    %p167 = scmp.eq.s32.totalorder %s19, 1
    %p168 = por %p166, %p167
    %p170 = scmp.ne.s32.totalorder %s155, %s169
    %p171 = scmp.eq.s32.totalorder %s19, 0
    %p172 = por %p170, %p171
    %s173 = ssub.s32 %s13, %s20
    %p174 = scmp.eq.s32.totalorder %s173, 0
    %s176 = sadd.s32 %s175, 1
    %s177 = scalar_select %p174, %s175, %s176
    %p180 = pneg %p174
    %p181 = scmp.eq.s32.totalorder %s13, 1
    %p182 = por %p180, %p181
    %p183 = scmp.ne.s32.totalorder %s175, %s178
    %p184 = scmp.eq.s32.totalorder %s13, 0
    %p185 = por %p183, %p184
    %p186 = scmp.ne.s32.totalorder %s175, %s178
    %p187 = scmp.eq.s32.totalorder %s18, 1
    %p188 = por %p186, %p187
    %p189 = scmp.ne.s32.totalorder %s178, %s179
    %p190 = scmp.eq.s32.totalorder %s18, 0
    %p191 = por %p189, %p190
    %p192 = scmp.ne.s32.totalorder %s178, %s179
    %p193 = scmp.eq.s32.totalorder %s19, 1
    %p194 = por %p192, %p193
    %p196 = scmp.ne.s32.totalorder %s179, %s195
    %p197 = scmp.eq.s32.totalorder %s19, 0
    %p198 = por %p196, %p197
    %p199 = scmp.le.s32.totalorder 1, %s13
    %p200 = scmp.lt.s32.totalorder %s13, 3
    %p201 = pnand %p199, %p200
    %p202 = pneg %p201
    // Predicated region
    $region9: #{mobilenetv3_forward.6} parent=5 // pred_check
      _
    $region10: #{mobilenetv3_forward.6} parent=5 // pred_check_branch
      %204 = sbr.rel (%p201) target = $region12
    $region11: #{mobilenetv3_forward.6} parent=5 // pred_region
      %s205 = ssub.s32 %s13, 1
      // Predicated region
      $region13: #{mobilenetv3_forward.6} parent=11 // pred_check
        %p206 = pneg %p60
      $region14: #{mobilenetv3_forward.6} parent=11 // pred_check_branch
        %208 = sbr.rel (%p206) target = $region16
      $region15: #{mobilenetv3_forward.6} parent=11 // pred_region
        _
      $region16: #{mobilenetv3_forward.6} parent=11 // pred_fallthru
        _
      // Predicated region
      $region17: #{mobilenetv3_forward.6} parent=11 // pred_check
        %p209 = pneg %p81
      $region18: #{mobilenetv3_forward.6} parent=11 // pred_check_branch
        %211 = sbr.rel (%p209) target = $region20
      $region19: #{mobilenetv3_forward.6} parent=11 // pred_region
        _
      $region20: #{mobilenetv3_forward.6} parent=11 // pred_fallthru
        _
      // Predicated region
      $region21: #{mobilenetv3_forward.6} parent=11 // pred_check
        %p212 = pneg %p102
      $region22: #{mobilenetv3_forward.6} parent=11 // pred_check_branch
        %214 = sbr.rel (%p212) target = $region24
      $region23: #{mobilenetv3_forward.6} parent=11 // pred_region
        _
      $region24: #{mobilenetv3_forward.6} parent=11 // pred_fallthru
        _
      // Predicated region
      $region25: #{mobilenetv3_forward.6} parent=11 // pred_check
        %p215 = pneg %p123
      $region26: #{mobilenetv3_forward.6} parent=11 // pred_check_branch
        %217 = sbr.rel (%p215) target = $region28
      $region27: #{mobilenetv3_forward.6} parent=11 // pred_region
        _
      $region28: #{mobilenetv3_forward.6} parent=11 // pred_fallthru
        _
      // Predicated region
      $region29: #{mobilenetv3_forward.6} parent=11 // pred_check
        %p218 = pneg %p144
      $region30: #{mobilenetv3_forward.6} parent=11 // pred_check_branch
        %220 = sbr.rel (%p218) target = $region32
      $region31: #{mobilenetv3_forward.6} parent=11 // pred_region
        _
      $region32: #{mobilenetv3_forward.6} parent=11 // pred_fallthru
        _
      // Predicated region
      $region33: #{mobilenetv3_forward.6} parent=11 // pred_check
        %p221 = pneg %p165
      $region34: #{mobilenetv3_forward.6} parent=11 // pred_check_branch
        %223 = sbr.rel (%p221) target = $region36
      $region35: #{mobilenetv3_forward.6} parent=11 // pred_region
        _
      $region36: #{mobilenetv3_forward.6} parent=11 // pred_fallthru
        _
    $region12: #{mobilenetv3_forward.6} parent=5 // pred_fallthru
      _
    %p224 = scmp.lt.s32.totalorder %s13, 2
    // Predicated region
    $region37: #{mobilenetv3_forward.6} parent=5 // pred_check
      %p225 = pneg %p224
    $region38: #{mobilenetv3_forward.6} parent=5 // pred_check_branch
      %227 = sbr.rel (%p225) target = $region40
    $region39: #{mobilenetv3_forward.6} parent=5 // pred_region
      // Predicated region
      $region41: #{mobilenetv3_forward.6} parent=39 // pred_check
        %p228 = pneg %p33
      $region42: #{mobilenetv3_forward.6} parent=39 // pred_check_branch
        %230 = sbr.rel (%p228) target = $region44
      $region43: #{mobilenetv3_forward.6} parent=39 // pred_region
        %p231 = scmp.lt.s32.totalorder %s13, 1
        %s232 = scalar_select %p231, %s13, 1
        %s233 = smul.addr %s232, 54
        %s234 = smul.addr %s233, 4
        %s235 = scalar_lea.vmem %s0, %s234
      $region44: #{mobilenetv3_forward.6} parent=39 // pred_fallthru
        _
    $region40: #{mobilenetv3_forward.6} parent=5 // pred_fallthru
      _
    %p236 = scmp.le.s32.totalorder 1, %s13
    %p237 = scmp.lt.s32.totalorder %s13, 3
    %p238 = pnand %p236, %p237
    %p239 = pneg %p238
    // Predicated region
    $region45: #{mobilenetv3_forward.6} parent=5 // pred_check
      _
    $region46: #{mobilenetv3_forward.6} parent=5 // pred_check_branch
      %241 = sbr.rel (%p238) target = $region48
    $region47: #{mobilenetv3_forward.6} parent=5 // pred_region
      %s242 = ssub.s32 %s13, 1
      %p243 = scmp.lt.s32.totalorder %s18, 1
      %s244 = scalar_select %p243, %s18, 1
      %s245 = smul.addr %s244, 54
      %s246 = smul.addr %s245, 4
      %s247 = scalar_lea.vmem %s0, %s246
      %p248 = pneg %p39
      %p249 = pneg %p36
      %p250 = pneg %p60
      %p251 = pneg %p57
      %p252 = pneg %p81
      %p253 = pneg %p78
      %p254 = pneg %p102
      %p255 = pneg %p99
      %p256 = pneg %p123
      %p257 = pneg %p120
      %p258 = pneg %p144
      %p259 = pneg %p141
      %p260 = pneg %p165
      %p261 = pneg %p162
      %p262 = pneg %p191
      %p263 = pneg %p188
      %p264 = scmp.lt.s32.totalorder %s18, 1
      %s265 = scalar_select %p264, %s18, 1
      %s266 = smul.addr %s265, 32
      %s267 = smul.addr %s266, 4
      %s268 = scalar_lea.vmem %s7, %s267
      %p269 = scmp.lt.s32.totalorder %s18, 1
      %s270 = scalar_select %p269, %s18, 1
      %s271 = smul.addr %s270, 54
      %s272 = smul.addr %s271, 4
      %s273 = scalar_lea.vmem %s0, %s272
      %p274 = scmp.lt.s32.totalorder %s18, 1
      %s275 = scalar_select %p274, %s18, 1
      %s276 = smul.addr %s275, 32
      %s277 = smul.addr %s276, 4
      %s278 = scalar_lea.vmem %s7, %s277
      %v280 = vld [vmem:[%s273] sm:$0xf]
      %v281 = vld [vmem:[%s273 + $0x4] sm:$0xf]
      %v282 = vld [vmem:[%s273 + $0x8] sm:$0x1]
      %v283 = vld [vmem:[%s273 + $0xc] sm:$0xf]
      %v284 = vld [vmem:[%s273 + $0x10] sm:$0xf]
      %v285 = vld [vmem:[%s273 + $0x14] sm:$0x1]
      %v286 = vld [vmem:[%s273 + $0x18] sm:$0xf]
      %v287 = vld [vmem:[%s273 + $0x1c] sm:$0xf]
      %v288 = vld [vmem:[%s273 + $0x20] sm:$0x1]
      %v289 = vld [vmem:[%s273 + $0x24] sm:$0xf]
      %v290 = vld [vmem:[%s273 + $0x28] sm:$0xf]
      %v291 = vld [vmem:[%s273 + $0x2c] sm:$0x1]
      %v292 = vld [vmem:[%s273 + $0x30] sm:$0xf]
      %v293 = vld [vmem:[%s273 + $0x34] sm:$0xf]
      %v294 = vld [vmem:[%s273 + $0x38] sm:$0x1]
      %v295 = vld [vmem:[%s273 + $0x3c] sm:$0xf]
      %v296 = vld [vmem:[%s273 + $0x40] sm:$0xf]
      %v297 = vld [vmem:[%s273 + $0x44] sm:$0x1]
      %v298 = vld [vmem:[%s273 + $0x48] sm:$0xf]
      %v299 = vld [vmem:[%s273 + $0x4c] sm:$0xf]
      %v300 = vld [vmem:[%s273 + $0x50] sm:$0x1]
      %v301 = vld [vmem:[%s273 + $0x54] sm:$0xf]
      %v302 = vld [vmem:[%s273 + $0x58] sm:$0xf]
      %v303 = vld [vmem:[%s273 + $0x5c] sm:$0x1]
      %v304 = vld [vmem:[%s273 + $0x60] sm:$0xf]
      %v305 = vld [vmem:[%s273 + $0x64] sm:$0xf]
      %v306 = vld [vmem:[%s273 + $0x68] sm:$0x1]
      %v307 = vld [vmem:[%s273 + $0x6c] sm:$0xf]
      %v308 = vld [vmem:[%s273 + $0x70] sm:$0xf]
      %v309 = vld [vmem:[%s273 + $0x74] sm:$0x1]
      %v310 = vld [vmem:[%s273 + $0x78] sm:$0xf]
      %v311 = vld [vmem:[%s273 + $0x7c] sm:$0xf]
      %v312 = vld [vmem:[%s273 + $0x80] sm:$0x1]
      %v313 = vld [vmem:[%s273 + $0x84] sm:$0xf]
      %v314 = vld [vmem:[%s273 + $0x88] sm:$0xf]
      %v315 = vld [vmem:[%s273 + $0x8c] sm:$0x1]
      %v316 = vld [vmem:[%s273 + $0x90] sm:$0xf]
      %v317 = vld [vmem:[%s273 + $0x94] sm:$0xf]
      %v318 = vld [vmem:[%s273 + $0x98] sm:$0x1]
      %v319 = vld [vmem:[%s273 + $0x9c] sm:$0xf]
      %v320 = vld [vmem:[%s273 + $0xa0] sm:$0xf]
      %v321 = vld [vmem:[%s273 + $0xa4] sm:$0x1]
      %v322 = vld [vmem:[%s273 + $0xa8] sm:$0xf]
      %v323 = vld [vmem:[%s273 + $0xac] sm:$0xf]
      %v324 = vld [vmem:[%s273 + $0xb0] sm:$0x1]
      %v325 = vld [vmem:[%s273 + $0xb4] sm:$0xf]
      %v326 = vld [vmem:[%s273 + $0xb8] sm:$0xf]
      %v327 = vld [vmem:[%s273 + $0xbc] sm:$0x1]
      %v328 = vld [vmem:[%s273 + $0xc0] sm:$0xf]
      %v329 = vld [vmem:[%s273 + $0xc4] sm:$0xf]
      %v330 = vld [vmem:[%s273 + $0xc8] sm:$0x1]
      %v331 = vld [vmem:[%s273 + $0xcc] sm:$0xf]
      %v332 = vld [vmem:[%s273 + $0xd0] sm:$0xf]
      %v333 = vld [vmem:[%s273 + $0xd4] sm:$0x1]
      %v334 = vunpack.c.l.bf16 %v280
      %v335 = vunpack.c.l.bf16 %v281
      %v336 = vunpack.c.l.bf16 %v282
      %v337 = vunpack.c.l.bf16 %v283
      %v338 = vunpack.c.l.bf16 %v284
      %v339 = vunpack.c.l.bf16 %v285
      %v340 = vunpack.c.l.bf16 %v286
      %v341 = vunpack.c.l.bf16 %v287
      %v342 = vunpack.c.l.bf16 %v288
      %v343 = vunpack.c.l.bf16 %v289
      %v344 = vunpack.c.l.bf16 %v290
      %v345 = vunpack.c.l.bf16 %v291
      %v346 = vunpack.c.l.bf16 %v292
      %v347 = vunpack.c.l.bf16 %v293
      %v348 = vunpack.c.l.bf16 %v294
      %v349 = vunpack.c.l.bf16 %v295
      %v350 = vunpack.c.l.bf16 %v296
      %v351 = vunpack.c.l.bf16 %v297
      %v352 = vunpack.c.l.bf16 %v298
      %v353 = vunpack.c.l.bf16 %v299
      %v354 = vunpack.c.l.bf16 %v300
      %v355 = vunpack.c.l.bf16 %v301
      %v356 = vunpack.c.l.bf16 %v302
      %v357 = vunpack.c.l.bf16 %v303
      %v358 = vunpack.c.l.bf16 %v304
      %v359 = vunpack.c.l.bf16 %v305
      %v360 = vunpack.c.l.bf16 %v306
      %v361 = vunpack.c.l.bf16 %v307
      %v362 = vunpack.c.l.bf16 %v308
      %v363 = vunpack.c.l.bf16 %v309
      %v364 = vunpack.c.l.bf16 %v310
      %v365 = vunpack.c.l.bf16 %v311
      %v366 = vunpack.c.l.bf16 %v312
      %v367 = vunpack.c.l.bf16 %v313
      %v368 = vunpack.c.l.bf16 %v314
      %v369 = vunpack.c.l.bf16 %v315
      %v370 = vunpack.c.l.bf16 %v316
      %v371 = vunpack.c.l.bf16 %v317
      %v372 = vunpack.c.l.bf16 %v318
      %v373 = vunpack.c.l.bf16 %v319
      %v374 = vunpack.c.l.bf16 %v320
      %v375 = vunpack.c.l.bf16 %v321
      %v376 = vunpack.c.l.bf16 %v322
      %v377 = vunpack.c.l.bf16 %v323
      %v378 = vunpack.c.l.bf16 %v324
      %v379 = vunpack.c.l.bf16 %v325
      %v380 = vunpack.c.l.bf16 %v326
      %v381 = vunpack.c.l.bf16 %v327
      %v382 = vunpack.c.l.bf16 %v328
      %v383 = vunpack.c.l.bf16 %v329
      %v384 = vunpack.c.l.bf16 %v330
      %v385 = vunpack.c.l.bf16 %v331
      %v386 = vunpack.c.l.bf16 %v332
      %v387 = vunpack.c.l.bf16 %v333
      %v388 = vld [vmem:[%s1] sm:$0xff]
      %v389 = vld [vmem:[%s1 + $0x8] sm:$0x1]
      %v390 = vlaneseq
      %v391 = vshrl.u32 %v390, 7
      %v392 = vsub.s32 0, %v391
      %v393 = vrot.slane %v388, %v392
      %v394 = vmul.f32 %v334, %v393
      %v395 = vmul.f32 %v335, %v393
      %v396 = vmul.f32 %v337, %v393
      %v397 = vmul.f32 %v338, %v393
      %v398 = vmul.f32 %v340, %v393
      %v399 = vmul.f32 %v341, %v393
      %v400 = vmul.f32 %v343, %v393
      %v401 = vmul.f32 %v344, %v393
      %v402 = vmul.f32 %v346, %v393
      %v403 = vmul.f32 %v347, %v393
      %v404 = vmul.f32 %v349, %v393
      %v405 = vmul.f32 %v350, %v393
      %v406 = vmul.f32 %v352, %v393
      %v407 = vmul.f32 %v353, %v393
      %v408 = vmul.f32 %v355, %v393
      %v409 = vmul.f32 %v356, %v393
      %v410 = vmul.f32 %v358, %v393
      %v411 = vmul.f32 %v359, %v393
      %v412 = vmul.f32 %v361, %v393
      %v413 = vmul.f32 %v362, %v393
      %v414 = vmul.f32 %v364, %v393
      %v415 = vmul.f32 %v365, %v393
      %v416 = vmul.f32 %v367, %v393
      %v417 = vmul.f32 %v368, %v393
      %v418 = vmul.f32 %v370, %v393
      %v419 = vmul.f32 %v371, %v393
      %v420 = vmul.f32 %v373, %v393
      %v421 = vmul.f32 %v374, %v393
      %v422 = vmul.f32 %v376, %v393
      %v423 = vmul.f32 %v377, %v393
      %v424 = vmul.f32 %v379, %v393
      %v425 = vmul.f32 %v380, %v393
      %v426 = vlaneseq
      %v427 = vshrl.u32 %v426, 7
      %v428 = vsub.s32 1, %v427
      %v429 = vrot.slane %v388, %v428
      %v430 = vmul.f32 %v334, %v429
      %v431 = vmul.f32 %v335, %v429
      %v432 = vmul.f32 %v336, %v429
      %v433 = vmul.f32 %v337, %v429
      %v434 = vmul.f32 %v338, %v429
      %v435 = vmul.f32 %v339, %v429
      %v436 = vmul.f32 %v340, %v429
      %v437 = vmul.f32 %v341, %v429
      %v438 = vmul.f32 %v342, %v429
      %v439 = vmul.f32 %v343, %v429
      %v440 = vmul.f32 %v344, %v429
      %v441 = vmul.f32 %v345, %v429
      %v442 = vmul.f32 %v346, %v429
      %v443 = vmul.f32 %v347, %v429
      %v444 = vmul.f32 %v348, %v429
      %v445 = vmul.f32 %v349, %v429
      %v446 = vmul.f32 %v350, %v429
      %v447 = vmul.f32 %v351, %v429
      %v448 = vmul.f32 %v352, %v429
      %v449 = vmul.f32 %v353, %v429
      %v450 = vmul.f32 %v354, %v429
      %v451 = vmul.f32 %v355, %v429
      %v452 = vmul.f32 %v356, %v429
      %v453 = vmul.f32 %v357, %v429
      %v454 = vmul.f32 %v358, %v429
      %v455 = vmul.f32 %v359, %v429
      %v456 = vmul.f32 %v360, %v429
      %v457 = vmul.f32 %v361, %v429
      %v458 = vmul.f32 %v362, %v429
      %v459 = vmul.f32 %v363, %v429
      %v460 = vmul.f32 %v364, %v429
      %v461 = vmul.f32 %v365, %v429
      %v462 = vmul.f32 %v366, %v429
      %v463 = vmul.f32 %v367, %v429
      %v464 = vmul.f32 %v368, %v429
      %v465 = vmul.f32 %v369, %v429
      %v466 = vmul.f32 %v370, %v429
      %v467 = vmul.f32 %v371, %v429
      %v468 = vmul.f32 %v372, %v429
      %v469 = vmul.f32 %v373, %v429
      %v470 = vmul.f32 %v374, %v429
      %v471 = vmul.f32 %v375, %v429
      %v472 = vmul.f32 %v376, %v429
      %v473 = vmul.f32 %v377, %v429
      %v474 = vmul.f32 %v378, %v429
      %v475 = vmul.f32 %v379, %v429
      %v476 = vmul.f32 %v380, %v429
      %v477 = vmul.f32 %v381, %v429
      %vm526 = vcmask 1046528
      %v527 = vrot.slane %v430, 1
      %v528 = vrot.slane %v431, 1
      %v529 = vsel %vm526, %v527, %v528
      %v530 = vrot.slane %v432, 1
      %v531 = vsel %vm526, %v528, %v530
      %v532 = vrot.slane %v433, 1
      %v533 = vrot.slane %v434, 1
      %v534 = vsel %vm526, %v532, %v533
      %v535 = vrot.slane %v435, 1
      %v536 = vsel %vm526, %v533, %v535
      %v537 = vrot.slane %v436, 1
      %v538 = vrot.slane %v437, 1
      %v539 = vsel %vm526, %v537, %v538
      %v540 = vrot.slane %v438, 1
      %v541 = vsel %vm526, %v538, %v540
      %v542 = vrot.slane %v439, 1
      %v543 = vrot.slane %v440, 1
      %v544 = vsel %vm526, %v542, %v543
      %v545 = vrot.slane %v441, 1
      %v546 = vsel %vm526, %v543, %v545
      %v547 = vrot.slane %v442, 1
      %v548 = vrot.slane %v443, 1
      %v549 = vsel %vm526, %v547, %v548
      %v550 = vrot.slane %v444, 1
      %v551 = vsel %vm526, %v548, %v550
      %v552 = vrot.slane %v445, 1
      %v553 = vrot.slane %v446, 1
      %v554 = vsel %vm526, %v552, %v553
      %v555 = vrot.slane %v447, 1
      %v556 = vsel %vm526, %v553, %v555
      %v557 = vrot.slane %v448, 1
      %v558 = vrot.slane %v449, 1
      %v559 = vsel %vm526, %v557, %v558
      %v560 = vrot.slane %v450, 1
      %v561 = vsel %vm526, %v558, %v560
      %v562 = vrot.slane %v451, 1
      %v563 = vrot.slane %v452, 1
      %v564 = vsel %vm526, %v562, %v563
      %v565 = vrot.slane %v453, 1
      %v566 = vsel %vm526, %v563, %v565
      %v567 = vrot.slane %v454, 1
      %v568 = vrot.slane %v455, 1
      %v569 = vsel %vm526, %v567, %v568
      %v570 = vrot.slane %v456, 1
      %v571 = vsel %vm526, %v568, %v570
      %v572 = vrot.slane %v457, 1
      %v573 = vrot.slane %v458, 1
      %v574 = vsel %vm526, %v572, %v573
      %v575 = vrot.slane %v459, 1
      %v576 = vsel %vm526, %v573, %v575
      %v577 = vrot.slane %v460, 1
      %v578 = vrot.slane %v461, 1
      %v579 = vsel %vm526, %v577, %v578
      %v580 = vrot.slane %v462, 1
      %v581 = vsel %vm526, %v578, %v580
      %v582 = vrot.slane %v463, 1
      %v583 = vrot.slane %v464, 1
      %v584 = vsel %vm526, %v582, %v583
      %v585 = vrot.slane %v465, 1
      %v586 = vsel %vm526, %v583, %v585
      %v587 = vrot.slane %v466, 1
      %v588 = vrot.slane %v467, 1
      %v589 = vsel %vm526, %v587, %v588
      %v590 = vrot.slane %v468, 1
      %v591 = vsel %vm526, %v588, %v590
      %v592 = vrot.slane %v469, 1
      %v593 = vrot.slane %v470, 1
      %v594 = vsel %vm526, %v592, %v593
      %v595 = vrot.slane %v471, 1
      %v596 = vsel %vm526, %v593, %v595
      %v597 = vrot.slane %v472, 1
      %v598 = vrot.slane %v473, 1
      %v599 = vsel %vm526, %v597, %v598
      %v600 = vrot.slane %v474, 1
      %v601 = vsel %vm526, %v598, %v600
      %v602 = vrot.slane %v475, 1
      %v603 = vrot.slane %v476, 1
      %v604 = vsel %vm526, %v602, %v603
      %v605 = vrot.slane %v477, 1
      %v606 = vsel %vm526, %v603, %v605
      %v639 = vadd.f32 %v394, %v529
      %v640 = vadd.f32 %v395, %v531
      %v641 = vadd.f32 %v396, %v534
      %v642 = vadd.f32 %v397, %v536
      %v643 = vadd.f32 %v398, %v539
      %v644 = vadd.f32 %v399, %v541
      %v645 = vadd.f32 %v400, %v544
      %v646 = vadd.f32 %v401, %v546
      %v647 = vadd.f32 %v402, %v549
      %v648 = vadd.f32 %v403, %v551
      %v649 = vadd.f32 %v404, %v554
      %v650 = vadd.f32 %v405, %v556
      %v651 = vadd.f32 %v406, %v559
      %v652 = vadd.f32 %v407, %v561
      %v653 = vadd.f32 %v408, %v564
      %v654 = vadd.f32 %v409, %v566
      %v655 = vadd.f32 %v410, %v569
      %v656 = vadd.f32 %v411, %v571
      %v657 = vadd.f32 %v412, %v574
      %v658 = vadd.f32 %v413, %v576
      %v659 = vadd.f32 %v414, %v579
      %v660 = vadd.f32 %v415, %v581
      %v661 = vadd.f32 %v416, %v584
      %v662 = vadd.f32 %v417, %v586
      %v663 = vadd.f32 %v418, %v589
      %v664 = vadd.f32 %v419, %v591
      %v665 = vadd.f32 %v420, %v594
      %v666 = vadd.f32 %v421, %v596
      %v667 = vadd.f32 %v422, %v599
      %v668 = vadd.f32 %v423, %v601
      %v669 = vadd.f32 %v424, %v604
      %v670 = vadd.f32 %v425, %v606
      %v671 = vlaneseq
      %v672 = vshrl.u32 %v671, 7
      %v673 = vsub.s32 2, %v672
      %v674 = vrot.slane %v388, %v673
      %v675 = vmul.f32 %v334, %v674
      %v676 = vmul.f32 %v335, %v674
      %v677 = vmul.f32 %v336, %v674
      %v678 = vmul.f32 %v337, %v674
      %v679 = vmul.f32 %v338, %v674
      %v680 = vmul.f32 %v339, %v674
      %v681 = vmul.f32 %v340, %v674
      %v682 = vmul.f32 %v341, %v674
      %v683 = vmul.f32 %v342, %v674
      %v684 = vmul.f32 %v343, %v674
      %v685 = vmul.f32 %v344, %v674
      %v686 = vmul.f32 %v345, %v674
      %v687 = vmul.f32 %v346, %v674
      %v688 = vmul.f32 %v347, %v674
      %v689 = vmul.f32 %v348, %v674
      %v690 = vmul.f32 %v349, %v674
      %v691 = vmul.f32 %v350, %v674
      %v692 = vmul.f32 %v351, %v674
      %v693 = vmul.f32 %v352, %v674
      %v694 = vmul.f32 %v353, %v674
      %v695 = vmul.f32 %v354, %v674
      %v696 = vmul.f32 %v355, %v674
      %v697 = vmul.f32 %v356, %v674
      %v698 = vmul.f32 %v357, %v674
      %v699 = vmul.f32 %v358, %v674
      %v700 = vmul.f32 %v359, %v674
      %v701 = vmul.f32 %v360, %v674
      %v702 = vmul.f32 %v361, %v674
      %v703 = vmul.f32 %v362, %v674
      %v704 = vmul.f32 %v363, %v674
      %v705 = vmul.f32 %v364, %v674
      %v706 = vmul.f32 %v365, %v674
      %v707 = vmul.f32 %v366, %v674
      %v708 = vmul.f32 %v367, %v674
      %v709 = vmul.f32 %v368, %v674
      %v710 = vmul.f32 %v369, %v674
      %v711 = vmul.f32 %v370, %v674
      %v712 = vmul.f32 %v371, %v674
      %v713 = vmul.f32 %v372, %v674
      %v714 = vmul.f32 %v373, %v674
      %v715 = vmul.f32 %v374, %v674
      %v716 = vmul.f32 %v375, %v674
      %v717 = vmul.f32 %v376, %v674
      %v718 = vmul.f32 %v377, %v674
      %v719 = vmul.f32 %v378, %v674
      %v720 = vmul.f32 %v379, %v674
      %v721 = vmul.f32 %v380, %v674
      %v722 = vmul.f32 %v381, %v674
      %vm771 = vcmask 1045504
      %v772 = vrot.slane %v675, 2
      %v773 = vrot.slane %v676, 2
      %v774 = vsel %vm771, %v772, %v773
      %v775 = vrot.slane %v677, 2
      %v776 = vsel %vm771, %v773, %v775
      %v777 = vrot.slane %v678, 2
      %v778 = vrot.slane %v679, 2
      %v779 = vsel %vm771, %v777, %v778
      %v780 = vrot.slane %v680, 2
      %v781 = vsel %vm771, %v778, %v780
      %v782 = vrot.slane %v681, 2
      %v783 = vrot.slane %v682, 2
      %v784 = vsel %vm771, %v782, %v783
      %v785 = vrot.slane %v683, 2
      %v786 = vsel %vm771, %v783, %v785
      %v787 = vrot.slane %v684, 2
      %v788 = vrot.slane %v685, 2
      %v789 = vsel %vm771, %v787, %v788
      %v790 = vrot.slane %v686, 2
      %v791 = vsel %vm771, %v788, %v790
      %v792 = vrot.slane %v687, 2
      %v793 = vrot.slane %v688, 2
      %v794 = vsel %vm771, %v792, %v793
      %v795 = vrot.slane %v689, 2
      %v796 = vsel %vm771, %v793, %v795
      %v797 = vrot.slane %v690, 2
      %v798 = vrot.slane %v691, 2
      %v799 = vsel %vm771, %v797, %v798
      %v800 = vrot.slane %v692, 2
      %v801 = vsel %vm771, %v798, %v800
      %v802 = vrot.slane %v693, 2
      %v803 = vrot.slane %v694, 2
      %v804 = vsel %vm771, %v802, %v803
      %v805 = vrot.slane %v695, 2
      %v806 = vsel %vm771, %v803, %v805
      %v807 = vrot.slane %v696, 2
      %v808 = vrot.slane %v697, 2
      %v809 = vsel %vm771, %v807, %v808
      %v810 = vrot.slane %v698, 2
      %v811 = vsel %vm771, %v808, %v810
      %v812 = vrot.slane %v699, 2
      %v813 = vrot.slane %v700, 2
      %v814 = vsel %vm771, %v812, %v813
      %v815 = vrot.slane %v701, 2
      %v816 = vsel %vm771, %v813, %v815
      %v817 = vrot.slane %v702, 2
      %v818 = vrot.slane %v703, 2
      %v819 = vsel %vm771, %v817, %v818
      %v820 = vrot.slane %v704, 2
      %v821 = vsel %vm771, %v818, %v820
      %v822 = vrot.slane %v705, 2
      %v823 = vrot.slane %v706, 2
      %v824 = vsel %vm771, %v822, %v823
      %v825 = vrot.slane %v707, 2
      %v826 = vsel %vm771, %v823, %v825
      %v827 = vrot.slane %v708, 2
      %v828 = vrot.slane %v709, 2
      %v829 = vsel %vm771, %v827, %v828
      %v830 = vrot.slane %v710, 2
      %v831 = vsel %vm771, %v828, %v830
      %v832 = vrot.slane %v711, 2
      %v833 = vrot.slane %v712, 2
      %v834 = vsel %vm771, %v832, %v833
      %v835 = vrot.slane %v713, 2
      %v836 = vsel %vm771, %v833, %v835
      %v837 = vrot.slane %v714, 2
      %v838 = vrot.slane %v715, 2
      %v839 = vsel %vm771, %v837, %v838
      %v840 = vrot.slane %v716, 2
      %v841 = vsel %vm771, %v838, %v840
      %v842 = vrot.slane %v717, 2
      %v843 = vrot.slane %v718, 2
      %v844 = vsel %vm771, %v842, %v843
      %v845 = vrot.slane %v719, 2
      %v846 = vsel %vm771, %v843, %v845
      %v847 = vrot.slane %v720, 2
      %v848 = vrot.slane %v721, 2
      %v849 = vsel %vm771, %v847, %v848
      %v850 = vrot.slane %v722, 2
      %v851 = vsel %vm771, %v848, %v850
      %v884 = vadd.f32 %v639, %v774
      %v885 = vadd.f32 %v640, %v776
      %v886 = vadd.f32 %v641, %v779
      %v887 = vadd.f32 %v642, %v781
      %v888 = vadd.f32 %v643, %v784
      %v889 = vadd.f32 %v644, %v786
      %v890 = vadd.f32 %v645, %v789
      %v891 = vadd.f32 %v646, %v791
      %v892 = vadd.f32 %v647, %v794
      %v893 = vadd.f32 %v648, %v796
      %v894 = vadd.f32 %v649, %v799
      %v895 = vadd.f32 %v650, %v801
      %v896 = vadd.f32 %v651, %v804
      %v897 = vadd.f32 %v652, %v806
      %v898 = vadd.f32 %v653, %v809
      %v899 = vadd.f32 %v654, %v811
      %v900 = vadd.f32 %v655, %v814
      %v901 = vadd.f32 %v656, %v816
      %v902 = vadd.f32 %v657, %v819
      %v903 = vadd.f32 %v658, %v821
      %v904 = vadd.f32 %v659, %v824
      %v905 = vadd.f32 %v660, %v826
      %v906 = vadd.f32 %v661, %v829
      %v907 = vadd.f32 %v662, %v831
      %v908 = vadd.f32 %v663, %v834
      %v909 = vadd.f32 %v664, %v836
      %v910 = vadd.f32 %v665, %v839
      %v911 = vadd.f32 %v666, %v841
      %v912 = vadd.f32 %v667, %v844
      %v913 = vadd.f32 %v668, %v846
      %v914 = vadd.f32 %v669, %v849
      %v915 = vadd.f32 %v670, %v851
      %v916 = vlaneseq
      %v917 = vshrl.u32 %v916, 7
      %v918 = vsub.s32 3, %v917
      %v919 = vrot.slane %v388, %v918
      %v920 = vmul.f32 %v337, %v919
      %v921 = vmul.f32 %v338, %v919
      %v922 = vmul.f32 %v340, %v919
      %v923 = vmul.f32 %v341, %v919
      %v924 = vmul.f32 %v343, %v919
      %v925 = vmul.f32 %v344, %v919
      %v926 = vmul.f32 %v346, %v919
      %v927 = vmul.f32 %v347, %v919
      %v928 = vmul.f32 %v349, %v919
      %v929 = vmul.f32 %v350, %v919
      %v930 = vmul.f32 %v352, %v919
      %v931 = vmul.f32 %v353, %v919
      %v932 = vmul.f32 %v355, %v919
      %v933 = vmul.f32 %v356, %v919
      %v934 = vmul.f32 %v358, %v919
      %v935 = vmul.f32 %v359, %v919
      %v936 = vmul.f32 %v361, %v919
      %v937 = vmul.f32 %v362, %v919
      %v938 = vmul.f32 %v364, %v919
      %v939 = vmul.f32 %v365, %v919
      %v940 = vmul.f32 %v367, %v919
      %v941 = vmul.f32 %v368, %v919
      %v942 = vmul.f32 %v370, %v919
      %v943 = vmul.f32 %v371, %v919
      %v944 = vmul.f32 %v373, %v919
      %v945 = vmul.f32 %v374, %v919
      %v946 = vmul.f32 %v376, %v919
      %v947 = vmul.f32 %v377, %v919
      %v948 = vmul.f32 %v379, %v919
      %v949 = vmul.f32 %v380, %v919
      %v950 = vmul.f32 %v382, %v919
      %v951 = vmul.f32 %v383, %v919
      %v952 = vadd.f32 %v884, %v920
      %v953 = vadd.f32 %v885, %v921
      %v954 = vadd.f32 %v886, %v922
      %v955 = vadd.f32 %v887, %v923
      %v956 = vadd.f32 %v888, %v924
      %v957 = vadd.f32 %v889, %v925
      %v958 = vadd.f32 %v890, %v926
      %v959 = vadd.f32 %v891, %v927
      %v960 = vadd.f32 %v892, %v928
      %v961 = vadd.f32 %v893, %v929
      %v962 = vadd.f32 %v894, %v930
      %v963 = vadd.f32 %v895, %v931
      %v964 = vadd.f32 %v896, %v932
      %v965 = vadd.f32 %v897, %v933
      %v966 = vadd.f32 %v898, %v934
      %v967 = vadd.f32 %v899, %v935
      %v968 = vadd.f32 %v900, %v936
      %v969 = vadd.f32 %v901, %v937
      %v970 = vadd.f32 %v902, %v938
      %v971 = vadd.f32 %v903, %v939
      %v972 = vadd.f32 %v904, %v940
      %v973 = vadd.f32 %v905, %v941
      %v974 = vadd.f32 %v906, %v942
      %v975 = vadd.f32 %v907, %v943
      %v976 = vadd.f32 %v908, %v944
      %v977 = vadd.f32 %v909, %v945
      %v978 = vadd.f32 %v910, %v946
      %v979 = vadd.f32 %v911, %v947
      %v980 = vadd.f32 %v912, %v948
      %v981 = vadd.f32 %v913, %v949
      %v982 = vadd.f32 %v914, %v950
      %v983 = vadd.f32 %v915, %v951
      %v984 = vlaneseq
      %v985 = vshrl.u32 %v984, 7
      %v986 = vsub.s32 4, %v985
      %v987 = vrot.slane %v388, %v986
      %v988 = vmul.f32 %v337, %v987
      %v989 = vmul.f32 %v338, %v987
      %v990 = vmul.f32 %v339, %v987
      %v991 = vmul.f32 %v340, %v987
      %v992 = vmul.f32 %v341, %v987
      %v993 = vmul.f32 %v342, %v987
      %v994 = vmul.f32 %v343, %v987
      %v995 = vmul.f32 %v344, %v987
      %v996 = vmul.f32 %v345, %v987
      %v997 = vmul.f32 %v346, %v987
      %v998 = vmul.f32 %v347, %v987
      %v999 = vmul.f32 %v348, %v987
      %v1000 = vmul.f32 %v349, %v987
      %v1001 = vmul.f32 %v350, %v987
      %v1002 = vmul.f32 %v351, %v987
      %v1003 = vmul.f32 %v352, %v987
      %v1004 = vmul.f32 %v353, %v987
      %v1005 = vmul.f32 %v354, %v987
      %v1006 = vmul.f32 %v355, %v987
      %v1007 = vmul.f32 %v356, %v987
      %v1008 = vmul.f32 %v357, %v987
      %v1009 = vmul.f32 %v358, %v987
      %v1010 = vmul.f32 %v359, %v987
      %v1011 = vmul.f32 %v360, %v987
      %v1012 = vmul.f32 %v361, %v987
      %v1013 = vmul.f32 %v362, %v987
      %v1014 = vmul.f32 %v363, %v987
      %v1015 = vmul.f32 %v364, %v987
      %v1016 = vmul.f32 %v365, %v987
      %v1017 = vmul.f32 %v366, %v987
      %v1018 = vmul.f32 %v367, %v987
      %v1019 = vmul.f32 %v368, %v987
      %v1020 = vmul.f32 %v369, %v987
      %v1021 = vmul.f32 %v370, %v987
      %v1022 = vmul.f32 %v371, %v987
      %v1023 = vmul.f32 %v372, %v987
      %v1024 = vmul.f32 %v373, %v987
      %v1025 = vmul.f32 %v374, %v987
      %v1026 = vmul.f32 %v375, %v987
      %v1027 = vmul.f32 %v376, %v987
      %v1028 = vmul.f32 %v377, %v987
      %v1029 = vmul.f32 %v378, %v987
      %v1030 = vmul.f32 %v379, %v987
      %v1031 = vmul.f32 %v380, %v987
      %v1032 = vmul.f32 %v381, %v987
      %v1033 = vmul.f32 %v382, %v987
      %v1034 = vmul.f32 %v383, %v987
      %v1035 = vmul.f32 %v384, %v987
      %v1084 = vrot.slane %v988, 1
      %v1085 = vrot.slane %v989, 1
      %v1086 = vsel %vm526, %v1084, %v1085
      %v1087 = vrot.slane %v990, 1
      %v1088 = vsel %vm526, %v1085, %v1087
      %v1089 = vrot.slane %v991, 1
      %v1090 = vrot.slane %v992, 1
      %v1091 = vsel %vm526, %v1089, %v1090
      %v1092 = vrot.slane %v993, 1
      %v1093 = vsel %vm526, %v1090, %v1092
      %v1094 = vrot.slane %v994, 1
      %v1095 = vrot.slane %v995, 1
      %v1096 = vsel %vm526, %v1094, %v1095
      %v1097 = vrot.slane %v996, 1
      %v1098 = vsel %vm526, %v1095, %v1097
      %v1099 = vrot.slane %v997, 1
      %v1100 = vrot.slane %v998, 1
      %v1101 = vsel %vm526, %v1099, %v1100
      %v1102 = vrot.slane %v999, 1
      %v1103 = vsel %vm526, %v1100, %v1102
      %v1104 = vrot.slane %v1000, 1
      %v1105 = vrot.slane %v1001, 1
      %v1106 = vsel %vm526, %v1104, %v1105
      %v1107 = vrot.slane %v1002, 1
      %v1108 = vsel %vm526, %v1105, %v1107
      %v1109 = vrot.slane %v1003, 1
      %v1110 = vrot.slane %v1004, 1
      %v1111 = vsel %vm526, %v1109, %v1110
      %v1112 = vrot.slane %v1005, 1
      %v1113 = vsel %vm526, %v1110, %v1112
      %v1114 = vrot.slane %v1006, 1
      %v1115 = vrot.slane %v1007, 1
      %v1116 = vsel %vm526, %v1114, %v1115
      %v1117 = vrot.slane %v1008, 1
      %v1118 = vsel %vm526, %v1115, %v1117
      %v1119 = vrot.slane %v1009, 1
      %v1120 = vrot.slane %v1010, 1
      %v1121 = vsel %vm526, %v1119, %v1120
      %v1122 = vrot.slane %v1011, 1
      %v1123 = vsel %vm526, %v1120, %v1122
      %v1124 = vrot.slane %v1012, 1
      %v1125 = vrot.slane %v1013, 1
      %v1126 = vsel %vm526, %v1124, %v1125
      %v1127 = vrot.slane %v1014, 1
      %v1128 = vsel %vm526, %v1125, %v1127
      %v1129 = vrot.slane %v1015, 1
      %v1130 = vrot.slane %v1016, 1
      %v1131 = vsel %vm526, %v1129, %v1130
      %v1132 = vrot.slane %v1017, 1
      %v1133 = vsel %vm526, %v1130, %v1132
      %v1134 = vrot.slane %v1018, 1
      %v1135 = vrot.slane %v1019, 1
      %v1136 = vsel %vm526, %v1134, %v1135
      %v1137 = vrot.slane %v1020, 1
      %v1138 = vsel %vm526, %v1135, %v1137
      %v1139 = vrot.slane %v1021, 1
      %v1140 = vrot.slane %v1022, 1
      %v1141 = vsel %vm526, %v1139, %v1140
      %v1142 = vrot.slane %v1023, 1
      %v1143 = vsel %vm526, %v1140, %v1142
      %v1144 = vrot.slane %v1024, 1
      %v1145 = vrot.slane %v1025, 1
      %v1146 = vsel %vm526, %v1144, %v1145
      %v1147 = vrot.slane %v1026, 1
      %v1148 = vsel %vm526, %v1145, %v1147
      %v1149 = vrot.slane %v1027, 1
      %v1150 = vrot.slane %v1028, 1
      %v1151 = vsel %vm526, %v1149, %v1150
      %v1152 = vrot.slane %v1029, 1
      %v1153 = vsel %vm526, %v1150, %v1152
      %v1154 = vrot.slane %v1030, 1
      %v1155 = vrot.slane %v1031, 1
      %v1156 = vsel %vm526, %v1154, %v1155
      %v1157 = vrot.slane %v1032, 1
      %v1158 = vsel %vm526, %v1155, %v1157
      %v1159 = vrot.slane %v1033, 1
      %v1160 = vrot.slane %v1034, 1
      %v1161 = vsel %vm526, %v1159, %v1160
      %v1162 = vrot.slane %v1035, 1
      %v1163 = vsel %vm526, %v1160, %v1162
      %v1196 = vadd.f32 %v952, %v1086
      %v1197 = vadd.f32 %v953, %v1088
      %v1198 = vadd.f32 %v954, %v1091
      %v1199 = vadd.f32 %v955, %v1093
      %v1200 = vadd.f32 %v956, %v1096
      %v1201 = vadd.f32 %v957, %v1098
      %v1202 = vadd.f32 %v958, %v1101
      %v1203 = vadd.f32 %v959, %v1103
      %v1204 = vadd.f32 %v960, %v1106
      %v1205 = vadd.f32 %v961, %v1108
      %v1206 = vadd.f32 %v962, %v1111
      %v1207 = vadd.f32 %v963, %v1113
      %v1208 = vadd.f32 %v964, %v1116
      %v1209 = vadd.f32 %v965, %v1118
      %v1210 = vadd.f32 %v966, %v1121
      %v1211 = vadd.f32 %v967, %v1123
      %v1212 = vadd.f32 %v968, %v1126
      %v1213 = vadd.f32 %v969, %v1128
      %v1214 = vadd.f32 %v970, %v1131
      %v1215 = vadd.f32 %v971, %v1133
      %v1216 = vadd.f32 %v972, %v1136
      %v1217 = vadd.f32 %v973, %v1138
      %v1218 = vadd.f32 %v974, %v1141
      %v1219 = vadd.f32 %v975, %v1143
      %v1220 = vadd.f32 %v976, %v1146
      %v1221 = vadd.f32 %v977, %v1148
      %v1222 = vadd.f32 %v978, %v1151
      %v1223 = vadd.f32 %v979, %v1153
      %v1224 = vadd.f32 %v980, %v1156
      %v1225 = vadd.f32 %v981, %v1158
      %v1226 = vadd.f32 %v982, %v1161
      %v1227 = vadd.f32 %v983, %v1163
      %v1228 = vlaneseq
      %v1229 = vshrl.u32 %v1228, 7
      %v1230 = vsub.s32 5, %v1229
      %v1231 = vrot.slane %v388, %v1230
      %v1232 = vmul.f32 %v337, %v1231
      %v1233 = vmul.f32 %v338, %v1231
      %v1234 = vmul.f32 %v339, %v1231
      %v1235 = vmul.f32 %v340, %v1231
      %v1236 = vmul.f32 %v341, %v1231
      %v1237 = vmul.f32 %v342, %v1231
      %v1238 = vmul.f32 %v343, %v1231
      %v1239 = vmul.f32 %v344, %v1231
      %v1240 = vmul.f32 %v345, %v1231
      %v1241 = vmul.f32 %v346, %v1231
      %v1242 = vmul.f32 %v347, %v1231
      %v1243 = vmul.f32 %v348, %v1231
      %v1244 = vmul.f32 %v349, %v1231
      %v1245 = vmul.f32 %v350, %v1231
      %v1246 = vmul.f32 %v351, %v1231
      %v1247 = vmul.f32 %v352, %v1231
      %v1248 = vmul.f32 %v353, %v1231
      %v1249 = vmul.f32 %v354, %v1231
      %v1250 = vmul.f32 %v355, %v1231
      %v1251 = vmul.f32 %v356, %v1231
      %v1252 = vmul.f32 %v357, %v1231
      %v1253 = vmul.f32 %v358, %v1231
      %v1254 = vmul.f32 %v359, %v1231
      %v1255 = vmul.f32 %v360, %v1231
      %v1256 = vmul.f32 %v361, %v1231
      %v1257 = vmul.f32 %v362, %v1231
      %v1258 = vmul.f32 %v363, %v1231
      %v1259 = vmul.f32 %v364, %v1231
      %v1260 = vmul.f32 %v365, %v1231
      %v1261 = vmul.f32 %v366, %v1231
      %v1262 = vmul.f32 %v367, %v1231
      %v1263 = vmul.f32 %v368, %v1231
      %v1264 = vmul.f32 %v369, %v1231
      %v1265 = vmul.f32 %v370, %v1231
      %v1266 = vmul.f32 %v371, %v1231
      %v1267 = vmul.f32 %v372, %v1231
      %v1268 = vmul.f32 %v373, %v1231
      %v1269 = vmul.f32 %v374, %v1231
      %v1270 = vmul.f32 %v375, %v1231
      %v1271 = vmul.f32 %v376, %v1231
      %v1272 = vmul.f32 %v377, %v1231
      %v1273 = vmul.f32 %v378, %v1231
      %v1274 = vmul.f32 %v379, %v1231
      %v1275 = vmul.f32 %v380, %v1231
      %v1276 = vmul.f32 %v381, %v1231
      %v1277 = vmul.f32 %v382, %v1231
      %v1278 = vmul.f32 %v383, %v1231
      %v1279 = vmul.f32 %v384, %v1231
      %v1328 = vrot.slane %v1232, 2
      %v1329 = vrot.slane %v1233, 2
      %v1330 = vsel %vm771, %v1328, %v1329
      %v1331 = vrot.slane %v1234, 2
      %v1332 = vsel %vm771, %v1329, %v1331
      %v1333 = vrot.slane %v1235, 2
      %v1334 = vrot.slane %v1236, 2
      %v1335 = vsel %vm771, %v1333, %v1334
      %v1336 = vrot.slane %v1237, 2
      %v1337 = vsel %vm771, %v1334, %v1336
      %v1338 = vrot.slane %v1238, 2
      %v1339 = vrot.slane %v1239, 2
      %v1340 = vsel %vm771, %v1338, %v1339
      %v1341 = vrot.slane %v1240, 2
      %v1342 = vsel %vm771, %v1339, %v1341
      %v1343 = vrot.slane %v1241, 2
      %v1344 = vrot.slane %v1242, 2
      %v1345 = vsel %vm771, %v1343, %v1344
      %v1346 = vrot.slane %v1243, 2
      %v1347 = vsel %vm771, %v1344, %v1346
      %v1348 = vrot.slane %v1244, 2
      %v1349 = vrot.slane %v1245, 2
      %v1350 = vsel %vm771, %v1348, %v1349
      %v1351 = vrot.slane %v1246, 2
      %v1352 = vsel %vm771, %v1349, %v1351
      %v1353 = vrot.slane %v1247, 2
      %v1354 = vrot.slane %v1248, 2
      %v1355 = vsel %vm771, %v1353, %v1354
      %v1356 = vrot.slane %v1249, 2
      %v1357 = vsel %vm771, %v1354, %v1356
      %v1358 = vrot.slane %v1250, 2
      %v1359 = vrot.slane %v1251, 2
      %v1360 = vsel %vm771, %v1358, %v1359
      %v1361 = vrot.slane %v1252, 2
      %v1362 = vsel %vm771, %v1359, %v1361
      %v1363 = vrot.slane %v1253, 2
      %v1364 = vrot.slane %v1254, 2
      %v1365 = vsel %vm771, %v1363, %v1364
      %v1366 = vrot.slane %v1255, 2
      %v1367 = vsel %vm771, %v1364, %v1366
      %v1368 = vrot.slane %v1256, 2
      %v1369 = vrot.slane %v1257, 2
      %v1370 = vsel %vm771, %v1368, %v1369
      %v1371 = vrot.slane %v1258, 2
      %v1372 = vsel %vm771, %v1369, %v1371
      %v1373 = vrot.slane %v1259, 2
      %v1374 = vrot.slane %v1260, 2
      %v1375 = vsel %vm771, %v1373, %v1374
      %v1376 = vrot.slane %v1261, 2
      %v1377 = vsel %vm771, %v1374, %v1376
      %v1378 = vrot.slane %v1262, 2
      %v1379 = vrot.slane %v1263, 2
      %v1380 = vsel %vm771, %v1378, %v1379
      %v1381 = vrot.slane %v1264, 2
      %v1382 = vsel %vm771, %v1379, %v1381
      %v1383 = vrot.slane %v1265, 2
      %v1384 = vrot.slane %v1266, 2
      %v1385 = vsel %vm771, %v1383, %v1384
      %v1386 = vrot.slane %v1267, 2
      %v1387 = vsel %vm771, %v1384, %v1386
      %v1388 = vrot.slane %v1268, 2
      %v1389 = vrot.slane %v1269, 2
      %v1390 = vsel %vm771, %v1388, %v1389
      %v1391 = vrot.slane %v1270, 2
      %v1392 = vsel %vm771, %v1389, %v1391
      %v1393 = vrot.slane %v1271, 2
      %v1394 = vrot.slane %v1272, 2
      %v1395 = vsel %vm771, %v1393, %v1394
      %v1396 = vrot.slane %v1273, 2
      %v1397 = vsel %vm771, %v1394, %v1396
      %v1398 = vrot.slane %v1274, 2
      %v1399 = vrot.slane %v1275, 2
      %v1400 = vsel %vm771, %v1398, %v1399
      %v1401 = vrot.slane %v1276, 2
      %v1402 = vsel %vm771, %v1399, %v1401
      %v1403 = vrot.slane %v1277, 2
      %v1404 = vrot.slane %v1278, 2
      %v1405 = vsel %vm771, %v1403, %v1404
      %v1406 = vrot.slane %v1279, 2
      %v1407 = vsel %vm771, %v1404, %v1406
      %v1440 = vadd.f32 %v1196, %v1330
      %v1441 = vadd.f32 %v1197, %v1332
      %v1442 = vadd.f32 %v1198, %v1335
      %v1443 = vadd.f32 %v1199, %v1337
      %v1444 = vadd.f32 %v1200, %v1340
      %v1445 = vadd.f32 %v1201, %v1342
      %v1446 = vadd.f32 %v1202, %v1345
      %v1447 = vadd.f32 %v1203, %v1347
      %v1448 = vadd.f32 %v1204, %v1350
      %v1449 = vadd.f32 %v1205, %v1352
      %v1450 = vadd.f32 %v1206, %v1355
      %v1451 = vadd.f32 %v1207, %v1357
      %v1452 = vadd.f32 %v1208, %v1360
      %v1453 = vadd.f32 %v1209, %v1362
      %v1454 = vadd.f32 %v1210, %v1365
      %v1455 = vadd.f32 %v1211, %v1367
      %v1456 = vadd.f32 %v1212, %v1370
      %v1457 = vadd.f32 %v1213, %v1372
      %v1458 = vadd.f32 %v1214, %v1375
      %v1459 = vadd.f32 %v1215, %v1377
      %v1460 = vadd.f32 %v1216, %v1380
      %v1461 = vadd.f32 %v1217, %v1382
      %v1462 = vadd.f32 %v1218, %v1385
      %v1463 = vadd.f32 %v1219, %v1387
      %v1464 = vadd.f32 %v1220, %v1390
      %v1465 = vadd.f32 %v1221, %v1392
      %v1466 = vadd.f32 %v1222, %v1395
      %v1467 = vadd.f32 %v1223, %v1397
      %v1468 = vadd.f32 %v1224, %v1400
      %v1469 = vadd.f32 %v1225, %v1402
      %v1470 = vadd.f32 %v1226, %v1405
      %v1471 = vadd.f32 %v1227, %v1407
      %v1472 = vlaneseq
      %v1473 = vshrl.u32 %v1472, 7
      %v1474 = vsub.s32 6, %v1473
      %v1475 = vrot.slane %v388, %v1474
      %v1476 = vmul.f32 %v340, %v1475
      %v1477 = vmul.f32 %v341, %v1475
      %v1478 = vmul.f32 %v343, %v1475
      %v1479 = vmul.f32 %v344, %v1475
      %v1480 = vmul.f32 %v346, %v1475
      %v1481 = vmul.f32 %v347, %v1475
      %v1482 = vmul.f32 %v349, %v1475
      %v1483 = vmul.f32 %v350, %v1475
      %v1484 = vmul.f32 %v352, %v1475
      %v1485 = vmul.f32 %v353, %v1475
      %v1486 = vmul.f32 %v355, %v1475
      %v1487 = vmul.f32 %v356, %v1475
      %v1488 = vmul.f32 %v358, %v1475
      %v1489 = vmul.f32 %v359, %v1475
      %v1490 = vmul.f32 %v361, %v1475
      %v1491 = vmul.f32 %v362, %v1475
      %v1492 = vmul.f32 %v364, %v1475
      %v1493 = vmul.f32 %v365, %v1475
      %v1494 = vmul.f32 %v367, %v1475
      %v1495 = vmul.f32 %v368, %v1475
      %v1496 = vmul.f32 %v370, %v1475
      %v1497 = vmul.f32 %v371, %v1475
      %v1498 = vmul.f32 %v373, %v1475
      %v1499 = vmul.f32 %v374, %v1475
      %v1500 = vmul.f32 %v376, %v1475
      %v1501 = vmul.f32 %v377, %v1475
      %v1502 = vmul.f32 %v379, %v1475
      %v1503 = vmul.f32 %v380, %v1475
      %v1504 = vmul.f32 %v382, %v1475
      %v1505 = vmul.f32 %v383, %v1475
      %v1506 = vmul.f32 %v385, %v1475
      %v1507 = vmul.f32 %v386, %v1475
      %v1508 = vadd.f32 %v1440, %v1476
      %v1509 = vadd.f32 %v1441, %v1477
      %v1510 = vadd.f32 %v1442, %v1478
      %v1511 = vadd.f32 %v1443, %v1479
      %v1512 = vadd.f32 %v1444, %v1480
      %v1513 = vadd.f32 %v1445, %v1481
      %v1514 = vadd.f32 %v1446, %v1482
      %v1515 = vadd.f32 %v1447, %v1483
      %v1516 = vadd.f32 %v1448, %v1484
      %v1517 = vadd.f32 %v1449, %v1485
      %v1518 = vadd.f32 %v1450, %v1486
      %v1519 = vadd.f32 %v1451, %v1487
      %v1520 = vadd.f32 %v1452, %v1488
      %v1521 = vadd.f32 %v1453, %v1489
      %v1522 = vadd.f32 %v1454, %v1490
      %v1523 = vadd.f32 %v1455, %v1491
      %v1524 = vadd.f32 %v1456, %v1492
      %v1525 = vadd.f32 %v1457, %v1493
      %v1526 = vadd.f32 %v1458, %v1494
      %v1527 = vadd.f32 %v1459, %v1495
      %v1528 = vadd.f32 %v1460, %v1496
      %v1529 = vadd.f32 %v1461, %v1497
      %v1530 = vadd.f32 %v1462, %v1498
      %v1531 = vadd.f32 %v1463, %v1499
      %v1532 = vadd.f32 %v1464, %v1500
      %v1533 = vadd.f32 %v1465, %v1501
      %v1534 = vadd.f32 %v1466, %v1502
      %v1535 = vadd.f32 %v1467, %v1503
      %v1536 = vadd.f32 %v1468, %v1504
      %v1537 = vadd.f32 %v1469, %v1505
      %v1538 = vadd.f32 %v1470, %v1506
      %v1539 = vadd.f32 %v1471, %v1507
      %v1540 = vlaneseq
      %v1541 = vshrl.u32 %v1540, 7
      %v1542 = vsub.s32 7, %v1541
      %v1543 = vrot.slane %v388, %v1542
      %v1544 = vmul.f32 %v340, %v1543
      %v1545 = vmul.f32 %v341, %v1543
      %v1546 = vmul.f32 %v342, %v1543
      %v1547 = vmul.f32 %v343, %v1543
      %v1548 = vmul.f32 %v344, %v1543
      %v1549 = vmul.f32 %v345, %v1543
      %v1550 = vmul.f32 %v346, %v1543
      %v1551 = vmul.f32 %v347, %v1543
      %v1552 = vmul.f32 %v348, %v1543
      %v1553 = vmul.f32 %v349, %v1543
      %v1554 = vmul.f32 %v350, %v1543
      %v1555 = vmul.f32 %v351, %v1543
      %v1556 = vmul.f32 %v352, %v1543
      %v1557 = vmul.f32 %v353, %v1543
      %v1558 = vmul.f32 %v354, %v1543
      %v1559 = vmul.f32 %v355, %v1543
      %v1560 = vmul.f32 %v356, %v1543
      %v1561 = vmul.f32 %v357, %v1543
      %v1562 = vmul.f32 %v358, %v1543
      %v1563 = vmul.f32 %v359, %v1543
      %v1564 = vmul.f32 %v360, %v1543
      %v1565 = vmul.f32 %v361, %v1543
      %v1566 = vmul.f32 %v362, %v1543
      %v1567 = vmul.f32 %v363, %v1543
      %v1568 = vmul.f32 %v364, %v1543
      %v1569 = vmul.f32 %v365, %v1543
      %v1570 = vmul.f32 %v366, %v1543
      %v1571 = vmul.f32 %v367, %v1543
      %v1572 = vmul.f32 %v368, %v1543
      %v1573 = vmul.f32 %v369, %v1543
      %v1574 = vmul.f32 %v370, %v1543
      %v1575 = vmul.f32 %v371, %v1543
      %v1576 = vmul.f32 %v372, %v1543
      %v1577 = vmul.f32 %v373, %v1543
      %v1578 = vmul.f32 %v374, %v1543
      %v1579 = vmul.f32 %v375, %v1543
      %v1580 = vmul.f32 %v376, %v1543
      %v1581 = vmul.f32 %v377, %v1543
      %v1582 = vmul.f32 %v378, %v1543
      %v1583 = vmul.f32 %v379, %v1543
      %v1584 = vmul.f32 %v380, %v1543
      %v1585 = vmul.f32 %v381, %v1543
      %v1586 = vmul.f32 %v382, %v1543
      %v1587 = vmul.f32 %v383, %v1543
      %v1588 = vmul.f32 %v384, %v1543
      %v1589 = vmul.f32 %v385, %v1543
      %v1590 = vmul.f32 %v386, %v1543
      %v1591 = vmul.f32 %v387, %v1543
      %v1640 = vrot.slane %v1544, 1
      %v1641 = vrot.slane %v1545, 1
      %v1642 = vsel %vm526, %v1640, %v1641
      %v1643 = vrot.slane %v1546, 1
      %v1644 = vsel %vm526, %v1641, %v1643
      %v1645 = vrot.slane %v1547, 1
      %v1646 = vrot.slane %v1548, 1
      %v1647 = vsel %vm526, %v1645, %v1646
      %v1648 = vrot.slane %v1549, 1
      %v1649 = vsel %vm526, %v1646, %v1648
      %v1650 = vrot.slane %v1550, 1
      %v1651 = vrot.slane %v1551, 1
      %v1652 = vsel %vm526, %v1650, %v1651
      %v1653 = vrot.slane %v1552, 1
      %v1654 = vsel %vm526, %v1651, %v1653
      %v1655 = vrot.slane %v1553, 1
      %v1656 = vrot.slane %v1554, 1
      %v1657 = vsel %vm526, %v1655, %v1656
      %v1658 = vrot.slane %v1555, 1
      %v1659 = vsel %vm526, %v1656, %v1658
      %v1660 = vrot.slane %v1556, 1
      %v1661 = vrot.slane %v1557, 1
      %v1662 = vsel %vm526, %v1660, %v1661
      %v1663 = vrot.slane %v1558, 1
      %v1664 = vsel %vm526, %v1661, %v1663
      %v1665 = vrot.slane %v1559, 1
      %v1666 = vrot.slane %v1560, 1
      %v1667 = vsel %vm526, %v1665, %v1666
      %v1668 = vrot.slane %v1561, 1
      %v1669 = vsel %vm526, %v1666, %v1668
      %v1670 = vrot.slane %v1562, 1
      %v1671 = vrot.slane %v1563, 1
      %v1672 = vsel %vm526, %v1670, %v1671
      %v1673 = vrot.slane %v1564, 1
      %v1674 = vsel %vm526, %v1671, %v1673
      %v1675 = vrot.slane %v1565, 1
      %v1676 = vrot.slane %v1566, 1
      %v1677 = vsel %vm526, %v1675, %v1676
      %v1678 = vrot.slane %v1567, 1
      %v1679 = vsel %vm526, %v1676, %v1678
      %v1680 = vrot.slane %v1568, 1
      %v1681 = vrot.slane %v1569, 1
      %v1682 = vsel %vm526, %v1680, %v1681
      %v1683 = vrot.slane %v1570, 1
      %v1684 = vsel %vm526, %v1681, %v1683
      %v1685 = vrot.slane %v1571, 1
      %v1686 = vrot.slane %v1572, 1
      %v1687 = vsel %vm526, %v1685, %v1686
      %v1688 = vrot.slane %v1573, 1
      %v1689 = vsel %vm526, %v1686, %v1688
      %v1690 = vrot.slane %v1574, 1
      %v1691 = vrot.slane %v1575, 1
      %v1692 = vsel %vm526, %v1690, %v1691
      %v1693 = vrot.slane %v1576, 1
      %v1694 = vsel %vm526, %v1691, %v1693
      %v1695 = vrot.slane %v1577, 1
      %v1696 = vrot.slane %v1578, 1
      %v1697 = vsel %vm526, %v1695, %v1696
      %v1698 = vrot.slane %v1579, 1
      %v1699 = vsel %vm526, %v1696, %v1698
      %v1700 = vrot.slane %v1580, 1
      %v1701 = vrot.slane %v1581, 1
      %v1702 = vsel %vm526, %v1700, %v1701
      %v1703 = vrot.slane %v1582, 1
      %v1704 = vsel %vm526, %v1701, %v1703
      %v1705 = vrot.slane %v1583, 1
      %v1706 = vrot.slane %v1584, 1
      %v1707 = vsel %vm526, %v1705, %v1706
      %v1708 = vrot.slane %v1585, 1
      %v1709 = vsel %vm526, %v1706, %v1708
      %v1710 = vrot.slane %v1586, 1
      %v1711 = vrot.slane %v1587, 1
      %v1712 = vsel %vm526, %v1710, %v1711
      %v1713 = vrot.slane %v1588, 1
      %v1714 = vsel %vm526, %v1711, %v1713
      %v1715 = vrot.slane %v1589, 1
      %v1716 = vrot.slane %v1590, 1
      %v1717 = vsel %vm526, %v1715, %v1716
      %v1718 = vrot.slane %v1591, 1
      %v1719 = vsel %vm526, %v1716, %v1718
      %v1752 = vadd.f32 %v1508, %v1642
      %v1753 = vadd.f32 %v1509, %v1644
      %v1754 = vadd.f32 %v1510, %v1647
      %v1755 = vadd.f32 %v1511, %v1649
      %v1756 = vadd.f32 %v1512, %v1652
      %v1757 = vadd.f32 %v1513, %v1654
      %v1758 = vadd.f32 %v1514, %v1657
      %v1759 = vadd.f32 %v1515, %v1659
      %v1760 = vadd.f32 %v1516, %v1662
      %v1761 = vadd.f32 %v1517, %v1664
      %v1762 = vadd.f32 %v1518, %v1667
      %v1763 = vadd.f32 %v1519, %v1669
      %v1764 = vadd.f32 %v1520, %v1672
      %v1765 = vadd.f32 %v1521, %v1674
      %v1766 = vadd.f32 %v1522, %v1677
      %v1767 = vadd.f32 %v1523, %v1679
      %v1768 = vadd.f32 %v1524, %v1682
      %v1769 = vadd.f32 %v1525, %v1684
      %v1770 = vadd.f32 %v1526, %v1687
      %v1771 = vadd.f32 %v1527, %v1689
      %v1772 = vadd.f32 %v1528, %v1692
      %v1773 = vadd.f32 %v1529, %v1694
      %v1774 = vadd.f32 %v1530, %v1697
      %v1775 = vadd.f32 %v1531, %v1699
      %v1776 = vadd.f32 %v1532, %v1702
      %v1777 = vadd.f32 %v1533, %v1704
      %v1778 = vadd.f32 %v1534, %v1707
      %v1779 = vadd.f32 %v1535, %v1709
      %v1780 = vadd.f32 %v1536, %v1712
      %v1781 = vadd.f32 %v1537, %v1714
      %v1782 = vadd.f32 %v1538, %v1717
      %v1783 = vadd.f32 %v1539, %v1719
      %v1784 = vlaneseq
      %v1785 = vshrl.u32 %v1784, 7
      %v1786 = vsub.s32 0, %v1785
      %v1787 = vrot.slane %v389, %v1786
      %v1788 = vmul.f32 %v340, %v1787
      %v1789 = vmul.f32 %v341, %v1787
      %v1790 = vmul.f32 %v342, %v1787
      %v1791 = vmul.f32 %v343, %v1787
      %v1792 = vmul.f32 %v344, %v1787
      %v1793 = vmul.f32 %v345, %v1787
      %v1794 = vmul.f32 %v346, %v1787
      %v1795 = vmul.f32 %v347, %v1787
      %v1796 = vmul.f32 %v348, %v1787
      %v1797 = vmul.f32 %v349, %v1787
      %v1798 = vmul.f32 %v350, %v1787
      %v1799 = vmul.f32 %v351, %v1787
      %v1800 = vmul.f32 %v352, %v1787
      %v1801 = vmul.f32 %v353, %v1787
      %v1802 = vmul.f32 %v354, %v1787
      %v1803 = vmul.f32 %v355, %v1787
      %v1804 = vmul.f32 %v356, %v1787
      %v1805 = vmul.f32 %v357, %v1787
      %v1806 = vmul.f32 %v358, %v1787
      %v1807 = vmul.f32 %v359, %v1787
      %v1808 = vmul.f32 %v360, %v1787
      %v1809 = vmul.f32 %v361, %v1787
      %v1810 = vmul.f32 %v362, %v1787
      %v1811 = vmul.f32 %v363, %v1787
      %v1812 = vmul.f32 %v364, %v1787
      %v1813 = vmul.f32 %v365, %v1787
      %v1814 = vmul.f32 %v366, %v1787
      %v1815 = vmul.f32 %v367, %v1787
      %v1816 = vmul.f32 %v368, %v1787
      %v1817 = vmul.f32 %v369, %v1787
      %v1818 = vmul.f32 %v370, %v1787
      %v1819 = vmul.f32 %v371, %v1787
      %v1820 = vmul.f32 %v372, %v1787
      %v1821 = vmul.f32 %v373, %v1787
      %v1822 = vmul.f32 %v374, %v1787
      %v1823 = vmul.f32 %v375, %v1787
      %v1824 = vmul.f32 %v376, %v1787
      %v1825 = vmul.f32 %v377, %v1787
      %v1826 = vmul.f32 %v378, %v1787
      %v1827 = vmul.f32 %v379, %v1787
      %v1828 = vmul.f32 %v380, %v1787
      %v1829 = vmul.f32 %v381, %v1787
      %v1830 = vmul.f32 %v382, %v1787
      %v1831 = vmul.f32 %v383, %v1787
      %v1832 = vmul.f32 %v384, %v1787
      %v1833 = vmul.f32 %v385, %v1787
      %v1834 = vmul.f32 %v386, %v1787
      %v1835 = vmul.f32 %v387, %v1787
      %v1884 = vrot.slane %v1788, 2
      %v1885 = vrot.slane %v1789, 2
      %v1886 = vsel %vm771, %v1884, %v1885
      %v1887 = vrot.slane %v1790, 2
      %v1888 = vsel %vm771, %v1885, %v1887
      %v1889 = vrot.slane %v1791, 2
      %v1890 = vrot.slane %v1792, 2
      %v1891 = vsel %vm771, %v1889, %v1890
      %v1892 = vrot.slane %v1793, 2
      %v1893 = vsel %vm771, %v1890, %v1892
      %v1894 = vrot.slane %v1794, 2
      %v1895 = vrot.slane %v1795, 2
      %v1896 = vsel %vm771, %v1894, %v1895
      %v1897 = vrot.slane %v1796, 2
      %v1898 = vsel %vm771, %v1895, %v1897
      %v1899 = vrot.slane %v1797, 2
      %v1900 = vrot.slane %v1798, 2
      %v1901 = vsel %vm771, %v1899, %v1900
      %v1902 = vrot.slane %v1799, 2
      %v1903 = vsel %vm771, %v1900, %v1902
      %v1904 = vrot.slane %v1800, 2
      %v1905 = vrot.slane %v1801, 2
      %v1906 = vsel %vm771, %v1904, %v1905
      %v1907 = vrot.slane %v1802, 2
      %v1908 = vsel %vm771, %v1905, %v1907
      %v1909 = vrot.slane %v1803, 2
      %v1910 = vrot.slane %v1804, 2
      %v1911 = vsel %vm771, %v1909, %v1910
      %v1912 = vrot.slane %v1805, 2
      %v1913 = vsel %vm771, %v1910, %v1912
      %v1914 = vrot.slane %v1806, 2
      %v1915 = vrot.slane %v1807, 2
      %v1916 = vsel %vm771, %v1914, %v1915
      %v1917 = vrot.slane %v1808, 2
      %v1918 = vsel %vm771, %v1915, %v1917
      %v1919 = vrot.slane %v1809, 2
      %v1920 = vrot.slane %v1810, 2
      %v1921 = vsel %vm771, %v1919, %v1920
      %v1922 = vrot.slane %v1811, 2
      %v1923 = vsel %vm771, %v1920, %v1922
      %v1924 = vrot.slane %v1812, 2
      %v1925 = vrot.slane %v1813, 2
      %v1926 = vsel %vm771, %v1924, %v1925
      %v1927 = vrot.slane %v1814, 2
      %v1928 = vsel %vm771, %v1925, %v1927
      %v1929 = vrot.slane %v1815, 2
      %v1930 = vrot.slane %v1816, 2
      %v1931 = vsel %vm771, %v1929, %v1930
      %v1932 = vrot.slane %v1817, 2
      %v1933 = vsel %vm771, %v1930, %v1932
      %v1934 = vrot.slane %v1818, 2
      %v1935 = vrot.slane %v1819, 2
      %v1936 = vsel %vm771, %v1934, %v1935
      %v1937 = vrot.slane %v1820, 2
      %v1938 = vsel %vm771, %v1935, %v1937
      %v1939 = vrot.slane %v1821, 2
      %v1940 = vrot.slane %v1822, 2
      %v1941 = vsel %vm771, %v1939, %v1940
      %v1942 = vrot.slane %v1823, 2
      %v1943 = vsel %vm771, %v1940, %v1942
      %v1944 = vrot.slane %v1824, 2
      %v1945 = vrot.slane %v1825, 2
      %v1946 = vsel %vm771, %v1944, %v1945
      %v1947 = vrot.slane %v1826, 2
      %v1948 = vsel %vm771, %v1945, %v1947
      %v1949 = vrot.slane %v1827, 2
      %v1950 = vrot.slane %v1828, 2
      %v1951 = vsel %vm771, %v1949, %v1950
      %v1952 = vrot.slane %v1829, 2
      %v1953 = vsel %vm771, %v1950, %v1952
      %v1954 = vrot.slane %v1830, 2
      %v1955 = vrot.slane %v1831, 2
      %v1956 = vsel %vm771, %v1954, %v1955
      %v1957 = vrot.slane %v1832, 2
      %v1958 = vsel %vm771, %v1955, %v1957
      %v1959 = vrot.slane %v1833, 2
      %v1960 = vrot.slane %v1834, 2
      %v1961 = vsel %vm771, %v1959, %v1960
      %v1962 = vrot.slane %v1835, 2
      %v1963 = vsel %vm771, %v1960, %v1962
      %v1996 = vadd.f32 %v1752, %v1886
      %v1997 = vadd.f32 %v1753, %v1888
      %v1998 = vadd.f32 %v1754, %v1891
      %v1999 = vadd.f32 %v1755, %v1893
      %v2000 = vadd.f32 %v1756, %v1896
      %v2001 = vadd.f32 %v1757, %v1898
      %v2002 = vadd.f32 %v1758, %v1901
      %v2003 = vadd.f32 %v1759, %v1903
      %v2004 = vadd.f32 %v1760, %v1906
      %v2005 = vadd.f32 %v1761, %v1908
      %v2006 = vadd.f32 %v1762, %v1911
      %v2007 = vadd.f32 %v1763, %v1913
      %v2008 = vadd.f32 %v1764, %v1916
      %v2009 = vadd.f32 %v1765, %v1918
      %v2010 = vadd.f32 %v1766, %v1921
      %v2011 = vadd.f32 %v1767, %v1923
      %v2012 = vadd.f32 %v1768, %v1926
      %v2013 = vadd.f32 %v1769, %v1928
      %v2014 = vadd.f32 %v1770, %v1931
      %v2015 = vadd.f32 %v1771, %v1933
      %v2016 = vadd.f32 %v1772, %v1936
      %v2017 = vadd.f32 %v1773, %v1938
      %v2018 = vadd.f32 %v1774, %v1941
      %v2019 = vadd.f32 %v1775, %v1943
      %v2020 = vadd.f32 %v1776, %v1946
      %v2021 = vadd.f32 %v1777, %v1948
      %v2022 = vadd.f32 %v1778, %v1951
      %v2023 = vadd.f32 %v1779, %v1953
      %v2024 = vadd.f32 %v1780, %v1956
      %v2025 = vadd.f32 %v1781, %v1958
      %v2026 = vadd.f32 %v1782, %v1961
      %v2027 = vadd.f32 %v1783, %v1963
      %v2028 = vld [vmem:[%s2] sm:$0x1]
      %v2030 = vlaneseq
      %v2031 = vshrl.u32 %v2030, 7
      %v2032 = vsub.s32 0, %v2031
      %v2033 = vrot.slane %v2028, %v2032
      %v2035 = vmul.f32 %v1996, %v2033
      %v2036 = vmul.f32 %v1997, %v2033
      %v2037 = vmul.f32 %v1998, %v2033
      %v2038 = vmul.f32 %v1999, %v2033
      %v2039 = vmul.f32 %v2000, %v2033
      %v2040 = vmul.f32 %v2001, %v2033
      %v2041 = vmul.f32 %v2002, %v2033
      %v2042 = vmul.f32 %v2003, %v2033
      %v2043 = vmul.f32 %v2004, %v2033
      %v2044 = vmul.f32 %v2005, %v2033
      %v2045 = vmul.f32 %v2006, %v2033
      %v2046 = vmul.f32 %v2007, %v2033
      %v2047 = vmul.f32 %v2008, %v2033
      %v2048 = vmul.f32 %v2009, %v2033
      %v2049 = vmul.f32 %v2010, %v2033
      %v2050 = vmul.f32 %v2011, %v2033
      %v2051 = vmul.f32 %v2012, %v2033
      %v2052 = vmul.f32 %v2013, %v2033
      %v2053 = vmul.f32 %v2014, %v2033
      %v2054 = vmul.f32 %v2015, %v2033
      %v2055 = vmul.f32 %v2016, %v2033
      %v2056 = vmul.f32 %v2017, %v2033
      %v2057 = vmul.f32 %v2018, %v2033
      %v2058 = vmul.f32 %v2019, %v2033
      %v2059 = vmul.f32 %v2020, %v2033
      %v2060 = vmul.f32 %v2021, %v2033
      %v2061 = vmul.f32 %v2022, %v2033
      %v2062 = vmul.f32 %v2023, %v2033
      %v2063 = vmul.f32 %v2024, %v2033
      %v2064 = vmul.f32 %v2025, %v2033
      %v2065 = vmul.f32 %v2026, %v2033
      %v2066 = vmul.f32 %v2027, %v2033
      %v2067 = vld [vmem:[%s3] sm:$0x1]
      %v2069 = vlaneseq
      %v2070 = vshrl.u32 %v2069, 7
      %v2071 = vsub.s32 0, %v2070
      %v2072 = vrot.slane %v2067, %v2071
      %v2074 = vadd.f32 %v2035, %v2072
      %v2075 = vadd.f32 %v2036, %v2072
      %v2076 = vadd.f32 %v2037, %v2072
      %v2077 = vadd.f32 %v2038, %v2072
      %v2078 = vadd.f32 %v2039, %v2072
      %v2079 = vadd.f32 %v2040, %v2072
      %v2080 = vadd.f32 %v2041, %v2072
      %v2081 = vadd.f32 %v2042, %v2072
      %v2082 = vadd.f32 %v2043, %v2072
      %v2083 = vadd.f32 %v2044, %v2072
      %v2084 = vadd.f32 %v2045, %v2072
      %v2085 = vadd.f32 %v2046, %v2072
      %v2086 = vadd.f32 %v2047, %v2072
      %v2087 = vadd.f32 %v2048, %v2072
      %v2088 = vadd.f32 %v2049, %v2072
      %v2089 = vadd.f32 %v2050, %v2072
      %v2090 = vadd.f32 %v2051, %v2072
      %v2091 = vadd.f32 %v2052, %v2072
      %v2092 = vadd.f32 %v2053, %v2072
      %v2093 = vadd.f32 %v2054, %v2072
      %v2094 = vadd.f32 %v2055, %v2072
      %v2095 = vadd.f32 %v2056, %v2072
      %v2096 = vadd.f32 %v2057, %v2072
      %v2097 = vadd.f32 %v2058, %v2072
      %v2098 = vadd.f32 %v2059, %v2072
      %v2099 = vadd.f32 %v2060, %v2072
      %v2100 = vadd.f32 %v2061, %v2072
      %v2101 = vadd.f32 %v2062, %v2072
      %v2102 = vadd.f32 %v2063, %v2072
      %v2103 = vadd.f32 %v2064, %v2072
      %v2104 = vadd.f32 %v2065, %v2072
      %v2105 = vadd.f32 %v2066, %v2072
      %v2106 = vmax.f32 %v2074, 0.0
      %v2107 = vmax.f32 %v2075, 0.0
      %v2108 = vmax.f32 %v2076, 0.0
      %v2109 = vmax.f32 %v2077, 0.0
      %v2110 = vmax.f32 %v2078, 0.0
      %v2111 = vmax.f32 %v2079, 0.0
      %v2112 = vmax.f32 %v2080, 0.0
      %v2113 = vmax.f32 %v2081, 0.0
      %v2114 = vmax.f32 %v2082, 0.0
      %v2115 = vmax.f32 %v2083, 0.0
      %v2116 = vmax.f32 %v2084, 0.0
      %v2117 = vmax.f32 %v2085, 0.0
      %v2118 = vmax.f32 %v2086, 0.0
      %v2119 = vmax.f32 %v2087, 0.0
      %v2120 = vmax.f32 %v2088, 0.0
      %v2121 = vmax.f32 %v2089, 0.0
      %v2122 = vmax.f32 %v2090, 0.0
      %v2123 = vmax.f32 %v2091, 0.0
      %v2124 = vmax.f32 %v2092, 0.0
      %v2125 = vmax.f32 %v2093, 0.0
      %v2126 = vmax.f32 %v2094, 0.0
      %v2127 = vmax.f32 %v2095, 0.0
      %v2128 = vmax.f32 %v2096, 0.0
      %v2129 = vmax.f32 %v2097, 0.0
      %v2130 = vmax.f32 %v2098, 0.0
      %v2131 = vmax.f32 %v2099, 0.0
      %v2132 = vmax.f32 %v2100, 0.0
      %v2133 = vmax.f32 %v2101, 0.0
      %v2134 = vmax.f32 %v2102, 0.0
      %v2135 = vmax.f32 %v2103, 0.0
      %v2136 = vmax.f32 %v2104, 0.0
      %v2137 = vmax.f32 %v2105, 0.0
      %v2138 = vpack.c.bf16 %v2107, %v2106
      %v2139 = vpack.c.bf16 %v2109, %v2108
      %v2140 = vpack.c.bf16 %v2111, %v2110
      %v2141 = vpack.c.bf16 %v2113, %v2112
      %v2142 = vpack.c.bf16 %v2115, %v2114
      %v2143 = vpack.c.bf16 %v2117, %v2116
      %v2144 = vpack.c.bf16 %v2119, %v2118
      %v2145 = vpack.c.bf16 %v2121, %v2120
      %v2146 = vpack.c.bf16 %v2123, %v2122
      %v2147 = vpack.c.bf16 %v2125, %v2124
      %v2148 = vpack.c.bf16 %v2127, %v2126
      %v2149 = vpack.c.bf16 %v2129, %v2128
      %v2150 = vpack.c.bf16 %v2131, %v2130
      %v2151 = vpack.c.bf16 %v2133, %v2132
      %v2152 = vpack.c.bf16 %v2135, %v2134
      %v2153 = vpack.c.bf16 %v2137, %v2136
      %v2154 = vld [vmem:[%s4] sm:$0xf]
      %v2155 = vld [vmem:[%s4 + $0x4] sm:$0xf]
      %v2158 = vunpack.c.l.b16 %v2154
      %v2159 = vunpack.c.l.b16 %v2155
      %v2160 = vpack.c.b16 %v2159, %v2158
      %vm2162 = vcmask 130048
      %v2164 = vsel %vm2162, %v2138, 0
      %v2167 = vsel %vm2162, %v2139, 0
      %v2170 = vsel %vm2162, %v2140, 0
      %v2173 = vsel %vm2162, %v2141, 0
      %v2176 = vsel %vm2162, %v2142, 0
      %v2179 = vsel %vm2162, %v2143, 0
      %v2182 = vsel %vm2162, %v2144, 0
      %v2185 = vsel %vm2162, %v2145, 0
      %v2188 = vsel %vm2162, %v2146, 0
      %v2191 = vsel %vm2162, %v2147, 0
      %v2194 = vsel %vm2162, %v2148, 0
      %v2197 = vsel %vm2162, %v2149, 0
      %v2200 = vsel %vm2162, %v2150, 0
      %v2203 = vsel %vm2162, %v2151, 0
      %v2206 = vsel %vm2162, %v2152, 0
      %v2209 = vsel %vm2162, %v2153, 0
      %2211 = vmatprep.subr.bf16.mxu0 0
      %2212 = vmatpush1.bf16.msra.mxu0 0
      %2213 = vmatprep.subr.bf16.mxu0 0
      %2214 = vmatpush1.bf16.msra.mxu0 0
      %2215 = vmatprep.subr.bf16.mxu0 0
      %2216 = vmatpush1.bf16.msra.mxu0 0
      %2217 = vmatprep.subr.bf16.mxu0 0
      %2218 = vmatpush1.bf16.msra.mxu0 0
      %2219 = vmatprep.subr.bf16.mxu0 0
      %2220 = vmatpush1.bf16.msra.mxu0 0
      %2221 = vmatprep.subr.bf16.mxu0 0
      %2222 = vmatpush1.bf16.msra.mxu0 0
      %2223 = vmatprep.subr.bf16.mxu0 0
      %2224 = vmatpush1.bf16.msra.mxu0 0
      %2225 = vmatprep.subr.bf16.mxu0 0
      %2226 = vmatpush1.bf16.msra.mxu0 %v2160
      %2227 = vmatprep.subr.bf16.mxu0 0
      %2228 = vmatpush2.bf16.msra.mxu0 0
      %2229 = vmatprep.subr.bf16.mxu0 0
      %2230 = vmatpush2.bf16.msra.mxu0 0
      %2231 = vmatprep.subr.bf16.mxu0 0
      %2232 = vmatpush2.bf16.msra.mxu0 0
      %2233 = vmatprep.subr.bf16.mxu0 0
      %2234 = vmatpush2.bf16.msra.mxu0 0
      %2235 = vmatprep.subr.bf16.mxu0 0
      %2236 = vmatpush2.bf16.msra.mxu0 0
      %2237 = vmatprep.subr.bf16.mxu0 0
      %2238 = vmatpush2.bf16.msra.mxu0 0
      %2239 = vmatprep.subr.bf16.mxu0 0
      %2240 = vmatpush2.bf16.msra.mxu0 0
      %2241 = vmatprep.subr.bf16.mxu0 0
      %2242 = vmatpush2.bf16.msra.mxu0 0
      %2243 = vmatprep.mubr.bf16.mxu0 0
      %2244 = vmatmul.mubr.bf16.gmra.mxu0 %v2164
      %v2245 = vpop.f32.mrf.mxu0
      %v2246 = vadd.f32 0.0, %v2245
      %v2247 = vpop.f32.mrf.mxu0
      %v2248 = vpop.f32.mrf.mxu0
      %v2249 = vadd.f32 0.0, %v2248
      %v2250 = vpop.f32.mrf.mxu0
      %2251 = vmatprep.mubr.bf16.mxu0 0
      %2252 = vmatmul.mubr.bf16.gmra.mxu0 %v2167
      %v2253 = vpop.f32.mrf.mxu0
      %v2254 = vadd.f32 0.0, %v2253
      %v2255 = vpop.f32.mrf.mxu0
      %v2256 = vpop.f32.mrf.mxu0
      %v2257 = vadd.f32 0.0, %v2256
      %v2258 = vpop.f32.mrf.mxu0
      %2259 = vmatprep.mubr.bf16.mxu0 0
      %2260 = vmatmul.mubr.bf16.gmra.mxu0 %v2170
      %v2261 = vpop.f32.mrf.mxu0
      %v2262 = vadd.f32 0.0, %v2261
      %v2263 = vpop.f32.mrf.mxu0
      %v2264 = vpop.f32.mrf.mxu0
      %v2265 = vadd.f32 0.0, %v2264
      %v2266 = vpop.f32.mrf.mxu0
      %2267 = vmatprep.mubr.bf16.mxu0 0
      %2268 = vmatmul.mubr.bf16.gmra.mxu0 %v2173
      %v2269 = vpop.f32.mrf.mxu0
      %v2270 = vadd.f32 0.0, %v2269
      %v2271 = vpop.f32.mrf.mxu0
      %v2272 = vpop.f32.mrf.mxu0
      %v2273 = vadd.f32 0.0, %v2272
      %v2274 = vpop.f32.mrf.mxu0
      %2275 = vmatprep.mubr.bf16.mxu0 0
      %2276 = vmatmul.mubr.bf16.gmra.mxu0 %v2176
      %v2277 = vpop.f32.mrf.mxu0
      %v2278 = vadd.f32 0.0, %v2277
      %v2279 = vpop.f32.mrf.mxu0
      %v2280 = vpop.f32.mrf.mxu0
      %v2281 = vadd.f32 0.0, %v2280
      %v2282 = vpop.f32.mrf.mxu0
      %2283 = vmatprep.mubr.bf16.mxu0 0
      %2284 = vmatmul.mubr.bf16.gmra.mxu0 %v2179
      %v2285 = vpop.f32.mrf.mxu0
      %v2286 = vadd.f32 0.0, %v2285
      %v2287 = vpop.f32.mrf.mxu0
      %v2288 = vpop.f32.mrf.mxu0
      %v2289 = vadd.f32 0.0, %v2288
      %v2290 = vpop.f32.mrf.mxu0
      %2291 = vmatprep.mubr.bf16.mxu0 0
      %2292 = vmatmul.mubr.bf16.gmra.mxu0 %v2182
      %v2293 = vpop.f32.mrf.mxu0
      %v2294 = vadd.f32 0.0, %v2293
      %v2295 = vpop.f32.mrf.mxu0
      %v2296 = vpop.f32.mrf.mxu0
      %v2297 = vadd.f32 0.0, %v2296
      %v2298 = vpop.f32.mrf.mxu0
      %2299 = vmatprep.mubr.bf16.mxu0 0
      %2300 = vmatmul.mubr.bf16.gmra.mxu0 %v2185
      %v2301 = vpop.f32.mrf.mxu0
      %v2302 = vadd.f32 0.0, %v2301
      %v2303 = vpop.f32.mrf.mxu0
      %v2304 = vpop.f32.mrf.mxu0
      %v2305 = vadd.f32 0.0, %v2304
      %v2306 = vpop.f32.mrf.mxu0
      %2307 = vmatprep.mubr.bf16.mxu0 0
      %2308 = vmatmul.mubr.bf16.gmra.mxu0 %v2188
      %v2309 = vpop.f32.mrf.mxu0
      %v2310 = vadd.f32 0.0, %v2309
      %v2311 = vpop.f32.mrf.mxu0
      %v2312 = vpop.f32.mrf.mxu0
      %v2313 = vadd.f32 0.0, %v2312
      %v2314 = vpop.f32.mrf.mxu0
      %2315 = vmatprep.mubr.bf16.mxu0 0
      %2316 = vmatmul.mubr.bf16.gmra.mxu0 %v2191
      %v2317 = vpop.f32.mrf.mxu0
      %v2318 = vadd.f32 0.0, %v2317
      %v2319 = vpop.f32.mrf.mxu0
      %v2320 = vpop.f32.mrf.mxu0
      %v2321 = vadd.f32 0.0, %v2320
      %v2322 = vpop.f32.mrf.mxu0
      %2323 = vmatprep.mubr.bf16.mxu0 0
      %2324 = vmatmul.mubr.bf16.gmra.mxu0 %v2194
      %v2325 = vpop.f32.mrf.mxu0
      %v2326 = vadd.f32 0.0, %v2325
      %v2327 = vpop.f32.mrf.mxu0
      %v2328 = vpop.f32.mrf.mxu0
      %v2329 = vadd.f32 0.0, %v2328
      %v2330 = vpop.f32.mrf.mxu0
      %2331 = vmatprep.mubr.bf16.mxu0 0
      %2332 = vmatmul.mubr.bf16.gmra.mxu0 %v2197
      %v2333 = vpop.f32.mrf.mxu0
      %v2334 = vadd.f32 0.0, %v2333
      %v2335 = vpop.f32.mrf.mxu0
      %v2336 = vpop.f32.mrf.mxu0
      %v2337 = vadd.f32 0.0, %v2336
      %v2338 = vpop.f32.mrf.mxu0
      %2339 = vmatprep.mubr.bf16.mxu0 0
      %2340 = vmatmul.mubr.bf16.gmra.mxu0 %v2200
      %v2341 = vpop.f32.mrf.mxu0
      %v2342 = vadd.f32 0.0, %v2341
      %v2343 = vpop.f32.mrf.mxu0
      %v2344 = vpop.f32.mrf.mxu0
      %v2345 = vadd.f32 0.0, %v2344
      %v2346 = vpop.f32.mrf.mxu0
      %2347 = vmatprep.mubr.bf16.mxu0 0
      %2348 = vmatmul.mubr.bf16.gmra.mxu0 %v2203
      %v2349 = vpop.f32.mrf.mxu0
      %v2350 = vadd.f32 0.0, %v2349
      %v2351 = vpop.f32.mrf.mxu0
      %v2352 = vpop.f32.mrf.mxu0
      %v2353 = vadd.f32 0.0, %v2352
      %v2354 = vpop.f32.mrf.mxu0
      %2355 = vmatprep.mubr.bf16.mxu0 0
      %2356 = vmatmul.mubr.bf16.gmra.mxu0 %v2206
      %v2357 = vpop.f32.mrf.mxu0
      %v2358 = vadd.f32 0.0, %v2357
      %v2359 = vpop.f32.mrf.mxu0
      %v2360 = vpop.f32.mrf.mxu0
      %v2361 = vadd.f32 0.0, %v2360
      %v2362 = vpop.f32.mrf.mxu0
      %2363 = vmatprep.mubr.bf16.mxu0 0
      %2364 = vmatmul.mubr.bf16.gmra.mxu0 %v2209
      %v2365 = vpop.f32.mrf.mxu0
      %v2366 = vadd.f32 0.0, %v2365
      %v2367 = vpop.f32.mrf.mxu0
      %v2368 = vpop.f32.mrf.mxu0
      %v2369 = vadd.f32 0.0, %v2368
      %v2370 = vpop.f32.mrf.mxu0
      %2371 = vdwg.mxu0
      %v2372 = vld [vmem:[%s5] sm:$0x1]
      %v2374 = vlaneseq
      %v2375 = vshrl.u32 %v2374, 7
      %v2376 = vsub.s32 0, %v2375
      %v2377 = vrot.slane %v2372, %v2376
      %v2379 = vmul.f32 %v2246, %v2377
      %v2380 = vmul.f32 %v2249, %v2377
      %v2381 = vmul.f32 %v2254, %v2377
      %v2382 = vmul.f32 %v2257, %v2377
      %v2383 = vmul.f32 %v2262, %v2377
      %v2384 = vmul.f32 %v2265, %v2377
      %v2385 = vmul.f32 %v2270, %v2377
      %v2386 = vmul.f32 %v2273, %v2377
      %v2387 = vmul.f32 %v2278, %v2377
      %v2388 = vmul.f32 %v2281, %v2377
      %v2389 = vmul.f32 %v2286, %v2377
      %v2390 = vmul.f32 %v2289, %v2377
      %v2391 = vmul.f32 %v2294, %v2377
      %v2392 = vmul.f32 %v2297, %v2377
      %v2393 = vmul.f32 %v2302, %v2377
      %v2394 = vmul.f32 %v2305, %v2377
      %v2395 = vmul.f32 %v2310, %v2377
      %v2396 = vmul.f32 %v2313, %v2377
      %v2397 = vmul.f32 %v2318, %v2377
      %v2398 = vmul.f32 %v2321, %v2377
      %v2399 = vmul.f32 %v2326, %v2377
      %v2400 = vmul.f32 %v2329, %v2377
      %v2401 = vmul.f32 %v2334, %v2377
      %v2402 = vmul.f32 %v2337, %v2377
      %v2403 = vmul.f32 %v2342, %v2377
      %v2404 = vmul.f32 %v2345, %v2377
      %v2405 = vmul.f32 %v2350, %v2377
      %v2406 = vmul.f32 %v2353, %v2377
      %v2407 = vmul.f32 %v2358, %v2377
      %v2408 = vmul.f32 %v2361, %v2377
      %v2409 = vmul.f32 %v2366, %v2377
      %v2410 = vmul.f32 %v2369, %v2377
      %v2411 = vld [vmem:[%s6] sm:$0x1]
      %v2413 = vlaneseq
      %v2414 = vshrl.u32 %v2413, 7
      %v2415 = vsub.s32 0, %v2414
      %v2416 = vrot.slane %v2411, %v2415
      %v2418 = vadd.f32 %v2379, %v2416
      %v2419 = vadd.f32 %v2380, %v2416
      %v2420 = vadd.f32 %v2381, %v2416
      %v2421 = vadd.f32 %v2382, %v2416
      %v2422 = vadd.f32 %v2383, %v2416
      %v2423 = vadd.f32 %v2384, %v2416
      %v2424 = vadd.f32 %v2385, %v2416
      %v2425 = vadd.f32 %v2386, %v2416
      %v2426 = vadd.f32 %v2387, %v2416
      %v2427 = vadd.f32 %v2388, %v2416
      %v2428 = vadd.f32 %v2389, %v2416
      %v2429 = vadd.f32 %v2390, %v2416
      %v2430 = vadd.f32 %v2391, %v2416
      %v2431 = vadd.f32 %v2392, %v2416
      %v2432 = vadd.f32 %v2393, %v2416
      %v2433 = vadd.f32 %v2394, %v2416
      %v2434 = vadd.f32 %v2395, %v2416
      %v2435 = vadd.f32 %v2396, %v2416
      %v2436 = vadd.f32 %v2397, %v2416
      %v2437 = vadd.f32 %v2398, %v2416
      %v2438 = vadd.f32 %v2399, %v2416
      %v2439 = vadd.f32 %v2400, %v2416
      %v2440 = vadd.f32 %v2401, %v2416
      %v2441 = vadd.f32 %v2402, %v2416
      %v2442 = vadd.f32 %v2403, %v2416
      %v2443 = vadd.f32 %v2404, %v2416
      %v2444 = vadd.f32 %v2405, %v2416
      %v2445 = vadd.f32 %v2406, %v2416
      %v2446 = vadd.f32 %v2407, %v2416
      %v2447 = vadd.f32 %v2408, %v2416
      %v2448 = vadd.f32 %v2409, %v2416
      %v2449 = vadd.f32 %v2410, %v2416
      %v2498 = vrot.slane %v337, 1
      %v2499 = vrot.slane %v338, 1
      %v2500 = vsel %vm526, %v2498, %v2499
      %v2501 = vrot.slane %v339, 1
      %v2502 = vsel %vm526, %v2499, %v2501
      %v2503 = vrot.slane %v340, 1
      %v2504 = vrot.slane %v341, 1
      %v2505 = vsel %vm526, %v2503, %v2504
      %v2506 = vrot.slane %v342, 1
      %v2507 = vsel %vm526, %v2504, %v2506
      %v2508 = vrot.slane %v343, 1
      %v2509 = vrot.slane %v344, 1
      %v2510 = vsel %vm526, %v2508, %v2509
      %v2511 = vrot.slane %v345, 1
      %v2512 = vsel %vm526, %v2509, %v2511
      %v2513 = vrot.slane %v346, 1
      %v2514 = vrot.slane %v347, 1
      %v2515 = vsel %vm526, %v2513, %v2514
      %v2516 = vrot.slane %v348, 1
      %v2517 = vsel %vm526, %v2514, %v2516
      %v2518 = vrot.slane %v349, 1
      %v2519 = vrot.slane %v350, 1
      %v2520 = vsel %vm526, %v2518, %v2519
      %v2521 = vrot.slane %v351, 1
      %v2522 = vsel %vm526, %v2519, %v2521
      %v2523 = vrot.slane %v352, 1
      %v2524 = vrot.slane %v353, 1
      %v2525 = vsel %vm526, %v2523, %v2524
      %v2526 = vrot.slane %v354, 1
      %v2527 = vsel %vm526, %v2524, %v2526
      %v2528 = vrot.slane %v355, 1
      %v2529 = vrot.slane %v356, 1
      %v2530 = vsel %vm526, %v2528, %v2529
      %v2531 = vrot.slane %v357, 1
      %v2532 = vsel %vm526, %v2529, %v2531
      %v2533 = vrot.slane %v358, 1
      %v2534 = vrot.slane %v359, 1
      %v2535 = vsel %vm526, %v2533, %v2534
      %v2536 = vrot.slane %v360, 1
      %v2537 = vsel %vm526, %v2534, %v2536
      %v2538 = vrot.slane %v361, 1
      %v2539 = vrot.slane %v362, 1
      %v2540 = vsel %vm526, %v2538, %v2539
      %v2541 = vrot.slane %v363, 1
      %v2542 = vsel %vm526, %v2539, %v2541
      %v2543 = vrot.slane %v364, 1
      %v2544 = vrot.slane %v365, 1
      %v2545 = vsel %vm526, %v2543, %v2544
      %v2546 = vrot.slane %v366, 1
      %v2547 = vsel %vm526, %v2544, %v2546
      %v2548 = vrot.slane %v367, 1
      %v2549 = vrot.slane %v368, 1
      %v2550 = vsel %vm526, %v2548, %v2549
      %v2551 = vrot.slane %v369, 1
      %v2552 = vsel %vm526, %v2549, %v2551
      %v2553 = vrot.slane %v370, 1
      %v2554 = vrot.slane %v371, 1
      %v2555 = vsel %vm526, %v2553, %v2554
      %v2556 = vrot.slane %v372, 1
      %v2557 = vsel %vm526, %v2554, %v2556
      %v2558 = vrot.slane %v373, 1
      %v2559 = vrot.slane %v374, 1
      %v2560 = vsel %vm526, %v2558, %v2559
      %v2561 = vrot.slane %v375, 1
      %v2562 = vsel %vm526, %v2559, %v2561
      %v2563 = vrot.slane %v376, 1
      %v2564 = vrot.slane %v377, 1
      %v2565 = vsel %vm526, %v2563, %v2564
      %v2566 = vrot.slane %v378, 1
      %v2567 = vsel %vm526, %v2564, %v2566
      %v2568 = vrot.slane %v379, 1
      %v2569 = vrot.slane %v380, 1
      %v2570 = vsel %vm526, %v2568, %v2569
      %v2571 = vrot.slane %v381, 1
      %v2572 = vsel %vm526, %v2569, %v2571
      %v2573 = vrot.slane %v382, 1
      %v2574 = vrot.slane %v383, 1
      %v2575 = vsel %vm526, %v2573, %v2574
      %v2576 = vrot.slane %v384, 1
      %v2577 = vsel %vm526, %v2574, %v2576
      %v2610 = vadd.f32 %v2418, %v2500
      %v2611 = vadd.f32 %v2419, %v2502
      %v2612 = vadd.f32 %v2420, %v2505
      %v2613 = vadd.f32 %v2421, %v2507
      %v2614 = vadd.f32 %v2422, %v2510
      %v2615 = vadd.f32 %v2423, %v2512
      %v2616 = vadd.f32 %v2424, %v2515
      %v2617 = vadd.f32 %v2425, %v2517
      %v2618 = vadd.f32 %v2426, %v2520
      %v2619 = vadd.f32 %v2427, %v2522
      %v2620 = vadd.f32 %v2428, %v2525
      %v2621 = vadd.f32 %v2429, %v2527
      %v2622 = vadd.f32 %v2430, %v2530
      %v2623 = vadd.f32 %v2431, %v2532
      %v2624 = vadd.f32 %v2432, %v2535
      %v2625 = vadd.f32 %v2433, %v2537
      %v2626 = vadd.f32 %v2434, %v2540
      %v2627 = vadd.f32 %v2435, %v2542
      %v2628 = vadd.f32 %v2436, %v2545
      %v2629 = vadd.f32 %v2437, %v2547
      %v2630 = vadd.f32 %v2438, %v2550
      %v2631 = vadd.f32 %v2439, %v2552
      %v2632 = vadd.f32 %v2440, %v2555
      %v2633 = vadd.f32 %v2441, %v2557
      %v2634 = vadd.f32 %v2442, %v2560
      %v2635 = vadd.f32 %v2443, %v2562
      %v2636 = vadd.f32 %v2444, %v2565
      %v2637 = vadd.f32 %v2445, %v2567
      %v2638 = vadd.f32 %v2446, %v2570
      %v2639 = vadd.f32 %v2447, %v2572
      %v2640 = vadd.f32 %v2448, %v2575
      %v2641 = vadd.f32 %v2449, %v2577
      %v2642 = vpack.c.bf16 %v2611, %v2610
      %v2643 = vpack.c.bf16 %v2613, %v2612
      %v2644 = vpack.c.bf16 %v2615, %v2614
      %v2645 = vpack.c.bf16 %v2617, %v2616
      %v2646 = vpack.c.bf16 %v2619, %v2618
      %v2647 = vpack.c.bf16 %v2621, %v2620
      %v2648 = vpack.c.bf16 %v2623, %v2622
      %v2649 = vpack.c.bf16 %v2625, %v2624
      %v2650 = vpack.c.bf16 %v2627, %v2626
      %v2651 = vpack.c.bf16 %v2629, %v2628
      %v2652 = vpack.c.bf16 %v2631, %v2630
      %v2653 = vpack.c.bf16 %v2633, %v2632
      %v2654 = vpack.c.bf16 %v2635, %v2634
      %v2655 = vpack.c.bf16 %v2637, %v2636
      %v2656 = vpack.c.bf16 %v2639, %v2638
      %v2657 = vpack.c.bf16 %v2641, %v2640
      %v2674 = vunpack.c.l.b16 %v2642
      %v2675 = vunpack.c.h.b16 %v2642
      %v2676 = vunpack.c.l.b16 %v2643
      %v2677 = vunpack.c.h.b16 %v2643
      %v2678 = vunpack.c.l.b16 %v2644
      %v2679 = vunpack.c.h.b16 %v2644
      %v2680 = vunpack.c.l.b16 %v2645
      %v2681 = vunpack.c.h.b16 %v2645
      %v2682 = vunpack.c.l.b16 %v2646
      %v2683 = vunpack.c.h.b16 %v2646
      %v2684 = vunpack.c.l.b16 %v2647
      %v2685 = vunpack.c.h.b16 %v2647
      %v2686 = vunpack.c.l.b16 %v2648
      %v2687 = vunpack.c.h.b16 %v2648
      %v2688 = vunpack.c.l.b16 %v2649
      %v2689 = vunpack.c.h.b16 %v2649
      %v2690 = vunpack.c.l.b16 %v2650
      %v2691 = vunpack.c.h.b16 %v2650
      %v2692 = vunpack.c.l.b16 %v2651
      %v2693 = vunpack.c.h.b16 %v2651
      %v2694 = vunpack.c.l.b16 %v2652
      %v2695 = vunpack.c.h.b16 %v2652
      %v2696 = vunpack.c.l.b16 %v2653
      %v2697 = vunpack.c.h.b16 %v2653
      %v2698 = vunpack.c.l.b16 %v2654
      %v2699 = vunpack.c.h.b16 %v2654
      %v2700 = vunpack.c.l.b16 %v2655
      %v2701 = vunpack.c.h.b16 %v2655
      %v2702 = vunpack.c.l.b16 %v2656
      %v2703 = vunpack.c.h.b16 %v2656
      %v2704 = vunpack.c.l.b16 %v2657
      %v2705 = vunpack.c.h.b16 %v2657
      %v2706 = vpack.c.b16 %v2674, %v2674
      %v2707 = vpack.c.b16 %v2675, %v2675
      %v2708 = vpack.c.b16 %v2676, %v2676
      %v2709 = vpack.c.b16 %v2677, %v2677
      %v2710 = vpack.c.b16 %v2678, %v2678
      %v2711 = vpack.c.b16 %v2679, %v2679
      %v2712 = vpack.c.b16 %v2680, %v2680
      %v2713 = vpack.c.b16 %v2681, %v2681
      %v2714 = vpack.c.b16 %v2682, %v2682
      %v2715 = vpack.c.b16 %v2683, %v2683
      %v2716 = vpack.c.b16 %v2684, %v2684
      %v2717 = vpack.c.b16 %v2685, %v2685
      %v2718 = vpack.c.b16 %v2686, %v2686
      %v2719 = vpack.c.b16 %v2687, %v2687
      %v2720 = vpack.c.b16 %v2688, %v2688
      %v2721 = vpack.c.b16 %v2689, %v2689
      %v2722 = vpack.c.b16 %v2690, %v2690
      %v2723 = vpack.c.b16 %v2691, %v2691
      %v2724 = vpack.c.b16 %v2692, %v2692
      %v2725 = vpack.c.b16 %v2693, %v2693
      %v2726 = vpack.c.b16 %v2694, %v2694
      %v2727 = vpack.c.b16 %v2695, %v2695
      %v2728 = vpack.c.b16 %v2696, %v2696
      %v2729 = vpack.c.b16 %v2697, %v2697
      %v2730 = vpack.c.b16 %v2698, %v2698
      %v2731 = vpack.c.b16 %v2699, %v2699
      %v2732 = vpack.c.b16 %v2700, %v2700
      %v2733 = vpack.c.b16 %v2701, %v2701
      %v2734 = vpack.c.b16 %v2702, %v2702
      %v2735 = vpack.c.b16 %v2703, %v2703
      %v2736 = vpack.c.b16 %v2704, %v2704
      %v2737 = vpack.c.b16 %v2705, %v2705
      %vm2770 = vcmask 125952
      %2771 = vst.msk [vmem:[%s278] sm:$0xf] %vm2770, %v2706
      %2772 = vst.msk [vmem:[%s278 + $0x4] sm:$0xf] %vm2770, %v2707
      %2773 = vst.msk [vmem:[%s278 + $0x8] sm:$0xf] %vm2770, %v2708
      %2774 = vst.msk [vmem:[%s278 + $0xc] sm:$0xf] %vm2770, %v2709
      %2775 = vst.msk [vmem:[%s278 + $0x10] sm:$0xf] %vm2770, %v2710
      %2776 = vst.msk [vmem:[%s278 + $0x14] sm:$0xf] %vm2770, %v2711
      %2777 = vst.msk [vmem:[%s278 + $0x18] sm:$0xf] %vm2770, %v2712
      %2778 = vst.msk [vmem:[%s278 + $0x1c] sm:$0xf] %vm2770, %v2713
      %2779 = vst.msk [vmem:[%s278 + $0x20] sm:$0xf] %vm2770, %v2714
      %2780 = vst.msk [vmem:[%s278 + $0x24] sm:$0xf] %vm2770, %v2715
      %2781 = vst.msk [vmem:[%s278 + $0x28] sm:$0xf] %vm2770, %v2716
      %2782 = vst.msk [vmem:[%s278 + $0x2c] sm:$0xf] %vm2770, %v2717
      %2783 = vst.msk [vmem:[%s278 + $0x30] sm:$0xf] %vm2770, %v2718
      %2784 = vst.msk [vmem:[%s278 + $0x34] sm:$0xf] %vm2770, %v2719
      %2785 = vst.msk [vmem:[%s278 + $0x38] sm:$0xf] %vm2770, %v2720
      %2786 = vst.msk [vmem:[%s278 + $0x3c] sm:$0xf] %vm2770, %v2721
      %2787 = vst.msk [vmem:[%s278 + $0x40] sm:$0xf] %vm2770, %v2722
      %2788 = vst.msk [vmem:[%s278 + $0x44] sm:$0xf] %vm2770, %v2723
      %2789 = vst.msk [vmem:[%s278 + $0x48] sm:$0xf] %vm2770, %v2724
      %2790 = vst.msk [vmem:[%s278 + $0x4c] sm:$0xf] %vm2770, %v2725
      %2791 = vst.msk [vmem:[%s278 + $0x50] sm:$0xf] %vm2770, %v2726
      %2792 = vst.msk [vmem:[%s278 + $0x54] sm:$0xf] %vm2770, %v2727
      %2793 = vst.msk [vmem:[%s278 + $0x58] sm:$0xf] %vm2770, %v2728
      %2794 = vst.msk [vmem:[%s278 + $0x5c] sm:$0xf] %vm2770, %v2729
      %2795 = vst.msk [vmem:[%s278 + $0x60] sm:$0xf] %vm2770, %v2730
      %2796 = vst.msk [vmem:[%s278 + $0x64] sm:$0xf] %vm2770, %v2731
      %2797 = vst.msk [vmem:[%s278 + $0x68] sm:$0xf] %vm2770, %v2732
      %2798 = vst.msk [vmem:[%s278 + $0x6c] sm:$0xf] %vm2770, %v2733
      %2799 = vst.msk [vmem:[%s278 + $0x70] sm:$0xf] %vm2770, %v2734
      %2800 = vst.msk [vmem:[%s278 + $0x74] sm:$0xf] %vm2770, %v2735
      %2801 = vst.msk [vmem:[%s278 + $0x78] sm:$0xf] %vm2770, %v2736
      %2802 = vst.msk [vmem:[%s278 + $0x7c] sm:$0xf] %vm2770, %v2737
      %p2803 = scmp.lt.s32.totalorder %s18, 1
      %s2804 = scalar_select %p2803, %s18, 1
      %s2805 = smul.addr %s2804, 32
      %s2806 = smul.addr %s2805, 4
      %s2807 = scalar_lea.vmem %s7, %s2806
      // Predicated region
      $region49: #{mobilenetv3_forward.6} parent=47 // pred_check
        %p2808 = pneg %p188
      $region50: #{mobilenetv3_forward.6} parent=47 // pred_check_branch
        %2810 = sbr.rel (%p2808) target = $region52
      $region51: #{mobilenetv3_forward.6} parent=47 // pred_region
        _
      $region52: #{mobilenetv3_forward.6} parent=47 // pred_fallthru
        _
    $region48: #{mobilenetv3_forward.6} parent=5 // pred_fallthru
      _
    %p2811 = scmp.le.s32.totalorder 2, %s13
    // Predicated region
    $region53: #{mobilenetv3_forward.6} parent=5 // pred_check
      %p2812 = pneg %p2811
    $region54: #{mobilenetv3_forward.6} parent=5 // pred_check_branch
      %2814 = sbr.rel (%p2812) target = $region56
    $region55: #{mobilenetv3_forward.6} parent=5 // pred_region
      %s2815 = ssub.s32 %s13, 2
      // Predicated region
      $region57: #{mobilenetv3_forward.6} parent=55 // pred_check
        %p2816 = pneg %p194
      $region58: #{mobilenetv3_forward.6} parent=55 // pred_check_branch
        %2818 = sbr.rel (%p2816) target = $region60
      $region59: #{mobilenetv3_forward.6} parent=55 // pred_region
        %p2819 = scmp.lt.s32.totalorder %s19, 1
        %s2820 = scalar_select %p2819, %s19, 1
        %s2821 = smul.addr %s2820, 32
        %s2822 = smul.addr %s2821, 4
        %s2823 = scalar_lea.vmem %s7, %s2822
      $region60: #{mobilenetv3_forward.6} parent=55 // pred_fallthru
        _
    $region56: #{mobilenetv3_forward.6} parent=5 // pred_fallthru
      _
  $region6: #{mobilenetv3_forward.6} parent=0 // loop_footer
    %s17 = sadd.s32 1, %s13
  $region7: #{mobilenetv3_forward.6} parent=0 // loop_footer_branch
    %12 = sbr.rel target = $region3
  $region8: #{mobilenetv3_forward.6} parent=0 // loop_exit
    _

// kernel: mobilenetv3_forward.9
$region0: #{mobilenetv3_forward.9}
  #allocation0 [shape = 'u32[]', space=smem, size = 0x4, offset = 0x4, fixed_abs, tag = 'smem constant byte address 0x4 - core index']
  #allocation1 [shape = 'u32[144,128]{1,0:T(1,128)}', space=vmem, size = 0x12000, scoped, tag = 'internal scratch']
  %s0 = inlined_call_operand.vmem [shape: bf16[2,64,24], index: 0, kind: input, shape index: {}]
  %s1 = inlined_call_operand.vmem [shape: bf16[24,64], index: 1, kind: input, shape index: {}]
  %s2 = inlined_call_operand.vmem [shape: f32[1,64], index: 2, kind: input, shape index: {}]
  %s3 = inlined_call_operand.vmem [shape: bf16[64,10], index: 3, kind: input, shape index: {}]
  %s4 = inlined_call_operand.vmem [shape: f32[1,10], index: 4, kind: input, shape index: {}]
  %s5 = inlined_call_operand.hbm [shape: f32[2,10], index: 5, kind: output, shape index: {}]
  %s6 = sld [smem:[#allocation0]]
  $region30: #{mobilenetv3_forward.9} parent=0
    _
  %s8 = ssub.s32 1, %s6
  %s9 = scalar_select 0, %s8, %s6
  $region1: #{mobilenetv3_forward.9} parent=0
    #allocation2 [shape = 'u8[1024]{0}', space=vmem, size = 0x400, scoped, tag = 'output window, operand 0, single buffered']
    #allocation3 [shape = 's32[1]{0}', space=sflag, size = 0x4, scoped, tag = 'scoped memory for mobilenetv3_forward.9']
    %10 = vsyncpa [#allocation3], 0
    // Predicated region
    $region2: #{mobilenetv3_forward.9} parent=1 // pred_check
      _
    $region3: #{mobilenetv3_forward.9} parent=1 // pred_check_branch
      %12 = sbr.rel (0) target = $region5
    $region4: #{mobilenetv3_forward.9} parent=1 // pred_region
      _
    $region5: #{mobilenetv3_forward.9} parent=1 // pred_fallthru
      _
    // Predicated region
    $region6: #{mobilenetv3_forward.9} parent=1 // pred_check
      _
    $region7: #{mobilenetv3_forward.9} parent=1 // pred_check_branch
      %14 = sbr.rel (0) target = $region9
    $region8: #{mobilenetv3_forward.9} parent=1 // pred_region
      _
    $region9: #{mobilenetv3_forward.9} parent=1 // pred_fallthru
      _
    // Predicated region
    $region10: #{mobilenetv3_forward.9} parent=1 // pred_check
      _
    $region11: #{mobilenetv3_forward.9} parent=1 // pred_check_branch
      %16 = sbr.rel (0) target = $region13
    $region12: #{mobilenetv3_forward.9} parent=1 // pred_region
      _
    $region13: #{mobilenetv3_forward.9} parent=1 // pred_fallthru
      _
    // Predicated region
    $region14: #{mobilenetv3_forward.9} parent=1 // pred_check
      _
    $region15: #{mobilenetv3_forward.9} parent=1 // pred_check_branch
      %18 = sbr.rel (0) target = $region17
    $region16: #{mobilenetv3_forward.9} parent=1 // pred_region
      _
    $region17: #{mobilenetv3_forward.9} parent=1 // pred_fallthru
      _
    // Predicated region
    $region18: #{mobilenetv3_forward.9} parent=1 // pred_check
      _
    $region19: #{mobilenetv3_forward.9} parent=1 // pred_check_branch
      %20 = sbr.rel (0) target = $region21
    $region20: #{mobilenetv3_forward.9} parent=1 // pred_region
      _
    $region21: #{mobilenetv3_forward.9} parent=1 // pred_fallthru
      _
    %v22 = vld [vmem:[%s0] sm:$0xf]
    %v23 = vld [vmem:[%s0 + $0x4] sm:$0xf]
    %v24 = vld [vmem:[%s0 + $0x8] sm:$0xf]
    %v25 = vld [vmem:[%s0 + $0xc] sm:$0xf]
    %v26 = vld [vmem:[%s0 + $0x10] sm:$0xf]
    %v27 = vld [vmem:[%s0 + $0x14] sm:$0xf]
    %v28 = vld [vmem:[%s0 + $0x18] sm:$0xf]
    %v29 = vld [vmem:[%s0 + $0x1c] sm:$0xf]
    %v30 = vld [vmem:[%s0 + $0x20] sm:$0xf]
    %v31 = vld [vmem:[%s0 + $0x24] sm:$0xf]
    %v32 = vld [vmem:[%s0 + $0x28] sm:$0xf]
    %v33 = vld [vmem:[%s0 + $0x2c] sm:$0xf]
    %v34 = vld [vmem:[%s0 + $0x30] sm:$0xf]
    %v35 = vld [vmem:[%s0 + $0x34] sm:$0xf]
    %v36 = vld [vmem:[%s0 + $0x38] sm:$0xf]
    %v37 = vld [vmem:[%s0 + $0x3c] sm:$0xf]
    %v38 = vunpack.c.l.bf16 %v22
    %v39 = vunpack.c.l.bf16 %v23
    %v40 = vunpack.c.l.bf16 %v24
    %v41 = vunpack.c.l.bf16 %v25
    %v42 = vunpack.c.l.bf16 %v26
    %v43 = vunpack.c.l.bf16 %v27
    %v44 = vunpack.c.l.bf16 %v28
    %v45 = vunpack.c.l.bf16 %v29
    %v46 = vunpack.c.l.bf16 %v30
    %v47 = vunpack.c.l.bf16 %v31
    %v48 = vunpack.c.l.bf16 %v32
    %v49 = vunpack.c.l.bf16 %v33
    %v50 = vunpack.c.l.bf16 %v34
    %v51 = vunpack.c.l.bf16 %v35
    %v52 = vunpack.c.l.bf16 %v36
    %v53 = vunpack.c.l.bf16 %v37
    %vm54 = vcmask 195584
    %v55 = vsel %vm54, %v38, 0.0
    %v56 = vsel %vm54, %v39, 0.0
    %v57 = vadd.f32 %v55, %v56
    %v58 = vsel %vm54, %v40, 0.0
    %v59 = vadd.f32 %v57, %v58
    %v60 = vsel %vm54, %v41, 0.0
    %v61 = vadd.f32 %v59, %v60
    %v62 = vsel %vm54, %v42, 0.0
    %v63 = vadd.f32 %v61, %v62
    %v64 = vsel %vm54, %v43, 0.0
    %v65 = vadd.f32 %v63, %v64
    %v66 = vsel %vm54, %v44, 0.0
    %v67 = vadd.f32 %v65, %v66
    %v68 = vsel %vm54, %v45, 0.0
    %v69 = vadd.f32 %v67, %v68
    %v70 = vrot.slane %v69, 4
    %v71 = vadd.f32 %v69, %v70
    %v72 = vrot.slane %v71, 2
    %v73 = vadd.f32 %v71, %v72
    %v74 = vrot.slane %v73, 1
    %v75 = vadd.f32 %v73, %v74
    %v76 = vsel %vm54, %v46, 0.0
    %v77 = vsel %vm54, %v47, 0.0
    %v78 = vadd.f32 %v76, %v77
    %v79 = vsel %vm54, %v48, 0.0
    %v80 = vadd.f32 %v78, %v79
    %v81 = vsel %vm54, %v49, 0.0
    %v82 = vadd.f32 %v80, %v81
    %v83 = vsel %vm54, %v50, 0.0
    %v84 = vadd.f32 %v82, %v83
    %v85 = vsel %vm54, %v51, 0.0
    %v86 = vadd.f32 %v84, %v85
    %v87 = vsel %vm54, %v52, 0.0
    %v88 = vadd.f32 %v86, %v87
    %v89 = vsel %vm54, %v53, 0.0
    %v90 = vadd.f32 %v88, %v89
    %v91 = vrot.slane %v90, 4
    %v92 = vadd.f32 %v90, %v91
    %v93 = vrot.slane %v92, 2
    %v94 = vadd.f32 %v92, %v93
    %v95 = vrot.slane %v94, 1
    %v96 = vadd.f32 %v94, %v95
    %v97 = vrcp.pop 64.0
    %v98 = vmul.f32 %v75, %v97
    %v99 = vmul.f32 %v96, %v97
    %v100 = vpack.c.bf16 %v98, %v98
    %v101 = vpack.c.bf16 %v99, %v99
    %v102 = vld [vmem:[%s1] sm:$0xf]
    %v103 = vld [vmem:[%s1 + $0x4] sm:$0xf]
    %v104 = vld [vmem:[%s1 + $0x8] sm:$0xf]
    %v105 = vld [vmem:[%s2] sm:$0x1]
    %v107 = vlaneseq
    %v108 = vshrl.u32 %v107, 7
    %v109 = vsub.s32 0, %v108
    %v110 = vrot.slane %v105, %v109
    %v114 = vunpack.c.l.b16 %v100
    %v115 = vunpack.c.l.b16 %v101
    %vm116 = vcmask 1041409
    %v117 = vsel %vm116, %v115, %v114
    %v118 = vpack.c.b16 %v117, %v117
    %v122 = vunpack.c.l.b16 %v102
    %v123 = vunpack.c.l.b16 %v103
    %v124 = vunpack.c.l.b16 %v104
    %v125 = vpack.c.b16 %v123, %v122
    %v126 = vpack.c.b16 %v124, %v124
    %v129 = vsel %vm54, %v118, 0
    %vm131 = vcmask 1043456
    %v133 = vsel %vm131, %v126, 0
    %135 = vmatprep.subr.bf16.mxu0 0
    %136 = vmatpush1.bf16.msra.mxu0 0
    %137 = vmatprep.subr.bf16.mxu0 0
    %138 = vmatpush1.bf16.msra.mxu0 0
    %139 = vmatprep.subr.bf16.mxu0 0
    %140 = vmatpush1.bf16.msra.mxu0 0
    %141 = vmatprep.subr.bf16.mxu0 0
    %142 = vmatpush1.bf16.msra.mxu0 0
    %143 = vmatprep.subr.bf16.mxu0 0
    %144 = vmatpush1.bf16.msra.mxu0 0
    %145 = vmatprep.subr.bf16.mxu0 0
    %146 = vmatpush1.bf16.msra.mxu0 0
    %147 = vmatprep.subr.bf16.mxu0 0
    %148 = vmatpush1.bf16.msra.mxu0 %v133
    %149 = vmatprep.subr.bf16.mxu0 0
    %150 = vmatpush1.bf16.msra.mxu0 %v125
    %151 = vmatprep.subr.bf16.mxu0 0
    %152 = vmatpush2.bf16.msra.mxu0 0
    %153 = vmatprep.subr.bf16.mxu0 0
    %154 = vmatpush2.bf16.msra.mxu0 0
    %155 = vmatprep.subr.bf16.mxu0 0
    %156 = vmatpush2.bf16.msra.mxu0 0
    %157 = vmatprep.subr.bf16.mxu0 0
    %158 = vmatpush2.bf16.msra.mxu0 0
    %159 = vmatprep.subr.bf16.mxu0 0
    %160 = vmatpush2.bf16.msra.mxu0 0
    %161 = vmatprep.subr.bf16.mxu0 0
    %162 = vmatpush2.bf16.msra.mxu0 0
    %163 = vmatprep.subr.bf16.mxu0 0
    %164 = vmatpush2.bf16.msra.mxu0 0
    %165 = vmatprep.subr.bf16.mxu0 0
    %166 = vmatpush2.bf16.msra.mxu0 0
    %167 = vmatprep.mubr.bf16.mxu0 0
    %168 = vmatmul.mubr.bf16.gmra.mxu0 %v129
    %v169 = vpop.f32.mrf.mxu0
    %v170 = vadd.f32 %v110, %v169
    %v171 = vpop.f32.mrf.mxu0
    %v172 = vpop.f32.mrf.mxu0
    %v173 = vpop.f32.mrf.mxu0
    %174 = vdwg.mxu0
    %v175 = vadd.f32 %v170, 3.0
    %v176 = vmax.f32 %v175, 0.0
    %v177 = vmin.f32 %v176, 6.0
    %v178 = vmul.f32 %v170, %v177
    %v179 = vmul.f32 %v178, 0.16666667
    %v180 = vpack.c.bf16 %v179, %v179
    %v181 = vld [vmem:[%s3] sm:$0xf]
    %v182 = vld [vmem:[%s3 + $0x4] sm:$0xf]
    %v183 = vld [vmem:[%s3 + $0x8] sm:$0xf]
    %v184 = vld [vmem:[%s3 + $0xc] sm:$0xf]
    %v185 = vld [vmem:[%s3 + $0x10] sm:$0xf]
    %v186 = vld [vmem:[%s3 + $0x14] sm:$0xf]
    %v187 = vld [vmem:[%s3 + $0x18] sm:$0xf]
    %v188 = vld [vmem:[%s3 + $0x1c] sm:$0xf]
    %v189 = vld [vmem:[%s4] sm:$0x1]
    %v191 = vlaneseq
    %v192 = vshrl.u32 %v191, 7
    %v193 = vsub.s32 0, %v192
    %v194 = vrot.slane %v189, %v193
    %v204 = vunpack.c.l.b16 %v181
    %v205 = vunpack.c.l.b16 %v182
    %v206 = vunpack.c.l.b16 %v183
    %v207 = vunpack.c.l.b16 %v184
    %v208 = vunpack.c.l.b16 %v185
    %v209 = vunpack.c.l.b16 %v186
    %v210 = vunpack.c.l.b16 %v187
    %v211 = vunpack.c.l.b16 %v188
    %v212 = vpack.c.b16 %v205, %v204
    %v213 = vpack.c.b16 %v207, %v206
    %v214 = vpack.c.b16 %v209, %v208
    %v215 = vpack.c.b16 %v211, %v210
    %vm220 = vcmask 523264
    %v222 = vsel %vm220, %v180, 0
    %224 = vmatprep.subr.bf16.mxu0 0
    %225 = vmatpush1.bf16.msra.mxu0 0
    %226 = vmatprep.subr.bf16.mxu0 0
    %227 = vmatpush1.bf16.msra.mxu0 0
    %228 = vmatprep.subr.bf16.mxu0 0
    %229 = vmatpush1.bf16.msra.mxu0 0
    %230 = vmatprep.subr.bf16.mxu0 0
    %231 = vmatpush1.bf16.msra.mxu0 0
    %232 = vmatprep.subr.bf16.mxu0 0
    %233 = vmatpush1.bf16.msra.mxu0 %v215
    %234 = vmatprep.subr.bf16.mxu0 0
    %235 = vmatpush1.bf16.msra.mxu0 %v214
    %236 = vmatprep.subr.bf16.mxu0 0
    %237 = vmatpush1.bf16.msra.mxu0 %v213
    %238 = vmatprep.subr.bf16.mxu0 0
    %239 = vmatpush1.bf16.msra.mxu0 %v212
    %240 = vmatprep.subr.bf16.mxu0 0
    %241 = vmatpush2.bf16.msra.mxu0 0
    %242 = vmatprep.subr.bf16.mxu0 0
    %243 = vmatpush2.bf16.msra.mxu0 0
    %244 = vmatprep.subr.bf16.mxu0 0
    %245 = vmatpush2.bf16.msra.mxu0 0
    %246 = vmatprep.subr.bf16.mxu0 0
    %247 = vmatpush2.bf16.msra.mxu0 0
    %248 = vmatprep.subr.bf16.mxu0 0
    %249 = vmatpush2.bf16.msra.mxu0 0
    %250 = vmatprep.subr.bf16.mxu0 0
    %251 = vmatpush2.bf16.msra.mxu0 0
    %252 = vmatprep.subr.bf16.mxu0 0
    %253 = vmatpush2.bf16.msra.mxu0 0
    %254 = vmatprep.subr.bf16.mxu0 0
    %255 = vmatpush2.bf16.msra.mxu0 0
    %256 = vmatprep.mubr.bf16.mxu0 0
    %257 = vmatmul.mubr.bf16.gmra.mxu0 %v222
    %v258 = vpop.f32.mrf.mxu0
    %v259 = vadd.f32 %v194, %v258
    %v260 = vpop.f32.mrf.mxu0
    %v261 = vpop.f32.mrf.mxu0
    %v262 = vpop.f32.mrf.mxu0
    %263 = vdwg.mxu0
    %vm264 = vcmask 74752
    %265 = vst.msk [vmem:[#allocation2] sm:$0x3] %vm264, %v259
    // Predicated region
    $region22: #{mobilenetv3_forward.9} parent=1 // pred_check
      _
    $region23: #{mobilenetv3_forward.9} parent=1 // pred_check_branch
      %267 = sbr.rel (0) target = $region25
    $region24: #{mobilenetv3_forward.9} parent=1 // pred_region
      %s269 = ssub.s32 32, 32
      %270 = vsyncadd [#allocation3], %s269
      %s272 = sshll.u32 [#allocation2], 4
      %s273 = int_to_ptr.vmem [resolvable:$true] %s272
      %275 = dma.vmem_to_hbm [thread:$0]  %s273, 32, %s5, [#allocation3]
    $region25: #{mobilenetv3_forward.9} parent=1 // pred_fallthru
      _
    // Predicated region
    $region26: #{mobilenetv3_forward.9} parent=1 // pred_check
      _
    $region27: #{mobilenetv3_forward.9} parent=1 // pred_check_branch
      %277 = sbr.rel (0) target = $region29
    $region28: #{mobilenetv3_forward.9} parent=1 // pred_region
      %278 = dma.done [#allocation3], 32
    $region29: #{mobilenetv3_forward.9} parent=1 // pred_fallthru
      _
    %279 = vsyncpa [#allocation3], 1

// kernel: mobilenetv3_forward.8
$region0: #{mobilenetv3_forward.8}
  #allocation0 [shape = 'u32[]', space=smem, size = 0x4, offset = 0x4, fixed_abs, tag = 'smem constant byte address 0x4 - core index']
  #allocation1 [shape = 'u32[144,128]{1,0:T(1,128)}', space=vmem, size = 0x12000, scoped, tag = 'internal scratch']
  %s0 = inlined_call_operand.vmem [shape: bf16[2,9,9,48], index: 0, kind: input, shape index: {}]
  %s1 = inlined_call_operand.vmem [shape: bf16[2,9,9,48], index: 1, kind: input, shape index: {}]
  %s2 = inlined_call_operand.vmem [shape: bf16[2,9,9,48], index: 2, kind: input, shape index: {}]
  %s3 = inlined_call_operand.vmem [shape: bf16[2,9,9,48], index: 3, kind: input, shape index: {}]
  %s4 = inlined_call_operand.vmem [shape: f32[9,48], index: 4, kind: input, shape index: {}]
  %s5 = inlined_call_operand.vmem [shape: f32[1,48], index: 5, kind: input, shape index: {}]
  %s6 = inlined_call_operand.vmem [shape: f32[1,48], index: 6, kind: input, shape index: {}]
  %s7 = inlined_call_operand.vmem [shape: f32[48,12], index: 7, kind: input, shape index: {}]
  %s8 = inlined_call_operand.vmem [shape: f32[1,12], index: 8, kind: input, shape index: {}]
  %s9 = inlined_call_operand.vmem [shape: f32[12,48], index: 9, kind: input, shape index: {}]
  %s10 = inlined_call_operand.vmem [shape: f32[1,48], index: 10, kind: input, shape index: {}]
  %s11 = inlined_call_operand.vmem [shape: bf16[48,24], index: 11, kind: input, shape index: {}]
  %s12 = inlined_call_operand.vmem [shape: f32[1,24], index: 12, kind: input, shape index: {}]
  %s13 = inlined_call_operand.vmem [shape: f32[1,24], index: 13, kind: input, shape index: {}]
  %s14 = inlined_call_operand.vmem [shape: bf16[2,64,24], index: 14, kind: output, shape index: {}]
  %s15 = sld [smem:[#allocation0]]
  $region89: #{mobilenetv3_forward.8} parent=0
    _
  %s17 = ssub.s32 1, %s15
  %s18 = scalar_select 0, %s17, %s15
  loop: start=0, step=1, limit=4
  $region2: #{mobilenetv3_forward.8} parent=0 // loop_pre_header
    _
  $region3: #{mobilenetv3_forward.8} parent=0 // loop_header
    %s20 = sphi 0, %s24
    %p21 = scmp.ge.s32.totalorder %s20, 4
    %s30 = sphi 0, %s32
    %s33 = sphi 0, %s30
    %s34 = sphi 0, %s33
    %s50 = sphi 0, %s34
    %s56 = sphi 0, %s58
    %s59 = sphi 0, %s56
    %s60 = sphi 0, %s59
    %s76 = sphi 0, %s60
    %s82 = sphi 0, %s84
    %s85 = sphi 0, %s82
    %s86 = sphi 0, %s85
    %s102 = sphi 0, %s86
    %s108 = sphi 0, %s110
    %s111 = sphi 0, %s108
    %s112 = sphi 0, %s111
    %s128 = sphi 0, %s112
    %s132 = sphi 0, %s132
    %s134 = sphi 0, %s132
    %s135 = sphi 0, %s134
    %s149 = sphi 0, %s135
    %s153 = sphi 0, %s153
    %s155 = sphi 0, %s153
    %s156 = sphi 0, %s155
    %s170 = sphi 0, %s156
    %s174 = sphi 0, %s174
    %s176 = sphi 0, %s174
    %s177 = sphi 0, %s176
    %s191 = sphi 0, %s177
    %s195 = sphi 0, %s195
    %s197 = sphi 0, %s195
    %s198 = sphi 0, %s197
    %s212 = sphi 0, %s198
    %s216 = sphi 0, %s216
    %s218 = sphi 0, %s216
    %s219 = sphi 0, %s218
    %s233 = sphi 0, %s219
    %s237 = sphi 0, %s237
    %s239 = sphi 0, %s237
    %s240 = sphi 0, %s239
    %s254 = sphi 0, %s240
    %s258 = sphi 0, %s258
    %s260 = sphi 0, %s258
    %s261 = sphi 0, %s260
    %s275 = sphi 0, %s261
    %s279 = sphi 0, %s279
    %s281 = sphi 0, %s279
    %s282 = sphi 0, %s281
    %s296 = sphi 0, %s282
    %s300 = sphi 0, %s300
    %s302 = sphi 0, %s300
    %s303 = sphi 0, %s302
    %s317 = sphi 0, %s303
    %s321 = sphi 0, %s321
    %s323 = sphi 0, %s321
    %s324 = sphi 0, %s323
    %s338 = sphi 0, %s324
    %s344 = sphi 0, %s346
    %s347 = sphi 0, %s344
    %s348 = sphi 0, %s347
    %s364 = sphi 0, %s348
  $region4: #{mobilenetv3_forward.8} parent=0 // loop_header_branch
    %23 = sbr.rel (%p21) target = $region8
  $region5: #{mobilenetv3_forward.8} parent=0 // loop_body
    %s25 = ssub.s32 %s20, 1
    %s26 = ssub.s32 %s20, 2
    %s27 = sadd.s32 %s20, 1
    %s28 = ssub.s32 %s20, %s27
    %p29 = scmp.eq.s32.totalorder %s28, 0
    %s31 = sadd.s32 %s30, 1
    %s32 = scalar_select %p29, %s30, %s31
    %p35 = pneg %p29
    %p36 = scmp.eq.s32.totalorder %s20, 1
    %p37 = por %p35, %p36
    %p38 = scmp.ne.s32.totalorder %s30, %s33
    %p39 = scmp.eq.s32.totalorder %s20, 0
    %p40 = por %p38, %p39
    %p41 = scmp.ne.s32.totalorder %s30, %s33
    %p42 = scmp.eq.s32.totalorder %s25, 1
    %p43 = por %p41, %p42
    %p44 = scmp.ne.s32.totalorder %s33, %s34
    %p45 = scmp.eq.s32.totalorder %s25, 0
    %p46 = por %p44, %p45
    %p47 = scmp.ne.s32.totalorder %s33, %s34
    %p48 = scmp.eq.s32.totalorder %s26, 1
    %p49 = por %p47, %p48
    %p51 = scmp.ne.s32.totalorder %s34, %s50
    %p52 = scmp.eq.s32.totalorder %s26, 0
    %p53 = por %p51, %p52
    %s54 = ssub.s32 %s20, %s27
    %p55 = scmp.eq.s32.totalorder %s54, 0
    %s57 = sadd.s32 %s56, 1
    %s58 = scalar_select %p55, %s56, %s57
    %p61 = pneg %p55
    %p62 = scmp.eq.s32.totalorder %s20, 1
    %p63 = por %p61, %p62
    %p64 = scmp.ne.s32.totalorder %s56, %s59
    %p65 = scmp.eq.s32.totalorder %s20, 0
    %p66 = por %p64, %p65
    %p67 = scmp.ne.s32.totalorder %s56, %s59
    %p68 = scmp.eq.s32.totalorder %s25, 1
    %p69 = por %p67, %p68
    %p70 = scmp.ne.s32.totalorder %s59, %s60
    %p71 = scmp.eq.s32.totalorder %s25, 0
    %p72 = por %p70, %p71
    %p73 = scmp.ne.s32.totalorder %s59, %s60
    %p74 = scmp.eq.s32.totalorder %s26, 1
    %p75 = por %p73, %p74
    %p77 = scmp.ne.s32.totalorder %s60, %s76
    %p78 = scmp.eq.s32.totalorder %s26, 0
    %p79 = por %p77, %p78
    %s80 = ssub.s32 %s20, %s27
    %p81 = scmp.eq.s32.totalorder %s80, 0
    %s83 = sadd.s32 %s82, 1
    %s84 = scalar_select %p81, %s82, %s83
    %p87 = pneg %p81
    %p88 = scmp.eq.s32.totalorder %s20, 1
    %p89 = por %p87, %p88
    %p90 = scmp.ne.s32.totalorder %s82, %s85
    %p91 = scmp.eq.s32.totalorder %s20, 0
    %p92 = por %p90, %p91
    %p93 = scmp.ne.s32.totalorder %s82, %s85
    %p94 = scmp.eq.s32.totalorder %s25, 1
    %p95 = por %p93, %p94
    %p96 = scmp.ne.s32.totalorder %s85, %s86
    %p97 = scmp.eq.s32.totalorder %s25, 0
    %p98 = por %p96, %p97
    %p99 = scmp.ne.s32.totalorder %s85, %s86
    %p100 = scmp.eq.s32.totalorder %s26, 1
    %p101 = por %p99, %p100
    %p103 = scmp.ne.s32.totalorder %s86, %s102
    %p104 = scmp.eq.s32.totalorder %s26, 0
    %p105 = por %p103, %p104
    %s106 = ssub.s32 %s20, %s27
    %p107 = scmp.eq.s32.totalorder %s106, 0
    %s109 = sadd.s32 %s108, 1
    %s110 = scalar_select %p107, %s108, %s109
    %p113 = pneg %p107
    %p114 = scmp.eq.s32.totalorder %s20, 1
    %p115 = por %p113, %p114
    %p116 = scmp.ne.s32.totalorder %s108, %s111
    %p117 = scmp.eq.s32.totalorder %s20, 0
    %p118 = por %p116, %p117
    %p119 = scmp.ne.s32.totalorder %s108, %s111
    %p120 = scmp.eq.s32.totalorder %s25, 1
    %p121 = por %p119, %p120
    %p122 = scmp.ne.s32.totalorder %s111, %s112
    %p123 = scmp.eq.s32.totalorder %s25, 0
    %p124 = por %p122, %p123
    %p125 = scmp.ne.s32.totalorder %s111, %s112
    %p126 = scmp.eq.s32.totalorder %s26, 1
    %p127 = por %p125, %p126
    %p129 = scmp.ne.s32.totalorder %s112, %s128
    %p130 = scmp.eq.s32.totalorder %s26, 0
    %p131 = por %p129, %p130
    %s133 = sadd.s32 %s132, 1
    %p136 = scmp.eq.s32.totalorder %s20, 1
    %p137 = scmp.ne.s32.totalorder %s132, %s134
    %p138 = scmp.eq.s32.totalorder %s20, 0
    %p139 = por %p137, %p138
    %p140 = scmp.ne.s32.totalorder %s132, %s134
    %p141 = scmp.eq.s32.totalorder %s25, 1
    %p142 = por %p140, %p141
    %p143 = scmp.ne.s32.totalorder %s134, %s135
    %p144 = scmp.eq.s32.totalorder %s25, 0
    %p145 = por %p143, %p144
    %p146 = scmp.ne.s32.totalorder %s134, %s135
    %p147 = scmp.eq.s32.totalorder %s26, 1
    %p148 = por %p146, %p147
    %p150 = scmp.ne.s32.totalorder %s135, %s149
    %p151 = scmp.eq.s32.totalorder %s26, 0
    %p152 = por %p150, %p151
    %s154 = sadd.s32 %s153, 1
    %p157 = scmp.eq.s32.totalorder %s20, 1
    %p158 = scmp.ne.s32.totalorder %s153, %s155
    %p159 = scmp.eq.s32.totalorder %s20, 0
    %p160 = por %p158, %p159
    %p161 = scmp.ne.s32.totalorder %s153, %s155
    %p162 = scmp.eq.s32.totalorder %s25, 1
    %p163 = por %p161, %p162
    %p164 = scmp.ne.s32.totalorder %s155, %s156
    %p165 = scmp.eq.s32.totalorder %s25, 0
    %p166 = por %p164, %p165
    %p167 = scmp.ne.s32.totalorder %s155, %s156
    %p168 = scmp.eq.s32.totalorder %s26, 1
    %p169 = por %p167, %p168
    %p171 = scmp.ne.s32.totalorder %s156, %s170
    %p172 = scmp.eq.s32.totalorder %s26, 0
    %p173 = por %p171, %p172
    %s175 = sadd.s32 %s174, 1
    %p178 = scmp.eq.s32.totalorder %s20, 1
    %p179 = scmp.ne.s32.totalorder %s174, %s176
    %p180 = scmp.eq.s32.totalorder %s20, 0
    %p181 = por %p179, %p180
    %p182 = scmp.ne.s32.totalorder %s174, %s176
    %p183 = scmp.eq.s32.totalorder %s25, 1
    %p184 = por %p182, %p183
    %p185 = scmp.ne.s32.totalorder %s176, %s177
    %p186 = scmp.eq.s32.totalorder %s25, 0
    %p187 = por %p185, %p186
    %p188 = scmp.ne.s32.totalorder %s176, %s177
    %p189 = scmp.eq.s32.totalorder %s26, 1
    %p190 = por %p188, %p189
    %p192 = scmp.ne.s32.totalorder %s177, %s191
    %p193 = scmp.eq.s32.totalorder %s26, 0
    %p194 = por %p192, %p193
    %s196 = sadd.s32 %s195, 1
    %p199 = scmp.eq.s32.totalorder %s20, 1
    %p200 = scmp.ne.s32.totalorder %s195, %s197
    %p201 = scmp.eq.s32.totalorder %s20, 0
    %p202 = por %p200, %p201
    %p203 = scmp.ne.s32.totalorder %s195, %s197
    %p204 = scmp.eq.s32.totalorder %s25, 1
    %p205 = por %p203, %p204
    %p206 = scmp.ne.s32.totalorder %s197, %s198
    %p207 = scmp.eq.s32.totalorder %s25, 0
    %p208 = por %p206, %p207
    %p209 = scmp.ne.s32.totalorder %s197, %s198
    %p210 = scmp.eq.s32.totalorder %s26, 1
    %p211 = por %p209, %p210
    %p213 = scmp.ne.s32.totalorder %s198, %s212
    %p214 = scmp.eq.s32.totalorder %s26, 0
    %p215 = por %p213, %p214
    %s217 = sadd.s32 %s216, 1
    %p220 = scmp.eq.s32.totalorder %s20, 1
    %p221 = scmp.ne.s32.totalorder %s216, %s218
    %p222 = scmp.eq.s32.totalorder %s20, 0
    %p223 = por %p221, %p222
    %p224 = scmp.ne.s32.totalorder %s216, %s218
    %p225 = scmp.eq.s32.totalorder %s25, 1
    %p226 = por %p224, %p225
    %p227 = scmp.ne.s32.totalorder %s218, %s219
    %p228 = scmp.eq.s32.totalorder %s25, 0
    %p229 = por %p227, %p228
    %p230 = scmp.ne.s32.totalorder %s218, %s219
    %p231 = scmp.eq.s32.totalorder %s26, 1
    %p232 = por %p230, %p231
    %p234 = scmp.ne.s32.totalorder %s219, %s233
    %p235 = scmp.eq.s32.totalorder %s26, 0
    %p236 = por %p234, %p235
    %s238 = sadd.s32 %s237, 1
    %p241 = scmp.eq.s32.totalorder %s20, 1
    %p242 = scmp.ne.s32.totalorder %s237, %s239
    %p243 = scmp.eq.s32.totalorder %s20, 0
    %p244 = por %p242, %p243
    %p245 = scmp.ne.s32.totalorder %s237, %s239
    %p246 = scmp.eq.s32.totalorder %s25, 1
    %p247 = por %p245, %p246
    %p248 = scmp.ne.s32.totalorder %s239, %s240
    %p249 = scmp.eq.s32.totalorder %s25, 0
    %p250 = por %p248, %p249
    %p251 = scmp.ne.s32.totalorder %s239, %s240
    %p252 = scmp.eq.s32.totalorder %s26, 1
    %p253 = por %p251, %p252
    %p255 = scmp.ne.s32.totalorder %s240, %s254
    %p256 = scmp.eq.s32.totalorder %s26, 0
    %p257 = por %p255, %p256
    %s259 = sadd.s32 %s258, 1
    %p262 = scmp.eq.s32.totalorder %s20, 1
    %p263 = scmp.ne.s32.totalorder %s258, %s260
    %p264 = scmp.eq.s32.totalorder %s20, 0
    %p265 = por %p263, %p264
    %p266 = scmp.ne.s32.totalorder %s258, %s260
    %p267 = scmp.eq.s32.totalorder %s25, 1
    %p268 = por %p266, %p267
    %p269 = scmp.ne.s32.totalorder %s260, %s261
    %p270 = scmp.eq.s32.totalorder %s25, 0
    %p271 = por %p269, %p270
    %p272 = scmp.ne.s32.totalorder %s260, %s261
    %p273 = scmp.eq.s32.totalorder %s26, 1
    %p274 = por %p272, %p273
    %p276 = scmp.ne.s32.totalorder %s261, %s275
    %p277 = scmp.eq.s32.totalorder %s26, 0
    %p278 = por %p276, %p277
    %s280 = sadd.s32 %s279, 1
    %p283 = scmp.eq.s32.totalorder %s20, 1
    %p284 = scmp.ne.s32.totalorder %s279, %s281
    %p285 = scmp.eq.s32.totalorder %s20, 0
    %p286 = por %p284, %p285
    %p287 = scmp.ne.s32.totalorder %s279, %s281
    %p288 = scmp.eq.s32.totalorder %s25, 1
    %p289 = por %p287, %p288
    %p290 = scmp.ne.s32.totalorder %s281, %s282
    %p291 = scmp.eq.s32.totalorder %s25, 0
    %p292 = por %p290, %p291
    %p293 = scmp.ne.s32.totalorder %s281, %s282
    %p294 = scmp.eq.s32.totalorder %s26, 1
    %p295 = por %p293, %p294
    %p297 = scmp.ne.s32.totalorder %s282, %s296
    %p298 = scmp.eq.s32.totalorder %s26, 0
    %p299 = por %p297, %p298
    %s301 = sadd.s32 %s300, 1
    %p304 = scmp.eq.s32.totalorder %s20, 1
    %p305 = scmp.ne.s32.totalorder %s300, %s302
    %p306 = scmp.eq.s32.totalorder %s20, 0
    %p307 = por %p305, %p306
    %p308 = scmp.ne.s32.totalorder %s300, %s302
    %p309 = scmp.eq.s32.totalorder %s25, 1
    %p310 = por %p308, %p309
    %p311 = scmp.ne.s32.totalorder %s302, %s303
    %p312 = scmp.eq.s32.totalorder %s25, 0
    %p313 = por %p311, %p312
    %p314 = scmp.ne.s32.totalorder %s302, %s303
    %p315 = scmp.eq.s32.totalorder %s26, 1
    %p316 = por %p314, %p315
    %p318 = scmp.ne.s32.totalorder %s303, %s317
    %p319 = scmp.eq.s32.totalorder %s26, 0
    %p320 = por %p318, %p319
    %s322 = sadd.s32 %s321, 1
    %p325 = scmp.eq.s32.totalorder %s20, 1
    %p326 = scmp.ne.s32.totalorder %s321, %s323
    %p327 = scmp.eq.s32.totalorder %s20, 0
    %p328 = por %p326, %p327
    %p329 = scmp.ne.s32.totalorder %s321, %s323
    %p330 = scmp.eq.s32.totalorder %s25, 1
    %p331 = por %p329, %p330
    %p332 = scmp.ne.s32.totalorder %s323, %s324
    %p333 = scmp.eq.s32.totalorder %s25, 0
    %p334 = por %p332, %p333
    %p335 = scmp.ne.s32.totalorder %s323, %s324
    %p336 = scmp.eq.s32.totalorder %s26, 1
    %p337 = por %p335, %p336
    %p339 = scmp.ne.s32.totalorder %s324, %s338
    %p340 = scmp.eq.s32.totalorder %s26, 0
    %p341 = por %p339, %p340
    %s342 = ssub.s32 %s20, %s27
    %p343 = scmp.eq.s32.totalorder %s342, 0
    %s345 = sadd.s32 %s344, 1
    %s346 = scalar_select %p343, %s344, %s345
    %p349 = pneg %p343
    %p350 = scmp.eq.s32.totalorder %s20, 1
    %p351 = por %p349, %p350
    %p352 = scmp.ne.s32.totalorder %s344, %s347
    %p353 = scmp.eq.s32.totalorder %s20, 0
    %p354 = por %p352, %p353
    %p355 = scmp.ne.s32.totalorder %s344, %s347
    %p356 = scmp.eq.s32.totalorder %s25, 1
    %p357 = por %p355, %p356
    %p358 = scmp.ne.s32.totalorder %s347, %s348
    %p359 = scmp.eq.s32.totalorder %s25, 0
    %p360 = por %p358, %p359
    %p361 = scmp.ne.s32.totalorder %s347, %s348
    %p362 = scmp.eq.s32.totalorder %s26, 1
    %p363 = por %p361, %p362
    %p365 = scmp.ne.s32.totalorder %s348, %s364
    %p366 = scmp.eq.s32.totalorder %s26, 0
    %p367 = por %p365, %p366
    %p368 = scmp.le.s32.totalorder 1, %s20
    %p369 = scmp.lt.s32.totalorder %s20, 3
    %p370 = pnand %p368, %p369
    %p371 = pneg %p370
    // Predicated region
    $region9: #{mobilenetv3_forward.8} parent=5 // pred_check
      _
    $region10: #{mobilenetv3_forward.8} parent=5 // pred_check_branch
      %373 = sbr.rel (%p370) target = $region12
    $region11: #{mobilenetv3_forward.8} parent=5 // pred_region
      %s374 = ssub.s32 %s20, 1
      // Predicated region
      $region13: #{mobilenetv3_forward.8} parent=11 // pred_check
        %p375 = pneg %p145
      $region14: #{mobilenetv3_forward.8} parent=11 // pred_check_branch
        %377 = sbr.rel (%p375) target = $region16
      $region15: #{mobilenetv3_forward.8} parent=11 // pred_region
        _
      $region16: #{mobilenetv3_forward.8} parent=11 // pred_fallthru
        _
      // Predicated region
      $region17: #{mobilenetv3_forward.8} parent=11 // pred_check
        %p378 = pneg %p166
      $region18: #{mobilenetv3_forward.8} parent=11 // pred_check_branch
        %380 = sbr.rel (%p378) target = $region20
      $region19: #{mobilenetv3_forward.8} parent=11 // pred_region
        _
      $region20: #{mobilenetv3_forward.8} parent=11 // pred_fallthru
        _
      // Predicated region
      $region21: #{mobilenetv3_forward.8} parent=11 // pred_check
        %p381 = pneg %p187
      $region22: #{mobilenetv3_forward.8} parent=11 // pred_check_branch
        %383 = sbr.rel (%p381) target = $region24
      $region23: #{mobilenetv3_forward.8} parent=11 // pred_region
        _
      $region24: #{mobilenetv3_forward.8} parent=11 // pred_fallthru
        _
      // Predicated region
      $region25: #{mobilenetv3_forward.8} parent=11 // pred_check
        %p384 = pneg %p208
      $region26: #{mobilenetv3_forward.8} parent=11 // pred_check_branch
        %386 = sbr.rel (%p384) target = $region28
      $region27: #{mobilenetv3_forward.8} parent=11 // pred_region
        _
      $region28: #{mobilenetv3_forward.8} parent=11 // pred_fallthru
        _
      // Predicated region
      $region29: #{mobilenetv3_forward.8} parent=11 // pred_check
        %p387 = pneg %p229
      $region30: #{mobilenetv3_forward.8} parent=11 // pred_check_branch
        %389 = sbr.rel (%p387) target = $region32
      $region31: #{mobilenetv3_forward.8} parent=11 // pred_region
        _
      $region32: #{mobilenetv3_forward.8} parent=11 // pred_fallthru
        _
      // Predicated region
      $region33: #{mobilenetv3_forward.8} parent=11 // pred_check
        %p390 = pneg %p250
      $region34: #{mobilenetv3_forward.8} parent=11 // pred_check_branch
        %392 = sbr.rel (%p390) target = $region36
      $region35: #{mobilenetv3_forward.8} parent=11 // pred_region
        _
      $region36: #{mobilenetv3_forward.8} parent=11 // pred_fallthru
        _
      // Predicated region
      $region37: #{mobilenetv3_forward.8} parent=11 // pred_check
        %p393 = pneg %p271
      $region38: #{mobilenetv3_forward.8} parent=11 // pred_check_branch
        %395 = sbr.rel (%p393) target = $region40
      $region39: #{mobilenetv3_forward.8} parent=11 // pred_region
        _
      $region40: #{mobilenetv3_forward.8} parent=11 // pred_fallthru
        _
      // Predicated region
      $region41: #{mobilenetv3_forward.8} parent=11 // pred_check
        %p396 = pneg %p292
      $region42: #{mobilenetv3_forward.8} parent=11 // pred_check_branch
        %398 = sbr.rel (%p396) target = $region44
      $region43: #{mobilenetv3_forward.8} parent=11 // pred_region
        _
      $region44: #{mobilenetv3_forward.8} parent=11 // pred_fallthru
        _
      // Predicated region
      $region45: #{mobilenetv3_forward.8} parent=11 // pred_check
        %p399 = pneg %p313
      $region46: #{mobilenetv3_forward.8} parent=11 // pred_check_branch
        %401 = sbr.rel (%p399) target = $region48
      $region47: #{mobilenetv3_forward.8} parent=11 // pred_region
        _
      $region48: #{mobilenetv3_forward.8} parent=11 // pred_fallthru
        _
      // Predicated region
      $region49: #{mobilenetv3_forward.8} parent=11 // pred_check
        %p402 = pneg %p334
      $region50: #{mobilenetv3_forward.8} parent=11 // pred_check_branch
        %404 = sbr.rel (%p402) target = $region52
      $region51: #{mobilenetv3_forward.8} parent=11 // pred_region
        _
      $region52: #{mobilenetv3_forward.8} parent=11 // pred_fallthru
        _
    $region12: #{mobilenetv3_forward.8} parent=5 // pred_fallthru
      _
    %p405 = scmp.lt.s32.totalorder %s20, 2
    // Predicated region
    $region53: #{mobilenetv3_forward.8} parent=5 // pred_check
      %p406 = pneg %p405
    $region54: #{mobilenetv3_forward.8} parent=5 // pred_check_branch
      %408 = sbr.rel (%p406) target = $region56
    $region55: #{mobilenetv3_forward.8} parent=5 // pred_region
      // Predicated region
      $region57: #{mobilenetv3_forward.8} parent=55 // pred_check
        %p409 = pneg %p40
      $region58: #{mobilenetv3_forward.8} parent=55 // pred_check_branch
        %411 = sbr.rel (%p409) target = $region60
      $region59: #{mobilenetv3_forward.8} parent=55 // pred_region
        %p412 = scmp.lt.s32.totalorder %s20, 1
        %s413 = scalar_select %p412, %s20, 1
        %s414 = smul.addr %s413, 18
        %s415 = smul.addr %s414, 4
        %s416 = scalar_lea.vmem %s0, %s415
      $region60: #{mobilenetv3_forward.8} parent=55 // pred_fallthru
        _
      // Predicated region
      $region61: #{mobilenetv3_forward.8} parent=55 // pred_check
        %p417 = pneg %p66
      $region62: #{mobilenetv3_forward.8} parent=55 // pred_check_branch
        %419 = sbr.rel (%p417) target = $region64
      $region63: #{mobilenetv3_forward.8} parent=55 // pred_region
        %p420 = scmp.lt.s32.totalorder %s20, 1
        %s421 = scalar_select %p420, %s20, 1
        %s422 = smul.addr %s421, 18
        %s423 = smul.addr %s422, 4
        %s424 = scalar_lea.vmem %s1, %s423
      $region64: #{mobilenetv3_forward.8} parent=55 // pred_fallthru
        _
      // Predicated region
      $region65: #{mobilenetv3_forward.8} parent=55 // pred_check
        %p425 = pneg %p92
      $region66: #{mobilenetv3_forward.8} parent=55 // pred_check_branch
        %427 = sbr.rel (%p425) target = $region68
      $region67: #{mobilenetv3_forward.8} parent=55 // pred_region
        %p428 = scmp.lt.s32.totalorder %s20, 1
        %s429 = scalar_select %p428, %s20, 1
        %s430 = smul.addr %s429, 18
        %s431 = smul.addr %s430, 4
        %s432 = scalar_lea.vmem %s2, %s431
      $region68: #{mobilenetv3_forward.8} parent=55 // pred_fallthru
        _
      // Predicated region
      $region69: #{mobilenetv3_forward.8} parent=55 // pred_check
        %p433 = pneg %p118
      $region70: #{mobilenetv3_forward.8} parent=55 // pred_check_branch
        %435 = sbr.rel (%p433) target = $region72
      $region71: #{mobilenetv3_forward.8} parent=55 // pred_region
        %p436 = scmp.lt.s32.totalorder %s20, 1
        %s437 = scalar_select %p436, %s20, 1
        %s438 = smul.addr %s437, 18
        %s439 = smul.addr %s438, 4
        %s440 = scalar_lea.vmem %s3, %s439
      $region72: #{mobilenetv3_forward.8} parent=55 // pred_fallthru
        _
    $region56: #{mobilenetv3_forward.8} parent=5 // pred_fallthru
      _
    %p441 = scmp.le.s32.totalorder 1, %s20
    %p442 = scmp.lt.s32.totalorder %s20, 3
    %p443 = pnand %p441, %p442
    %p444 = pneg %p443
    // Predicated region
    $region73: #{mobilenetv3_forward.8} parent=5 // pred_check
      _
    $region74: #{mobilenetv3_forward.8} parent=5 // pred_check_branch
      %446 = sbr.rel (%p443) target = $region76
    $region75: #{mobilenetv3_forward.8} parent=5 // pred_region
      %s447 = ssub.s32 %s20, 1
      %p448 = scmp.lt.s32.totalorder %s25, 1
      %s449 = scalar_select %p448, %s25, 1
      %s450 = smul.addr %s449, 18
      %s451 = smul.addr %s450, 4
      %s452 = scalar_lea.vmem %s0, %s451
      %p453 = pneg %p46
      %p454 = pneg %p43
      %p455 = scmp.lt.s32.totalorder %s25, 1
      %s456 = scalar_select %p455, %s25, 1
      %s457 = smul.addr %s456, 18
      %s458 = smul.addr %s457, 4
      %s459 = scalar_lea.vmem %s1, %s458
      %p460 = pneg %p72
      %p461 = pneg %p69
      %p462 = scmp.lt.s32.totalorder %s25, 1
      %s463 = scalar_select %p462, %s25, 1
      %s464 = smul.addr %s463, 18
      %s465 = smul.addr %s464, 4
      %s466 = scalar_lea.vmem %s2, %s465
      %p467 = pneg %p98
      %p468 = pneg %p95
      %p469 = scmp.lt.s32.totalorder %s25, 1
      %s470 = scalar_select %p469, %s25, 1
      %s471 = smul.addr %s470, 18
      %s472 = smul.addr %s471, 4
      %s473 = scalar_lea.vmem %s3, %s472
      %p474 = pneg %p124
      %p475 = pneg %p121
      %p476 = pneg %p145
      %p477 = pneg %p142
      %p478 = pneg %p166
      %p479 = pneg %p163
      %p480 = pneg %p187
      %p481 = pneg %p184
      %p482 = pneg %p208
      %p483 = pneg %p205
      %p484 = pneg %p229
      %p485 = pneg %p226
      %p486 = pneg %p250
      %p487 = pneg %p247
      %p488 = pneg %p271
      %p489 = pneg %p268
      %p490 = pneg %p292
      %p491 = pneg %p289
      %p492 = pneg %p313
      %p493 = pneg %p310
      %p494 = pneg %p334
      %p495 = pneg %p331
      %p496 = pneg %p360
      %p497 = pneg %p357
      %p498 = scmp.lt.s32.totalorder %s25, 1
      %s499 = scalar_select %p498, %s25, 1
      %s500 = smul.addr %s499, 8
      %s501 = smul.addr %s500, 4
      %s502 = scalar_lea.vmem %s14, %s501
      %p503 = scmp.lt.s32.totalorder %s25, 1
      %s504 = scalar_select %p503, %s25, 1
      %s505 = smul.addr %s504, 18
      %s506 = smul.addr %s505, 4
      %s507 = scalar_lea.vmem %s0, %s506
      %p508 = scmp.lt.s32.totalorder %s25, 1
      %s509 = scalar_select %p508, %s25, 1
      %s510 = smul.addr %s509, 18
      %s511 = smul.addr %s510, 4
      %s512 = scalar_lea.vmem %s1, %s511
      %p513 = scmp.lt.s32.totalorder %s25, 1
      %s514 = scalar_select %p513, %s25, 1
      %s515 = smul.addr %s514, 18
      %s516 = smul.addr %s515, 4
      %s517 = scalar_lea.vmem %s2, %s516
      %p518 = scmp.lt.s32.totalorder %s25, 1
      %s519 = scalar_select %p518, %s25, 1
      %s520 = smul.addr %s519, 18
      %s521 = smul.addr %s520, 4
      %s522 = scalar_lea.vmem %s3, %s521
      %p523 = scmp.lt.s32.totalorder %s25, 1
      %s524 = scalar_select %p523, %s25, 1
      %s525 = smul.addr %s524, 8
      %s526 = smul.addr %s525, 4
      %s527 = scalar_lea.vmem %s14, %s526
      %v529 = vld [vmem:[%s507] sm:$0xf]
      %v530 = vld [vmem:[%s507 + $0x4] sm:$0x1]
      %v531 = vld [vmem:[%s507 + $0x8] sm:$0xf]
      %v532 = vld [vmem:[%s507 + $0xc] sm:$0x1]
      %v533 = vld [vmem:[%s507 + $0x10] sm:$0xf]
      %v534 = vld [vmem:[%s507 + $0x14] sm:$0x1]
      %v535 = vld [vmem:[%s507 + $0x18] sm:$0xf]
      %v536 = vld [vmem:[%s507 + $0x1c] sm:$0x1]
      %v537 = vld [vmem:[%s507 + $0x20] sm:$0xf]
      %v538 = vld [vmem:[%s507 + $0x24] sm:$0x1]
      %v539 = vld [vmem:[%s507 + $0x28] sm:$0xf]
      %v540 = vld [vmem:[%s507 + $0x2c] sm:$0x1]
      %v541 = vld [vmem:[%s507 + $0x30] sm:$0xf]
      %v542 = vld [vmem:[%s507 + $0x34] sm:$0x1]
      %v543 = vld [vmem:[%s507 + $0x38] sm:$0xf]
      %v544 = vld [vmem:[%s507 + $0x3c] sm:$0x1]
      %v545 = vld [vmem:[%s507 + $0x40] sm:$0xf]
      %v546 = vld [vmem:[%s507 + $0x44] sm:$0x1]
      %v547 = vunpack.c.l.bf16 %v529
      %v548 = vunpack.c.l.bf16 %v530
      %v549 = vunpack.c.l.bf16 %v531
      %v550 = vunpack.c.l.bf16 %v532
      %v551 = vunpack.c.l.bf16 %v533
      %v552 = vunpack.c.l.bf16 %v534
      %v553 = vunpack.c.l.bf16 %v535
      %v554 = vunpack.c.l.bf16 %v536
      %v555 = vunpack.c.l.bf16 %v537
      %v556 = vunpack.c.l.bf16 %v538
      %v557 = vunpack.c.l.bf16 %v539
      %v558 = vunpack.c.l.bf16 %v540
      %v559 = vunpack.c.l.bf16 %v541
      %v560 = vunpack.c.l.bf16 %v542
      %v561 = vunpack.c.l.bf16 %v543
      %v562 = vunpack.c.l.bf16 %v544
      %v563 = vunpack.c.l.bf16 %v545
      %v564 = vunpack.c.l.bf16 %v546
      %v565 = vld [vmem:[%s512] sm:$0xf]
      %v566 = vld [vmem:[%s512 + $0x8] sm:$0xf]
      %v567 = vld [vmem:[%s512 + $0x10] sm:$0xf]
      %v568 = vld [vmem:[%s512 + $0x18] sm:$0xf]
      %v569 = vld [vmem:[%s512 + $0x20] sm:$0xf]
      %v570 = vld [vmem:[%s512 + $0x28] sm:$0xf]
      %v571 = vld [vmem:[%s512 + $0x30] sm:$0xf]
      %v572 = vld [vmem:[%s512 + $0x38] sm:$0xf]
      %v573 = vld [vmem:[%s512 + $0x40] sm:$0xf]
      %v574 = vunpack.c.l.bf16 %v565
      %v575 = vunpack.c.l.bf16 %v566
      %v576 = vunpack.c.l.bf16 %v567
      %v577 = vunpack.c.l.bf16 %v568
      %v578 = vunpack.c.l.bf16 %v569
      %v579 = vunpack.c.l.bf16 %v570
      %v580 = vunpack.c.l.bf16 %v571
      %v581 = vunpack.c.l.bf16 %v572
      %v582 = vunpack.c.l.bf16 %v573
      %v583 = vld [vmem:[%s517] sm:$0xf]
      %v584 = vld [vmem:[%s517 + $0x4] sm:$0x1]
      %v585 = vld [vmem:[%s517 + $0x8] sm:$0xf]
      %v586 = vld [vmem:[%s517 + $0xc] sm:$0x1]
      %v587 = vld [vmem:[%s517 + $0x10] sm:$0xf]
      %v588 = vld [vmem:[%s517 + $0x14] sm:$0x1]
      %v589 = vld [vmem:[%s517 + $0x18] sm:$0xf]
      %v590 = vld [vmem:[%s517 + $0x1c] sm:$0x1]
      %v591 = vld [vmem:[%s517 + $0x20] sm:$0xf]
      %v592 = vld [vmem:[%s517 + $0x24] sm:$0x1]
      %v593 = vld [vmem:[%s517 + $0x28] sm:$0xf]
      %v594 = vld [vmem:[%s517 + $0x2c] sm:$0x1]
      %v595 = vld [vmem:[%s517 + $0x30] sm:$0xf]
      %v596 = vld [vmem:[%s517 + $0x34] sm:$0x1]
      %v597 = vld [vmem:[%s517 + $0x38] sm:$0xf]
      %v598 = vld [vmem:[%s517 + $0x3c] sm:$0x1]
      %v599 = vunpack.c.l.bf16 %v583
      %v600 = vunpack.c.l.bf16 %v584
      %v601 = vunpack.c.l.bf16 %v585
      %v602 = vunpack.c.l.bf16 %v586
      %v603 = vunpack.c.l.bf16 %v587
      %v604 = vunpack.c.l.bf16 %v588
      %v605 = vunpack.c.l.bf16 %v589
      %v606 = vunpack.c.l.bf16 %v590
      %v607 = vunpack.c.l.bf16 %v591
      %v608 = vunpack.c.l.bf16 %v592
      %v609 = vunpack.c.l.bf16 %v593
      %v610 = vunpack.c.l.bf16 %v594
      %v611 = vunpack.c.l.bf16 %v595
      %v612 = vunpack.c.l.bf16 %v596
      %v613 = vunpack.c.l.bf16 %v597
      %v614 = vunpack.c.l.bf16 %v598
      %v615 = vld [vmem:[%s522] sm:$0xf]
      %v616 = vld [vmem:[%s522 + $0x8] sm:$0xf]
      %v617 = vld [vmem:[%s522 + $0x10] sm:$0xf]
      %v618 = vld [vmem:[%s522 + $0x18] sm:$0xf]
      %v619 = vld [vmem:[%s522 + $0x20] sm:$0xf]
      %v620 = vld [vmem:[%s522 + $0x28] sm:$0xf]
      %v621 = vld [vmem:[%s522 + $0x30] sm:$0xf]
      %v622 = vld [vmem:[%s522 + $0x38] sm:$0xf]
      %v623 = vunpack.c.l.bf16 %v615
      %v624 = vunpack.c.l.bf16 %v616
      %v625 = vunpack.c.l.bf16 %v617
      %v626 = vunpack.c.l.bf16 %v618
      %v627 = vunpack.c.l.bf16 %v619
      %v628 = vunpack.c.l.bf16 %v620
      %v629 = vunpack.c.l.bf16 %v621
      %v630 = vunpack.c.l.bf16 %v622
      %v631 = vld [vmem:[%s4] sm:$0xff]
      %v632 = vld [vmem:[%s4 + $0x8] sm:$0x1]
      %v633 = vlaneseq
      %v634 = vshrl.u32 %v633, 7
      %v635 = vsub.s32 0, %v634
      %v636 = vrot.slane %v631, %v635
      %v637 = vmul.f32 %v547, %v636
      %v638 = vmul.f32 %v549, %v636
      %v639 = vmul.f32 %v551, %v636
      %v640 = vmul.f32 %v553, %v636
      %v641 = vmul.f32 %v555, %v636
      %v642 = vmul.f32 %v557, %v636
      %v643 = vmul.f32 %v559, %v636
      %v644 = vmul.f32 %v561, %v636
      %v645 = vlaneseq
      %v646 = vshrl.u32 %v645, 7
      %v647 = vsub.s32 1, %v646
      %v648 = vrot.slane %v631, %v647
      %v649 = vmul.f32 %v574, %v648
      %v650 = vmul.f32 %v575, %v648
      %v651 = vmul.f32 %v576, %v648
      %v652 = vmul.f32 %v577, %v648
      %v653 = vmul.f32 %v578, %v648
      %v654 = vmul.f32 %v579, %v648
      %v655 = vmul.f32 %v580, %v648
      %v656 = vmul.f32 %v581, %v648
      %v657 = vadd.f32 %v637, %v649
      %v658 = vadd.f32 %v638, %v650
      %v659 = vadd.f32 %v639, %v651
      %v660 = vadd.f32 %v640, %v652
      %v661 = vadd.f32 %v641, %v653
      %v662 = vadd.f32 %v642, %v654
      %v663 = vadd.f32 %v643, %v655
      %v664 = vadd.f32 %v644, %v656
      %v665 = vlaneseq
      %v666 = vshrl.u32 %v665, 7
      %v667 = vsub.s32 2, %v666
      %v668 = vrot.slane %v631, %v667
      %v669 = vmul.f32 %v547, %v668
      %v670 = vmul.f32 %v548, %v668
      %v671 = vmul.f32 %v549, %v668
      %v672 = vmul.f32 %v550, %v668
      %v673 = vmul.f32 %v551, %v668
      %v674 = vmul.f32 %v552, %v668
      %v675 = vmul.f32 %v553, %v668
      %v676 = vmul.f32 %v554, %v668
      %v677 = vmul.f32 %v555, %v668
      %v678 = vmul.f32 %v556, %v668
      %v679 = vmul.f32 %v557, %v668
      %v680 = vmul.f32 %v558, %v668
      %v681 = vmul.f32 %v559, %v668
      %v682 = vmul.f32 %v560, %v668
      %v683 = vmul.f32 %v561, %v668
      %v684 = vmul.f32 %v562, %v668
      %vm701 = vcmask 1046528
      %v702 = vrot.slane %v669, 1
      %v703 = vrot.slane %v670, 1
      %v704 = vsel %vm701, %v702, %v703
      %v705 = vrot.slane %v671, 1
      %v706 = vrot.slane %v672, 1
      %v707 = vsel %vm701, %v705, %v706
      %v708 = vrot.slane %v673, 1
      %v709 = vrot.slane %v674, 1
      %v710 = vsel %vm701, %v708, %v709
      %v711 = vrot.slane %v675, 1
      %v712 = vrot.slane %v676, 1
      %v713 = vsel %vm701, %v711, %v712
      %v714 = vrot.slane %v677, 1
      %v715 = vrot.slane %v678, 1
      %v716 = vsel %vm701, %v714, %v715
      %v717 = vrot.slane %v679, 1
      %v718 = vrot.slane %v680, 1
      %v719 = vsel %vm701, %v717, %v718
      %v720 = vrot.slane %v681, 1
      %v721 = vrot.slane %v682, 1
      %v722 = vsel %vm701, %v720, %v721
      %v723 = vrot.slane %v683, 1
      %v724 = vrot.slane %v684, 1
      %v725 = vsel %vm701, %v723, %v724
      %v734 = vadd.f32 %v657, %v704
      %v735 = vadd.f32 %v658, %v707
      %v736 = vadd.f32 %v659, %v710
      %v737 = vadd.f32 %v660, %v713
      %v738 = vadd.f32 %v661, %v716
      %v739 = vadd.f32 %v662, %v719
      %v740 = vadd.f32 %v663, %v722
      %v741 = vadd.f32 %v664, %v725
      %v742 = vlaneseq
      %v743 = vshrl.u32 %v742, 7
      %v744 = vsub.s32 3, %v743
      %v745 = vrot.slane %v631, %v744
      %v746 = vmul.f32 %v599, %v745
      %v747 = vmul.f32 %v601, %v745
      %v748 = vmul.f32 %v603, %v745
      %v749 = vmul.f32 %v605, %v745
      %v750 = vmul.f32 %v607, %v745
      %v751 = vmul.f32 %v609, %v745
      %v752 = vmul.f32 %v611, %v745
      %v753 = vmul.f32 %v613, %v745
      %v754 = vadd.f32 %v734, %v746
      %v755 = vadd.f32 %v735, %v747
      %v756 = vadd.f32 %v736, %v748
      %v757 = vadd.f32 %v737, %v749
      %v758 = vadd.f32 %v738, %v750
      %v759 = vadd.f32 %v739, %v751
      %v760 = vadd.f32 %v740, %v752
      %v761 = vadd.f32 %v741, %v753
      %v762 = vlaneseq
      %v763 = vshrl.u32 %v762, 7
      %v764 = vsub.s32 4, %v763
      %v765 = vrot.slane %v631, %v764
      %v766 = vmul.f32 %v623, %v765
      %v767 = vmul.f32 %v624, %v765
      %v768 = vmul.f32 %v625, %v765
      %v769 = vmul.f32 %v626, %v765
      %v770 = vmul.f32 %v627, %v765
      %v771 = vmul.f32 %v628, %v765
      %v772 = vmul.f32 %v629, %v765
      %v773 = vmul.f32 %v630, %v765
      %v774 = vadd.f32 %v754, %v766
      %v775 = vadd.f32 %v755, %v767
      %v776 = vadd.f32 %v756, %v768
      %v777 = vadd.f32 %v757, %v769
      %v778 = vadd.f32 %v758, %v770
      %v779 = vadd.f32 %v759, %v771
      %v780 = vadd.f32 %v760, %v772
      %v781 = vadd.f32 %v761, %v773
      %v782 = vlaneseq
      %v783 = vshrl.u32 %v782, 7
      %v784 = vsub.s32 5, %v783
      %v785 = vrot.slane %v631, %v784
      %v786 = vmul.f32 %v599, %v785
      %v787 = vmul.f32 %v600, %v785
      %v788 = vmul.f32 %v601, %v785
      %v789 = vmul.f32 %v602, %v785
      %v790 = vmul.f32 %v603, %v785
      %v791 = vmul.f32 %v604, %v785
      %v792 = vmul.f32 %v605, %v785
      %v793 = vmul.f32 %v606, %v785
      %v794 = vmul.f32 %v607, %v785
      %v795 = vmul.f32 %v608, %v785
      %v796 = vmul.f32 %v609, %v785
      %v797 = vmul.f32 %v610, %v785
      %v798 = vmul.f32 %v611, %v785
      %v799 = vmul.f32 %v612, %v785
      %v800 = vmul.f32 %v613, %v785
      %v801 = vmul.f32 %v614, %v785
      %v818 = vrot.slane %v786, 1
      %v819 = vrot.slane %v787, 1
      %v820 = vsel %vm701, %v818, %v819
      %v821 = vrot.slane %v788, 1
      %v822 = vrot.slane %v789, 1
      %v823 = vsel %vm701, %v821, %v822
      %v824 = vrot.slane %v790, 1
      %v825 = vrot.slane %v791, 1
      %v826 = vsel %vm701, %v824, %v825
      %v827 = vrot.slane %v792, 1
      %v828 = vrot.slane %v793, 1
      %v829 = vsel %vm701, %v827, %v828
      %v830 = vrot.slane %v794, 1
      %v831 = vrot.slane %v795, 1
      %v832 = vsel %vm701, %v830, %v831
      %v833 = vrot.slane %v796, 1
      %v834 = vrot.slane %v797, 1
      %v835 = vsel %vm701, %v833, %v834
      %v836 = vrot.slane %v798, 1
      %v837 = vrot.slane %v799, 1
      %v838 = vsel %vm701, %v836, %v837
      %v839 = vrot.slane %v800, 1
      %v840 = vrot.slane %v801, 1
      %v841 = vsel %vm701, %v839, %v840
      %v850 = vadd.f32 %v774, %v820
      %v851 = vadd.f32 %v775, %v823
      %v852 = vadd.f32 %v776, %v826
      %v853 = vadd.f32 %v777, %v829
      %v854 = vadd.f32 %v778, %v832
      %v855 = vadd.f32 %v779, %v835
      %v856 = vadd.f32 %v780, %v838
      %v857 = vadd.f32 %v781, %v841
      %v858 = vlaneseq
      %v859 = vshrl.u32 %v858, 7
      %v860 = vsub.s32 6, %v859
      %v861 = vrot.slane %v631, %v860
      %v862 = vmul.f32 %v549, %v861
      %v863 = vmul.f32 %v551, %v861
      %v864 = vmul.f32 %v553, %v861
      %v865 = vmul.f32 %v555, %v861
      %v866 = vmul.f32 %v557, %v861
      %v867 = vmul.f32 %v559, %v861
      %v868 = vmul.f32 %v561, %v861
      %v869 = vmul.f32 %v563, %v861
      %v870 = vadd.f32 %v850, %v862
      %v871 = vadd.f32 %v851, %v863
      %v872 = vadd.f32 %v852, %v864
      %v873 = vadd.f32 %v853, %v865
      %v874 = vadd.f32 %v854, %v866
      %v875 = vadd.f32 %v855, %v867
      %v876 = vadd.f32 %v856, %v868
      %v877 = vadd.f32 %v857, %v869
      %v878 = vlaneseq
      %v879 = vshrl.u32 %v878, 7
      %v880 = vsub.s32 7, %v879
      %v881 = vrot.slane %v631, %v880
      %v882 = vmul.f32 %v575, %v881
      %v883 = vmul.f32 %v576, %v881
      %v884 = vmul.f32 %v577, %v881
      %v885 = vmul.f32 %v578, %v881
      %v886 = vmul.f32 %v579, %v881
      %v887 = vmul.f32 %v580, %v881
      %v888 = vmul.f32 %v581, %v881
      %v889 = vmul.f32 %v582, %v881
      %v890 = vadd.f32 %v870, %v882
      %v891 = vadd.f32 %v871, %v883
      %v892 = vadd.f32 %v872, %v884
      %v893 = vadd.f32 %v873, %v885
      %v894 = vadd.f32 %v874, %v886
      %v895 = vadd.f32 %v875, %v887
      %v896 = vadd.f32 %v876, %v888
      %v897 = vadd.f32 %v877, %v889
      %v898 = vlaneseq
      %v899 = vshrl.u32 %v898, 7
      %v900 = vsub.s32 0, %v899
      %v901 = vrot.slane %v632, %v900
      %v902 = vmul.f32 %v549, %v901
      %v903 = vmul.f32 %v550, %v901
      %v904 = vmul.f32 %v551, %v901
      %v905 = vmul.f32 %v552, %v901
      %v906 = vmul.f32 %v553, %v901
      %v907 = vmul.f32 %v554, %v901
      %v908 = vmul.f32 %v555, %v901
      %v909 = vmul.f32 %v556, %v901
      %v910 = vmul.f32 %v557, %v901
      %v911 = vmul.f32 %v558, %v901
      %v912 = vmul.f32 %v559, %v901
      %v913 = vmul.f32 %v560, %v901
      %v914 = vmul.f32 %v561, %v901
      %v915 = vmul.f32 %v562, %v901
      %v916 = vmul.f32 %v563, %v901
      %v917 = vmul.f32 %v564, %v901
      %v934 = vrot.slane %v902, 1
      %v935 = vrot.slane %v903, 1
      %v936 = vsel %vm701, %v934, %v935
      %v937 = vrot.slane %v904, 1
      %v938 = vrot.slane %v905, 1
      %v939 = vsel %vm701, %v937, %v938
      %v940 = vrot.slane %v906, 1
      %v941 = vrot.slane %v907, 1
      %v942 = vsel %vm701, %v940, %v941
      %v943 = vrot.slane %v908, 1
      %v944 = vrot.slane %v909, 1
      %v945 = vsel %vm701, %v943, %v944
      %v946 = vrot.slane %v910, 1
      %v947 = vrot.slane %v911, 1
      %v948 = vsel %vm701, %v946, %v947
      %v949 = vrot.slane %v912, 1
      %v950 = vrot.slane %v913, 1
      %v951 = vsel %vm701, %v949, %v950
      %v952 = vrot.slane %v914, 1
      %v953 = vrot.slane %v915, 1
      %v954 = vsel %vm701, %v952, %v953
      %v955 = vrot.slane %v916, 1
      %v956 = vrot.slane %v917, 1
      %v957 = vsel %vm701, %v955, %v956
      %v966 = vadd.f32 %v890, %v936
      %v967 = vadd.f32 %v891, %v939
      %v968 = vadd.f32 %v892, %v942
      %v969 = vadd.f32 %v893, %v945
      %v970 = vadd.f32 %v894, %v948
      %v971 = vadd.f32 %v895, %v951
      %v972 = vadd.f32 %v896, %v954
      %v973 = vadd.f32 %v897, %v957
      %v974 = vld [vmem:[%s5] sm:$0x1]
      %v976 = vlaneseq
      %v977 = vshrl.u32 %v976, 7
      %v978 = vsub.s32 0, %v977
      %v979 = vrot.slane %v974, %v978
      %v981 = vmul.f32 %v966, %v979
      %v982 = vmul.f32 %v967, %v979
      %v983 = vmul.f32 %v968, %v979
      %v984 = vmul.f32 %v969, %v979
      %v985 = vmul.f32 %v970, %v979
      %v986 = vmul.f32 %v971, %v979
      %v987 = vmul.f32 %v972, %v979
      %v988 = vmul.f32 %v973, %v979
      %v989 = vld [vmem:[%s6] sm:$0x1]
      %v991 = vlaneseq
      %v992 = vshrl.u32 %v991, 7
      %v993 = vsub.s32 0, %v992
      %v994 = vrot.slane %v989, %v993
      %v996 = vadd.f32 %v981, %v994
      %v997 = vadd.f32 %v982, %v994
      %v998 = vadd.f32 %v983, %v994
      %v999 = vadd.f32 %v984, %v994
      %v1000 = vadd.f32 %v985, %v994
      %v1001 = vadd.f32 %v986, %v994
      %v1002 = vadd.f32 %v987, %v994
      %v1003 = vadd.f32 %v988, %v994
      %v1004 = vadd.f32 %v996, 3.0
      %v1005 = vadd.f32 %v997, 3.0
      %v1006 = vadd.f32 %v998, 3.0
      %v1007 = vadd.f32 %v999, 3.0
      %v1008 = vadd.f32 %v1000, 3.0
      %v1009 = vadd.f32 %v1001, 3.0
      %v1010 = vadd.f32 %v1002, 3.0
      %v1011 = vadd.f32 %v1003, 3.0
      %v1012 = vmax.f32 %v1004, 0.0
      %v1013 = vmax.f32 %v1005, 0.0
      %v1014 = vmax.f32 %v1006, 0.0
      %v1015 = vmax.f32 %v1007, 0.0
      %v1016 = vmax.f32 %v1008, 0.0
      %v1017 = vmax.f32 %v1009, 0.0
      %v1018 = vmax.f32 %v1010, 0.0
      %v1019 = vmax.f32 %v1011, 0.0
      %v1020 = vmin.f32 %v1012, 6.0
      %v1021 = vmin.f32 %v1013, 6.0
      %v1022 = vmin.f32 %v1014, 6.0
      %v1023 = vmin.f32 %v1015, 6.0
      %v1024 = vmin.f32 %v1016, 6.0
      %v1025 = vmin.f32 %v1017, 6.0
      %v1026 = vmin.f32 %v1018, 6.0
      %v1027 = vmin.f32 %v1019, 6.0
      %v1028 = vmul.f32 %v996, %v1020
      %v1029 = vmul.f32 %v997, %v1021
      %v1030 = vmul.f32 %v998, %v1022
      %v1031 = vmul.f32 %v999, %v1023
      %v1032 = vmul.f32 %v1000, %v1024
      %v1033 = vmul.f32 %v1001, %v1025
      %v1034 = vmul.f32 %v1002, %v1026
      %v1035 = vmul.f32 %v1003, %v1027
      %v1036 = vmul.f32 %v1028, 0.16666667
      %v1037 = vmul.f32 %v1029, 0.16666667
      %v1038 = vmul.f32 %v1030, 0.16666667
      %v1039 = vmul.f32 %v1031, 0.16666667
      %v1040 = vmul.f32 %v1032, 0.16666667
      %v1041 = vmul.f32 %v1033, 0.16666667
      %v1042 = vmul.f32 %v1034, 0.16666667
      %v1043 = vmul.f32 %v1035, 0.16666667
      %vm1044 = vcmask 392192
      %v1045 = vsel %vm1044, %v1036, 0.0
      %v1046 = vsel %vm1044, %v1037, 0.0
      %v1047 = vadd.f32 %v1045, %v1046
      %v1048 = vsel %vm1044, %v1038, 0.0
      %v1049 = vadd.f32 %v1047, %v1048
      %v1050 = vsel %vm1044, %v1039, 0.0
      %v1051 = vadd.f32 %v1049, %v1050
      %v1052 = vsel %vm1044, %v1040, 0.0
      %v1053 = vadd.f32 %v1051, %v1052
      %v1054 = vsel %vm1044, %v1041, 0.0
      %v1055 = vadd.f32 %v1053, %v1054
      %v1056 = vsel %vm1044, %v1042, 0.0
      %v1057 = vadd.f32 %v1055, %v1056
      %v1058 = vsel %vm1044, %v1043, 0.0
      %v1059 = vadd.f32 %v1057, %v1058
      %v1060 = vrot.slane %v1059, 4
      %v1061 = vadd.f32 %v1059, %v1060
      %v1062 = vrot.slane %v1061, 2
      %v1063 = vadd.f32 %v1061, %v1062
      %v1064 = vrot.slane %v1063, 1
      %v1065 = vadd.f32 %v1063, %v1064
      %v1066 = vrcp.pop 64.0
      %v1067 = vmul.f32 %v1065, %v1066
      %v1068 = vld [vmem:[%s7] sm:$0xff]
      %v1069 = vld [vmem:[%s7 + $0x8] sm:$0xff]
      %v1070 = vld [vmem:[%s7 + $0x10] sm:$0xff]
      %v1071 = vld [vmem:[%s7 + $0x18] sm:$0xff]
      %v1072 = vld [vmem:[%s7 + $0x20] sm:$0xff]
      %v1073 = vld [vmem:[%s7 + $0x28] sm:$0xff]
      %v1074 = vld [vmem:[%s8] sm:$0x1]
      %v1076 = vsel %vm1044, %v1067, 0
      %1078 = vmatprep.subr.mxu0 0.0
      %1079 = vmatpush1.msra.mxu0 0.0
      %1080 = vmatprep.subr.mxu0 0.0
      %1081 = vmatpush1.msra.mxu0 0.0
      %1082 = vmatprep.subr.mxu0 0.0
      %1083 = vmatpush1.msra.mxu0 0.0
      %1084 = vmatprep.subr.mxu0 0.0
      %1085 = vmatpush1.msra.mxu0 0.0
      %1086 = vmatprep.subr.mxu0 0.0
      %1087 = vmatpush1.msra.mxu0 0.0
      %1088 = vmatprep.subr.mxu0 0.0
      %1089 = vmatpush1.msra.mxu0 0.0
      %1090 = vmatprep.subr.mxu0 0.0
      %1091 = vmatpush1.msra.mxu0 0.0
      %1092 = vmatprep.subr.mxu0 0.0
      %1093 = vmatpush1.msra.mxu0 0.0
      %1094 = vmatprep.subr.mxu0 0.0
      %1095 = vmatpush1.msra.mxu0 0.0
      %1096 = vmatprep.subr.mxu0 0.0
      %1097 = vmatpush1.msra.mxu0 0.0
      %1098 = vmatprep.subr.mxu0 0.0
      %1099 = vmatpush1.msra.mxu0 %v1073
      %1100 = vmatprep.subr.mxu0 0.0
      %1101 = vmatpush1.msra.mxu0 %v1072
      %1102 = vmatprep.subr.mxu0 0.0
      %1103 = vmatpush1.msra.mxu0 %v1071
      %1104 = vmatprep.subr.mxu0 0.0
      %1105 = vmatpush1.msra.mxu0 %v1070
      %1106 = vmatprep.subr.mxu0 0.0
      %1107 = vmatpush1.msra.mxu0 %v1069
      %1108 = vmatprep.subr.mxu0 0.0
      %1109 = vmatpush1.msra.mxu0 %v1068
      %1110 = vmatprep.subr.mxu0 0.0
      %1111 = vmatpush2.msra.mxu0 0.0
      %1112 = vmatprep.subr.mxu0 0.0
      %1113 = vmatpush2.msra.mxu0 0.0
      %1114 = vmatprep.subr.mxu0 0.0
      %1115 = vmatpush2.msra.mxu0 0.0
      %1116 = vmatprep.subr.mxu0 0.0
      %1117 = vmatpush2.msra.mxu0 0.0
      %1118 = vmatprep.subr.mxu0 0.0
      %1119 = vmatpush2.msra.mxu0 0.0
      %1120 = vmatprep.subr.mxu0 0.0
      %1121 = vmatpush2.msra.mxu0 0.0
      %1122 = vmatprep.subr.mxu0 0.0
      %1123 = vmatpush2.msra.mxu0 0.0
      %1124 = vmatprep.subr.mxu0 0.0
      %1125 = vmatpush2.msra.mxu0 0.0
      %1126 = vmatprep.subr.mxu0 0.0
      %1127 = vmatpush2.msra.mxu0 0.0
      %1128 = vmatprep.subr.mxu0 0.0
      %1129 = vmatpush2.msra.mxu0 0.0
      %1130 = vmatprep.subr.mxu0 0.0
      %1131 = vmatpush2.msra.mxu0 0.0
      %1132 = vmatprep.subr.mxu0 0.0
      %1133 = vmatpush2.msra.mxu0 0.0
      %1134 = vmatprep.subr.mxu0 0.0
      %1135 = vmatpush2.msra.mxu0 0.0
      %1136 = vmatprep.subr.mxu0 0.0
      %1137 = vmatpush2.msra.mxu0 0.0
      %1138 = vmatprep.subr.mxu0 0.0
      %1139 = vmatpush2.msra.mxu0 0.0
      %1140 = vmatprep.subr.mxu0 0.0
      %1141 = vmatpush2.msra.mxu0 0.0
      %1142 = vmatprep.mubr.f32.mxu0 0.0
      %1143 = vmatmul.mubr.f32.gmra.mxu0 %v1076
      %v1144 = vpop.f32.mrf.mxu0
      %v1145 = vadd.f32 %v1074, %v1144
      %v1146 = vpop.f32.mrf.mxu0
      %1147 = vdwg.mxu0
      %v1148 = vmax.f32 %v1145, 0.0
      %v1149 = vld [vmem:[%s9] sm:$0xff]
      %v1150 = vld [vmem:[%s9 + $0x8] sm:$0xf]
      %v1151 = vld [vmem:[%s10] sm:$0x1]
      %vm1152 = vcmask 97280
      %v1154 = vsel %vm1152, %v1148, 0
      %vm1156 = vcmask 1043456
      %v1158 = vsel %vm1156, %v1150, 0
      %1160 = vmatprep.subr.mxu0 0.0
      %1161 = vmatpush1.msra.mxu0 0.0
      %1162 = vmatprep.subr.mxu0 0.0
      %1163 = vmatpush1.msra.mxu0 0.0
      %1164 = vmatprep.subr.mxu0 0.0
      %1165 = vmatpush1.msra.mxu0 0.0
      %1166 = vmatprep.subr.mxu0 0.0
      %1167 = vmatpush1.msra.mxu0 0.0
      %1168 = vmatprep.subr.mxu0 0.0
      %1169 = vmatpush1.msra.mxu0 0.0
      %1170 = vmatprep.subr.mxu0 0.0
      %1171 = vmatpush1.msra.mxu0 0.0
      %1172 = vmatprep.subr.mxu0 0.0
      %1173 = vmatpush1.msra.mxu0 0.0
      %1174 = vmatprep.subr.mxu0 0.0
      %1175 = vmatpush1.msra.mxu0 0.0
      %1176 = vmatprep.subr.mxu0 0.0
      %1177 = vmatpush1.msra.mxu0 0.0
      %1178 = vmatprep.subr.mxu0 0.0
      %1179 = vmatpush1.msra.mxu0 0.0
      %1180 = vmatprep.subr.mxu0 0.0
      %1181 = vmatpush1.msra.mxu0 0.0
      %1182 = vmatprep.subr.mxu0 0.0
      %1183 = vmatpush1.msra.mxu0 0.0
      %1184 = vmatprep.subr.mxu0 0.0
      %1185 = vmatpush1.msra.mxu0 0.0
      %1186 = vmatprep.subr.mxu0 0.0
      %1187 = vmatpush1.msra.mxu0 0.0
      %1188 = vmatprep.subr.mxu0 0.0
      %1189 = vmatpush1.msra.mxu0 %v1158
      %1190 = vmatprep.subr.mxu0 0.0
      %1191 = vmatpush1.msra.mxu0 %v1149
      %1192 = vmatprep.subr.mxu0 0.0
      %1193 = vmatpush2.msra.mxu0 0.0
      %1194 = vmatprep.subr.mxu0 0.0
      %1195 = vmatpush2.msra.mxu0 0.0
      %1196 = vmatprep.subr.mxu0 0.0
      %1197 = vmatpush2.msra.mxu0 0.0
      %1198 = vmatprep.subr.mxu0 0.0
      %1199 = vmatpush2.msra.mxu0 0.0
      %1200 = vmatprep.subr.mxu0 0.0
      %1201 = vmatpush2.msra.mxu0 0.0
      %1202 = vmatprep.subr.mxu0 0.0
      %1203 = vmatpush2.msra.mxu0 0.0
      %1204 = vmatprep.subr.mxu0 0.0
      %1205 = vmatpush2.msra.mxu0 0.0
      %1206 = vmatprep.subr.mxu0 0.0
      %1207 = vmatpush2.msra.mxu0 0.0
      %1208 = vmatprep.subr.mxu0 0.0
      %1209 = vmatpush2.msra.mxu0 0.0
      %1210 = vmatprep.subr.mxu0 0.0
      %1211 = vmatpush2.msra.mxu0 0.0
      %1212 = vmatprep.subr.mxu0 0.0
      %1213 = vmatpush2.msra.mxu0 0.0
      %1214 = vmatprep.subr.mxu0 0.0
      %1215 = vmatpush2.msra.mxu0 0.0
      %1216 = vmatprep.subr.mxu0 0.0
      %1217 = vmatpush2.msra.mxu0 0.0
      %1218 = vmatprep.subr.mxu0 0.0
      %1219 = vmatpush2.msra.mxu0 0.0
      %1220 = vmatprep.subr.mxu0 0.0
      %1221 = vmatpush2.msra.mxu0 0.0
      %1222 = vmatprep.subr.mxu0 0.0
      %1223 = vmatpush2.msra.mxu0 0.0
      %1224 = vmatprep.mubr.f32.mxu0 0.0
      %1225 = vmatmul.mubr.f32.gmra.mxu0 %v1154
      %v1226 = vpop.f32.mrf.mxu0
      %v1227 = vadd.f32 %v1151, %v1226
      %v1228 = vpop.f32.mrf.mxu0
      %1229 = vdwg.mxu0
      %v1230 = vadd.f32 %v1227, 3.0
      %v1231 = vmax.f32 %v1230, 0.0
      %v1232 = vmin.f32 %v1231, 6.0
      %v1233 = vmul.f32 %v1232, 0.16666667
      %v1234 = vlaneseq
      %v1235 = vshrl.u32 %v1234, 7
      %v1236 = vsub.s32 0, %v1235
      %v1237 = vrot.slane %v1233, %v1236
      %v1238 = vmul.f32 %v1036, %v1237
      %v1239 = vmul.f32 %v1037, %v1237
      %v1240 = vmul.f32 %v1038, %v1237
      %v1241 = vmul.f32 %v1039, %v1237
      %v1242 = vmul.f32 %v1040, %v1237
      %v1243 = vmul.f32 %v1041, %v1237
      %v1244 = vmul.f32 %v1042, %v1237
      %v1245 = vmul.f32 %v1043, %v1237
      %v1246 = vpack.c.bf16 %v1239, %v1238
      %v1247 = vpack.c.bf16 %v1241, %v1240
      %v1248 = vpack.c.bf16 %v1243, %v1242
      %v1249 = vpack.c.bf16 %v1245, %v1244
      %v1250 = vld [vmem:[%s11] sm:$0xf]
      %v1251 = vld [vmem:[%s11 + $0x4] sm:$0xf]
      %v1252 = vld [vmem:[%s11 + $0x8] sm:$0xf]
      %v1253 = vld [vmem:[%s11 + $0xc] sm:$0xf]
      %v1254 = vld [vmem:[%s11 + $0x10] sm:$0xf]
      %v1255 = vld [vmem:[%s11 + $0x14] sm:$0xf]
      %v1262 = vunpack.c.l.b16 %v1250
      %v1263 = vunpack.c.l.b16 %v1251
      %v1264 = vunpack.c.l.b16 %v1252
      %v1265 = vunpack.c.l.b16 %v1253
      %v1266 = vunpack.c.l.b16 %v1254
      %v1267 = vunpack.c.l.b16 %v1255
      %v1268 = vpack.c.b16 %v1263, %v1262
      %v1269 = vpack.c.b16 %v1265, %v1264
      %v1270 = vpack.c.b16 %v1267, %v1266
      %v1275 = vsel %vm1044, %v1246, 0
      %v1278 = vsel %vm1044, %v1247, 0
      %v1281 = vsel %vm1044, %v1248, 0
      %v1284 = vsel %vm1044, %v1249, 0
      %1286 = vmatprep.subr.bf16.mxu0 0
      %1287 = vmatpush1.bf16.msra.mxu0 0
      %1288 = vmatprep.subr.bf16.mxu0 0
      %1289 = vmatpush1.bf16.msra.mxu0 0
      %1290 = vmatprep.subr.bf16.mxu0 0
      %1291 = vmatpush1.bf16.msra.mxu0 0
      %1292 = vmatprep.subr.bf16.mxu0 0
      %1293 = vmatpush1.bf16.msra.mxu0 0
      %1294 = vmatprep.subr.bf16.mxu0 0
      %1295 = vmatpush1.bf16.msra.mxu0 0
      %1296 = vmatprep.subr.bf16.mxu0 0
      %1297 = vmatpush1.bf16.msra.mxu0 %v1270
      %1298 = vmatprep.subr.bf16.mxu0 0
      %1299 = vmatpush1.bf16.msra.mxu0 %v1269
      %1300 = vmatprep.subr.bf16.mxu0 0
      %1301 = vmatpush1.bf16.msra.mxu0 %v1268
      %1302 = vmatprep.subr.bf16.mxu0 0
      %1303 = vmatpush2.bf16.msra.mxu0 0
      %1304 = vmatprep.subr.bf16.mxu0 0
      %1305 = vmatpush2.bf16.msra.mxu0 0
      %1306 = vmatprep.subr.bf16.mxu0 0
      %1307 = vmatpush2.bf16.msra.mxu0 0
      %1308 = vmatprep.subr.bf16.mxu0 0
      %1309 = vmatpush2.bf16.msra.mxu0 0
      %1310 = vmatprep.subr.bf16.mxu0 0
      %1311 = vmatpush2.bf16.msra.mxu0 0
      %1312 = vmatprep.subr.bf16.mxu0 0
      %1313 = vmatpush2.bf16.msra.mxu0 0
      %1314 = vmatprep.subr.bf16.mxu0 0
      %1315 = vmatpush2.bf16.msra.mxu0 0
      %1316 = vmatprep.subr.bf16.mxu0 0
      %1317 = vmatpush2.bf16.msra.mxu0 0
      %1318 = vmatprep.mubr.bf16.mxu0 0
      %1319 = vmatmul.mubr.bf16.gmra.mxu0 %v1275
      %v1320 = vpop.f32.mrf.mxu0
      %v1321 = vadd.f32 0.0, %v1320
      %v1322 = vpop.f32.mrf.mxu0
      %v1323 = vpop.f32.mrf.mxu0
      %v1324 = vadd.f32 0.0, %v1323
      %v1325 = vpop.f32.mrf.mxu0
      %1326 = vmatprep.mubr.bf16.mxu0 0
      %1327 = vmatmul.mubr.bf16.gmra.mxu0 %v1278
      %v1328 = vpop.f32.mrf.mxu0
      %v1329 = vadd.f32 0.0, %v1328
      %v1330 = vpop.f32.mrf.mxu0
      %v1331 = vpop.f32.mrf.mxu0
      %v1332 = vadd.f32 0.0, %v1331
      %v1333 = vpop.f32.mrf.mxu0
      %1334 = vmatprep.mubr.bf16.mxu0 0
      %1335 = vmatmul.mubr.bf16.gmra.mxu0 %v1281
      %v1336 = vpop.f32.mrf.mxu0
      %v1337 = vadd.f32 0.0, %v1336
      %v1338 = vpop.f32.mrf.mxu0
      %v1339 = vpop.f32.mrf.mxu0
      %v1340 = vadd.f32 0.0, %v1339
      %v1341 = vpop.f32.mrf.mxu0
      %1342 = vmatprep.mubr.bf16.mxu0 0
      %1343 = vmatmul.mubr.bf16.gmra.mxu0 %v1284
      %v1344 = vpop.f32.mrf.mxu0
      %v1345 = vadd.f32 0.0, %v1344
      %v1346 = vpop.f32.mrf.mxu0
      %v1347 = vpop.f32.mrf.mxu0
      %v1348 = vadd.f32 0.0, %v1347
      %v1349 = vpop.f32.mrf.mxu0
      %1350 = vdwg.mxu0
      %v1351 = vld [vmem:[%s12] sm:$0x1]
      %v1353 = vlaneseq
      %v1354 = vshrl.u32 %v1353, 7
      %v1355 = vsub.s32 0, %v1354
      %v1356 = vrot.slane %v1351, %v1355
      %v1358 = vmul.f32 %v1321, %v1356
      %v1359 = vmul.f32 %v1324, %v1356
      %v1360 = vmul.f32 %v1329, %v1356
      %v1361 = vmul.f32 %v1332, %v1356
      %v1362 = vmul.f32 %v1337, %v1356
      %v1363 = vmul.f32 %v1340, %v1356
      %v1364 = vmul.f32 %v1345, %v1356
      %v1365 = vmul.f32 %v1348, %v1356
      %v1366 = vld [vmem:[%s13] sm:$0x1]
      %v1368 = vlaneseq
      %v1369 = vshrl.u32 %v1368, 7
      %v1370 = vsub.s32 0, %v1369
      %v1371 = vrot.slane %v1366, %v1370
      %v1373 = vadd.f32 %v1358, %v1371
      %v1374 = vadd.f32 %v1359, %v1371
      %v1375 = vadd.f32 %v1360, %v1371
      %v1376 = vadd.f32 %v1361, %v1371
      %v1377 = vadd.f32 %v1362, %v1371
      %v1378 = vadd.f32 %v1363, %v1371
      %v1379 = vadd.f32 %v1364, %v1371
      %v1380 = vadd.f32 %v1365, %v1371
      %v1381 = vpack.c.bf16 %v1374, %v1373
      %v1382 = vpack.c.bf16 %v1376, %v1375
      %v1383 = vpack.c.bf16 %v1378, %v1377
      %v1384 = vpack.c.bf16 %v1380, %v1379
      %v1389 = vunpack.c.l.b16 %v1381
      %v1390 = vunpack.c.h.b16 %v1381
      %v1391 = vunpack.c.l.b16 %v1382
      %v1392 = vunpack.c.h.b16 %v1382
      %v1393 = vunpack.c.l.b16 %v1383
      %v1394 = vunpack.c.h.b16 %v1383
      %v1395 = vunpack.c.l.b16 %v1384
      %v1396 = vunpack.c.h.b16 %v1384
      %v1397 = vpack.c.b16 %v1389, %v1389
      %v1398 = vpack.c.b16 %v1390, %v1390
      %v1399 = vpack.c.b16 %v1391, %v1391
      %v1400 = vpack.c.b16 %v1392, %v1392
      %v1401 = vpack.c.b16 %v1393, %v1393
      %v1402 = vpack.c.b16 %v1394, %v1394
      %v1403 = vpack.c.b16 %v1395, %v1395
      %v1404 = vpack.c.b16 %v1396, %v1396
      %vm1413 = vcmask 191488
      %1414 = vst.msk [vmem:[%s527] sm:$0xf] %vm1413, %v1397
      %1415 = vst.msk [vmem:[%s527 + $0x4] sm:$0xf] %vm1413, %v1398
      %1416 = vst.msk [vmem:[%s527 + $0x8] sm:$0xf] %vm1413, %v1399
      %1417 = vst.msk [vmem:[%s527 + $0xc] sm:$0xf] %vm1413, %v1400
      %1418 = vst.msk [vmem:[%s527 + $0x10] sm:$0xf] %vm1413, %v1401
      %1419 = vst.msk [vmem:[%s527 + $0x14] sm:$0xf] %vm1413, %v1402
      %1420 = vst.msk [vmem:[%s527 + $0x18] sm:$0xf] %vm1413, %v1403
      %1421 = vst.msk [vmem:[%s527 + $0x1c] sm:$0xf] %vm1413, %v1404
      %p1422 = scmp.lt.s32.totalorder %s25, 1
      %s1423 = scalar_select %p1422, %s25, 1
      %s1424 = smul.addr %s1423, 8
      %s1425 = smul.addr %s1424, 4
      %s1426 = scalar_lea.vmem %s14, %s1425
      // Predicated region
      $region77: #{mobilenetv3_forward.8} parent=75 // pred_check
        %p1427 = pneg %p357
      $region78: #{mobilenetv3_forward.8} parent=75 // pred_check_branch
        %1429 = sbr.rel (%p1427) target = $region80
      $region79: #{mobilenetv3_forward.8} parent=75 // pred_region
        _
      $region80: #{mobilenetv3_forward.8} parent=75 // pred_fallthru
        _
    $region76: #{mobilenetv3_forward.8} parent=5 // pred_fallthru
      _
    %p1430 = scmp.le.s32.totalorder 2, %s20
    // Predicated region
    $region81: #{mobilenetv3_forward.8} parent=5 // pred_check
      %p1431 = pneg %p1430
    $region82: #{mobilenetv3_forward.8} parent=5 // pred_check_branch
      %1433 = sbr.rel (%p1431) target = $region84
    $region83: #{mobilenetv3_forward.8} parent=5 // pred_region
      %s1434 = ssub.s32 %s20, 2
      // Predicated region
      $region85: #{mobilenetv3_forward.8} parent=83 // pred_check
        %p1435 = pneg %p363
      $region86: #{mobilenetv3_forward.8} parent=83 // pred_check_branch
        %1437 = sbr.rel (%p1435) target = $region88
      $region87: #{mobilenetv3_forward.8} parent=83 // pred_region
        %p1438 = scmp.lt.s32.totalorder %s26, 1
        %s1439 = scalar_select %p1438, %s26, 1
        %s1440 = smul.addr %s1439, 8
        %s1441 = smul.addr %s1440, 4
        %s1442 = scalar_lea.vmem %s14, %s1441
      $region88: #{mobilenetv3_forward.8} parent=83 // pred_fallthru
        _
    $region84: #{mobilenetv3_forward.8} parent=5 // pred_fallthru
      _
  $region6: #{mobilenetv3_forward.8} parent=0 // loop_footer
    %s24 = sadd.s32 1, %s20
  $region7: #{mobilenetv3_forward.8} parent=0 // loop_footer_branch
    %19 = sbr.rel target = $region3
  $region8: #{mobilenetv3_forward.8} parent=0 // loop_exit
    _

</llo_original>
